<compile_context>
chip_gen: v5e
topology: v5e:2x2
jax: 0.10.0
libtpu: 0.0.40
codegen_flags: <defaults>
</compile_context>

<pallas_src>
import jax
import jax.numpy as jnp
from jax import lax
from jax.experimental import pallas as pl
from jax.experimental.pallas import tpu as pltpu


# ----------------------------------------------------------------------------
# Helpers
# ----------------------------------------------------------------------------
def _round_up(x, m):
    return ((x + m - 1) // m) * m


def _pad_gate_cols(w_t, H, Hp):
    """Pad each of the 4 gate column-blocks of width H up to width Hp (zeros).

    w_t: (rows, 4H) -> (rows, 4Hp) with layout [i_pad | f_pad | g_pad | o_pad].
    Keeps every gate slice lane-aligned to a multiple of 128 inside the kernel.
    """
    parts = []
    for g in range(4):
        blk = w_t[:, g * H:(g + 1) * H]
        parts.append(jnp.pad(blk, ((0, 0), (0, Hp - H))))
    return jnp.concatenate(parts, axis=1)


# ----------------------------------------------------------------------------
# Fused Pallas kernel:  all LSTM layers + projection in one invocation.
# ----------------------------------------------------------------------------
def _make_fused_kernel(num_layers, T, Bp, Hp):
    G = 4 * Hp

    def kernel(*refs):
        # ---- unpack positional refs -------------------------------------
        x_ref = refs[0]
        layer_refs = refs[1:1 + 3 * num_layers]      # (wih, whh, bias) per layer
        pw_ref = refs[1 + 3 * num_layers]            # (Hp, Op)
        pb_ref = refs[2 + 3 * num_layers]            # (1, Op)
        out_ref = refs[3 + 3 * num_layers]           # (T, Bp, Op)
        seq_buf = refs[4 + 3 * num_layers]           # VMEM (T, Bp, Hp)
        xg_buf = refs[5 + 3 * num_layers]            # VMEM (T, Bp, 4*Hp)

        # Current layer input for the whole sequence, as a 2-D slab.
        cur2d = x_ref[...].reshape(T * Bp, x_ref.shape[-1])

        for l in range(num_layers):
            wih = layer_refs[3 * l][...]             # (d_in_pad, 4Hp)
            whh = layer_refs[3 * l + 1][...]         # (Hp, 4Hp)
            bias = layer_refs[3 * l + 2][...]        # (1, 4Hp)

            # Hoisted input projection: ONE big MXU matmul for the full
            # sequence (rows = T*Bp), instead of T tiny per-step matmuls.
            xg = jnp.dot(cur2d, wih, preferred_element_type=jnp.float32) + bias
            xg_buf[...] = xg.reshape(T, Bp, G)

            def step(t, carry, whh=whh):
                h_prev, c_prev = carry
                # Per-step recurrence: only h_prev @ W_hh + precomputed gates.
                gates = (jnp.dot(h_prev, whh,
                                 preferred_element_type=jnp.float32)
                         + xg_buf[t])
                # PyTorch gate order: input, forget, cell(g), output.
                # Each slice is a full lane-aligned (Bp, Hp) block.
                i = jax.nn.sigmoid(gates[:, 0 * Hp:1 * Hp])
                f = jax.nn.sigmoid(gates[:, 1 * Hp:2 * Hp])
                g = jnp.tanh(gates[:, 2 * Hp:3 * Hp])
                o = jax.nn.sigmoid(gates[:, 3 * Hp:4 * Hp])
                c_new = f * c_prev + i * g
                h_new = o * jnp.tanh(c_new)
                seq_buf[t] = h_new
                return h_new, c_new

            h0 = jnp.zeros((Bp, Hp), jnp.float32)    # zero initial state
            c0 = jnp.zeros((Bp, Hp), jnp.float32)
            lax.fori_loop(0, T, step, (h0, c0), unroll=True)

            # Next layer consumes this layer's full hidden sequence.
            cur2d = seq_buf[...].reshape(T * Bp, Hp)

        # Dropout(p=0.05): identity at inference.
        # TODO(synk): training-mode stochastic dropout not implemented
        # (eval semantics used).

        # Final projection fused into the same kernel epilogue; single
        # lane-dense (last dim = Op multiple of 128) output store.
        out = (jnp.dot(cur2d, pw_ref[...], preferred_element_type=jnp.float32)
               + pb_ref[...])
        out_ref[...] = out.reshape(out_ref.shape)

    return kernel


# ----------------------------------------------------------------------------
# Parameter construction (deterministic, PyTorch-style uniform(-k, k))
# ----------------------------------------------------------------------------
def init_params(key, num_layers, in_dims, hidden_dims, out_dims):
    k = 1.0 / jnp.sqrt(jnp.float32(hidden_dims))
    params = {"lstm": []}
    for layer in range(num_layers):
        d_in = in_dims if layer == 0 else hidden_dims
        key, k1, k2, k3, k4 = jax.random.split(key, 5)
        params["lstm"].append({
            "w_ih": jax.random.uniform(k1, (4 * hidden_dims, d_in),
                                       jnp.float32, -k, k),
            "w_hh": jax.random.uniform(k2, (4 * hidden_dims, hidden_dims),
                                       jnp.float32, -k, k),
            "b_ih": jax.random.uniform(k3, (4 * hidden_dims,),
                                       jnp.float32, -k, k),
            "b_hh": jax.random.uniform(k4, (4 * hidden_dims,),
                                       jnp.float32, -k, k),
        })
    key, k5, k6 = jax.random.split(key, 3)
    kp = 1.0 / jnp.sqrt(jnp.float32(hidden_dims * 2))
    # Shapes exactly as declared in __init__: Linear(hidden_dims * 2, out_dims)
    params["proj_w"] = jax.random.uniform(k5, (out_dims, hidden_dims * 2),
                                          jnp.float32, -kp, kp)
    params["proj_b"] = jax.random.uniform(k6, (out_dims,),
                                          jnp.float32, -kp, kp)
    return params


def prepare_params(params, in_dims, hidden_dims, out_dims):
    """One-time weight prep: transpose, combine biases, pad to (8,128) tiles."""
    H = hidden_dims
    Hp = _round_up(H, 128)
    Dp = _round_up(in_dims, 128)
    Op = _round_up(out_dims, 128)

    layers = []
    for l, lp in enumerate(params["lstm"]):
        d_in = in_dims if l == 0 else H
        d_in_pad = Dp if l == 0 else Hp
        wih_t = jnp.transpose(lp["w_ih"])                      # (d_in, 4H)
        whh_t = jnp.transpose(lp["w_hh"])                      # (H, 4H)
        bias = (lp["b_ih"] + lp["b_hh"]).reshape(1, 4 * H)     # (1, 4H)

        wih_p = _pad_gate_cols(wih_t, H, Hp)                   # (d_in, 4Hp)
        wih_p = jnp.pad(wih_p, ((0, d_in_pad - d_in), (0, 0)))
        whh_p = _pad_gate_cols(whh_t, H, Hp)                   # (H, 4Hp)
        whh_p = jnp.pad(whh_p, ((0, Hp - H), (0, 0)))
        bias_p = _pad_gate_cols(bias, H, Hp)                   # (1, 4Hp)
        layers.append((wih_p, whh_p, bias_p))

    # TODO(synk): the original module declares Linear(hidden_dims * 2, out_dims)
    # but feeds it a unidirectional LSTM output of width hidden_dims (a shape
    # bug that would raise in PyTorch); we use the first `hidden_dims` input
    # columns of the declared proj weight to make the forward well-defined.
    pw = jnp.transpose(params["proj_w"][:, :H])                # (H, out_dims)
    pw = jnp.pad(pw, ((0, Hp - H), (0, Op - out_dims)))        # (Hp, Op)
    pb = jnp.pad(params["proj_b"].reshape(1, -1),
                 ((0, 0), (0, Op - out_dims)))                 # (1, Op)

    return {"layers": layers, "proj_w": pw, "proj_b": pb,
            "dims": (in_dims, hidden_dims, out_dims, Dp, Hp, Op)}


# ----------------------------------------------------------------------------
# Forward pass (mirrors BiLSTM.forward)
# ----------------------------------------------------------------------------
def bilstm_forward(feat, prepared):
    in_dims, H, out_dims, Dp, Hp, Op = prepared["dims"]
    T, B, D = feat.shape
    Bp = _round_up(B, 8)
    num_layers = len(prepared["layers"])

    # Pad batch to 8 sublanes and feature dim to 128 lanes (zeros).
    x_pad = jnp.pad(feat, ((0, 0), (0, Bp - B), (0, Dp - D)))

    kernel = _make_fused_kernel(num_layers, T, Bp, Hp)

    flat_weights = []
    in_specs = [pl.BlockSpec((T, Bp, Dp), lambda: (0, 0, 0))]
    for (wih, whh, b) in prepared["layers"]:
        flat_weights += [wih, whh, b]
        in_specs += [pl.BlockSpec(wih.shape, lambda: (0, 0)),
                     pl.BlockSpec(whh.shape, lambda: (0, 0)),
                     pl.BlockSpec(b.shape, lambda: (0, 0))]
    flat_weights += [prepared["proj_w"], prepared["proj_b"]]
    in_specs += [pl.BlockSpec(prepared["proj_w"].shape, lambda: (0, 0)),
                 pl.BlockSpec(prepared["proj_b"].shape, lambda: (0, 0))]

    out_pad = pl.pallas_call(
        kernel,
        out_shape=jax.ShapeDtypeStruct((T, Bp, Op), jnp.float32),
        in_specs=in_specs,
        out_specs=pl.BlockSpec((T, Bp, Op), lambda: (0, 0, 0)),
        scratch_shapes=[
            pltpu.VMEM((T, Bp, Hp), jnp.float32),       # hidden sequence buffer
            pltpu.VMEM((T, Bp, 4 * Hp), jnp.float32),   # precomputed input gates
        ],
        compiler_params=pltpu.CompilerParams(
            vmem_limit_bytes=32 * 1024 * 1024),
    )(x_pad, *flat_weights)

    # Strip batch / output-channel padding.
    return out_pad[:, :B, :out_dims]


# ----------------------------------------------------------------------------
if __name__ == "__main__":
    num_layers = 2
    in_dims = 16
    hidden_dims = 32
    out_dims = 8
    seq_len = 8
    batch = 2

    root = jax.random.PRNGKey(0)
    k_params, k_feat = jax.random.split(root)

    params = init_params(k_params, num_layers, in_dims, hidden_dims, out_dims)
    prepared = prepare_params(params, in_dims, hidden_dims, out_dims)
    feat = jax.random.normal(k_feat, (seq_len, batch, in_dims), jnp.float32)

    out = bilstm_forward(feat, prepared)
    out = jax.block_until_ready(out)

    assert out.shape == (seq_len, batch, out_dims)
    assert bool(jnp.all(jnp.isfinite(out)))
    print("KERNEL_OK")
</pallas_src>

<mosaic_0001>
module attributes {stable_mosaic.version = 11 : i64} {
  func.func @kernel(%arg0: memref<8x8x128xf32, #tpu.memory_space<vmem>>, %arg1: memref<128x512xf32, #tpu.memory_space<vmem>>, %arg2: memref<128x512xf32, #tpu.memory_space<vmem>>, %arg3: memref<1x512xf32, #tpu.memory_space<vmem>>, %arg4: memref<128x512xf32, #tpu.memory_space<vmem>>, %arg5: memref<128x512xf32, #tpu.memory_space<vmem>>, %arg6: memref<1x512xf32, #tpu.memory_space<vmem>>, %arg7: memref<128x128xf32, #tpu.memory_space<vmem>>, %arg8: memref<1x128xf32, #tpu.memory_space<vmem>>, %arg9: memref<8x8x128xf32, #tpu.memory_space<vmem>>, %arg10: memref<8x8x128xf32, #tpu.memory_space<vmem>>, %arg11: memref<8x8x512xf32, #tpu.memory_space<vmem>>) attributes {dimension_semantics = [], scalar_prefetch = 0 : i64, scratch_operands = 2 : i64, tpu.core_type = #tpu.core_type<tc>} {
    %c0 = arith.constant 0 : index
    %c0_0 = arith.constant 0 : index
    %c0_1 = arith.constant 0 : index
    %0 = vector.load %arg0[%c0, %c0_0, %c0_1] : memref<8x8x128xf32, #tpu.memory_space<vmem>>, vector<8x8x128xf32>
    %1 = vector.shape_cast %0 : vector<8x8x128xf32> to vector<64x128xf32>
    %c0_2 = arith.constant 0 : index
    %c0_3 = arith.constant 0 : index
    %2 = vector.load %arg1[%c0_2, %c0_3] : memref<128x512xf32, #tpu.memory_space<vmem>>, vector<128x512xf32>
    %c0_4 = arith.constant 0 : index
    %c0_5 = arith.constant 0 : index
    %3 = vector.load %arg2[%c0_4, %c0_5] : memref<128x512xf32, #tpu.memory_space<vmem>>, vector<128x512xf32>
    %c0_6 = arith.constant 0 : index
    %c0_7 = arith.constant 0 : index
    %4 = vector.load %arg3[%c0_6, %c0_7] : memref<1x512xf32, #tpu.memory_space<vmem>>, vector<1x512xf32>
    %cst = arith.constant dense<0.000000e+00> : vector<64x512xf32>
    %5 = tpu.matmul %1, %2, %cst {dimension_numbers = #tpu.dot_dimension_numbers<[1], [0], [0], [1], [0, 0, 1, 1], [], []>} : vector<64x128xf32>, vector<128x512xf32>, vector<64x512xf32> -> vector<64x512xf32>
    %6 = vector.broadcast %4 : vector<1x512xf32> to vector<64x512xf32>
    %7 = arith.addf %5, %6 : vector<64x512xf32>
    %8 = vector.shape_cast %7 : vector<64x512xf32> to vector<8x8x512xf32>
    %c0_8 = arith.constant 0 : index
    %c0_9 = arith.constant 0 : index
    %c0_10 = arith.constant 0 : index
    %9 = vector.load %arg11[%c0_8, %c0_9, %c0_10] : memref<8x8x512xf32, #tpu.memory_space<vmem>>, vector<8x8x512xf32>
    tpu.vector_store %arg11[%c0_8, %c0_9, %c0_10], %8 {strides = array<i32>} : memref<8x8x512xf32, #tpu.memory_space<vmem>>, vector<8x8x512xf32>,
    %cst_11 = arith.constant 0.000000e+00 : f32
    %10 = vector.broadcast %cst_11 : f32 to vector<8x128xf32>
    %cst_12 = arith.constant 0.000000e+00 : f32
    %11 = vector.broadcast %cst_12 : f32 to vector<8x128xf32>
    %c0_i32 = arith.constant 0 : i32
    %cst_13 = arith.constant dense<0.000000e+00> : vector<8x512xf32>
    %12 = tpu.matmul %10, %3, %cst_13 {dimension_numbers = #tpu.dot_dimension_numbers<[1], [0], [0], [1], [0, 0, 1, 1], [], []>} : vector<8x128xf32>, vector<128x512xf32>, vector<8x512xf32> -> vector<8x512xf32>
    %13 = arith.index_cast %c0_i32 : i32 to index
    %c0_14 = arith.constant 0 : index
    %c0_15 = arith.constant 0 : index
    %14 = vector.load %arg11[%13, %c0_14, %c0_15] : memref<8x8x512xf32, #tpu.memory_space<vmem>>, vector<1x8x512xf32>
    %15 = vector.shape_cast %14 : vector<1x8x512xf32> to vector<8x512xf32>
    %16 = arith.addf %12, %15 : vector<8x512xf32>
    %17 = vector.extract_strided_slice %16 {offsets = [0, 0], sizes = [8, 128], strides = [1, 1]} : vector<8x512xf32> to vector<8x128xf32>
    %18 = arith.negf %17 : vector<8x128xf32>
    %19 = math.exp %18 : vector<8x128xf32>
    %cst_16 = arith.constant 1.000000e+00 : f32
    %20 = vector.broadcast %cst_16 : f32 to vector<8x128xf32>
    %21 = arith.addf %20, %19 : vector<8x128xf32>
    %22 = arith.divf %20, %21 : vector<8x128xf32>
    %23 = vector.extract_strided_slice %16 {offsets = [0, 128], sizes = [8, 128], strides = [1, 1]} : vector<8x512xf32> to vector<8x128xf32>
    %24 = arith.negf %23 : vector<8x128xf32>
    %25 = math.exp %24 : vector<8x128xf32>
    %cst_17 = arith.constant 1.000000e+00 : f32
    %26 = vector.broadcast %cst_17 : f32 to vector<8x128xf32>
    %27 = arith.addf %26, %25 : vector<8x128xf32>
    %28 = arith.divf %26, %27 : vector<8x128xf32>
    %29 = vector.extract_strided_slice %16 {offsets = [0, 256], sizes = [8, 128], strides = [1, 1]} : vector<8x512xf32> to vector<8x128xf32>
    %30 = math.tanh %29 : vector<8x128xf32>
    %31 = vector.extract_strided_slice %16 {offsets = [0, 384], sizes = [8, 128], strides = [1, 1]} : vector<8x512xf32> to vector<8x128xf32>
    %32 = arith.negf %31 : vector<8x128xf32>
    %33 = math.exp %32 : vector<8x128xf32>
    %cst_18 = arith.constant 1.000000e+00 : f32
    %34 = vector.broadcast %cst_18 : f32 to vector<8x128xf32>
    %35 = arith.addf %34, %33 : vector<8x128xf32>
    %36 = arith.divf %34, %35 : vector<8x128xf32>
    %37 = arith.mulf %28, %11 : vector<8x128xf32>
    %38 = arith.mulf %22, %30 : vector<8x128xf32>
    %39 = arith.addf %37, %38 : vector<8x128xf32>
    %40 = math.tanh %39 : vector<8x128xf32>
    %41 = arith.mulf %36, %40 : vector<8x128xf32>
    %42 = arith.index_cast %c0_i32 : i32 to index
    %c0_19 = arith.constant 0 : index
    %c0_20 = arith.constant 0 : index
    %43 = vector.load %arg10[%42, %c0_19, %c0_20] : memref<8x8x128xf32, #tpu.memory_space<vmem>>, vector<1x8x128xf32>
    %44 = vector.shape_cast %43 : vector<1x8x128xf32> to vector<8x128xf32>
    %45 = vector.shape_cast %41 : vector<8x128xf32> to vector<1x8x128xf32>
    tpu.vector_store %arg10[%42, %c0_19, %c0_20], %45 {strides = array<i32>} : memref<8x8x128xf32, #tpu.memory_space<vmem>>, vector<1x8x128xf32>,
    %c1_i32 = arith.constant 1 : i32
    %cst_21 = arith.constant dense<0.000000e+00> : vector<8x512xf32>
    %46 = tpu.matmul %41, %3, %cst_21 {dimension_numbers = #tpu.dot_dimension_numbers<[1], [0], [0], [1], [0, 0, 1, 1], [], []>} : vector<8x128xf32>, vector<128x512xf32>, vector<8x512xf32> -> vector<8x512xf32>
    %47 = arith.index_cast %c1_i32 : i32 to index
    %c0_22 = arith.constant 0 : index
    %c0_23 = arith.constant 0 : index
    %48 = vector.load %arg11[%47, %c0_22, %c0_23] : memref<8x8x512xf32, #tpu.memory_space<vmem>>, vector<1x8x512xf32>
    %49 = vector.shape_cast %48 : vector<1x8x512xf32> to vector<8x512xf32>
    %50 = arith.addf %46, %49 : vector<8x512xf32>
    %51 = vector.extract_strided_slice %50 {offsets = [0, 0], sizes = [8, 128], strides = [1, 1]} : vector<8x512xf32> to vector<8x128xf32>
    %52 = arith.negf %51 : vector<8x128xf32>
    %53 = math.exp %52 : vector<8x128xf32>
    %cst_24 = arith.constant 1.000000e+00 : f32
    %54 = vector.broadcast %cst_24 : f32 to vector<8x128xf32>
    %55 = arith.addf %54, %53 : vector<8x128xf32>
    %56 = arith.divf %54, %55 : vector<8x128xf32>
    %57 = vector.extract_strided_slice %50 {offsets = [0, 128], sizes = [8, 128], strides = [1, 1]} : vector<8x512xf32> to vector<8x128xf32>
    %58 = arith.negf %57 : vector<8x128xf32>
    %59 = math.exp %58 : vector<8x128xf32>
    %cst_25 = arith.constant 1.000000e+00 : f32
    %60 = vector.broadcast %cst_25 : f32 to vector<8x128xf32>
    %61 = arith.addf %60, %59 : vector<8x128xf32>
    %62 = arith.divf %60, %61 : vector<8x128xf32>
    %63 = vector.extract_strided_slice %50 {offsets = [0, 256], sizes = [8, 128], strides = [1, 1]} : vector<8x512xf32> to vector<8x128xf32>
    %64 = math.tanh %63 : vector<8x128xf32>
    %65 = vector.extract_strided_slice %50 {offsets = [0, 384], sizes = [8, 128], strides = [1, 1]} : vector<8x512xf32> to vector<8x128xf32>
    %66 = arith.negf %65 : vector<8x128xf32>
    %67 = math.exp %66 : vector<8x128xf32>
    %cst_26 = arith.constant 1.000000e+00 : f32
    %68 = vector.broadcast %cst_26 : f32 to vector<8x128xf32>
    %69 = arith.addf %68, %67 : vector<8x128xf32>
    %70 = arith.divf %68, %69 : vector<8x128xf32>
    %71 = arith.mulf %62, %39 : vector<8x128xf32>
    %72 = arith.mulf %56, %64 : vector<8x128xf32>
    %73 = arith.addf %71, %72 : vector<8x128xf32>
    %74 = math.tanh %73 : vector<8x128xf32>
    %75 = arith.mulf %70, %74 : vector<8x128xf32>
    %76 = arith.index_cast %c1_i32 : i32 to index
    %c0_27 = arith.constant 0 : index
    %c0_28 = arith.constant 0 : index
    %77 = vector.load %arg10[%76, %c0_27, %c0_28] : memref<8x8x128xf32, #tpu.memory_space<vmem>>, vector<1x8x128xf32>
    %78 = vector.shape_cast %77 : vector<1x8x128xf32> to vector<8x128xf32>
    %79 = vector.shape_cast %75 : vector<8x128xf32> to vector<1x8x128xf32>
    tpu.vector_store %arg10[%76, %c0_27, %c0_28], %79 {strides = array<i32>} : memref<8x8x128xf32, #tpu.memory_space<vmem>>, vector<1x8x128xf32>,
    %c2_i32 = arith.constant 2 : i32
    %cst_29 = arith.constant dense<0.000000e+00> : vector<8x512xf32>
    %80 = tpu.matmul %75, %3, %cst_29 {dimension_numbers = #tpu.dot_dimension_numbers<[1], [0], [0], [1], [0, 0, 1, 1], [], []>} : vector<8x128xf32>, vector<128x512xf32>, vector<8x512xf32> -> vector<8x512xf32>
    %81 = arith.index_cast %c2_i32 : i32 to index
    %c0_30 = arith.constant 0 : index
    %c0_31 = arith.constant 0 : index
    %82 = vector.load %arg11[%81, %c0_30, %c0_31] : memref<8x8x512xf32, #tpu.memory_space<vmem>>, vector<1x8x512xf32>
    %83 = vector.shape_cast %82 : vector<1x8x512xf32> to vector<8x512xf32>
    %84 = arith.addf %80, %83 : vector<8x512xf32>
    %85 = vector.extract_strided_slice %84 {offsets = [0, 0], sizes = [8, 128], strides = [1, 1]} : vector<8x512xf32> to vector<8x128xf32>
    %86 = arith.negf %85 : vector<8x128xf32>
    %87 = math.exp %86 : vector<8x128xf32>
    %cst_32 = arith.constant 1.000000e+00 : f32
    %88 = vector.broadcast %cst_32 : f32 to vector<8x128xf32>
    %89 = arith.addf %88, %87 : vector<8x128xf32>
    %90 = arith.divf %88, %89 : vector<8x128xf32>
    %91 = vector.extract_strided_slice %84 {offsets = [0, 128], sizes = [8, 128], strides = [1, 1]} : vector<8x512xf32> to vector<8x128xf32>
    %92 = arith.negf %91 : vector<8x128xf32>
    %93 = math.exp %92 : vector<8x128xf32>
    %cst_33 = arith.constant 1.000000e+00 : f32
    %94 = vector.broadcast %cst_33 : f32 to vector<8x128xf32>
    %95 = arith.addf %94, %93 : vector<8x128xf32>
    %96 = arith.divf %94, %95 : vector<8x128xf32>
    %97 = vector.extract_strided_slice %84 {offsets = [0, 256], sizes = [8, 128], strides = [1, 1]} : vector<8x512xf32> to vector<8x128xf32>
    %98 = math.tanh %97 : vector<8x128xf32>
    %99 = vector.extract_strided_slice %84 {offsets = [0, 384], sizes = [8, 128], strides = [1, 1]} : vector<8x512xf32> to vector<8x128xf32>
    %100 = arith.negf %99 : vector<8x128xf32>
    %101 = math.exp %100 : vector<8x128xf32>
    %cst_34 = arith.constant 1.000000e+00 : f32
    %102 = vector.broadcast %cst_34 : f32 to vector<8x128xf32>
    %103 = arith.addf %102, %101 : vector<8x128xf32>
    %104 = arith.divf %102, %103 : vector<8x128xf32>
    %105 = arith.mulf %96, %73 : vector<8x128xf32>
    %106 = arith.mulf %90, %98 : vector<8x128xf32>
    %107 = arith.addf %105, %106 : vector<8x128xf32>
    %108 = math.tanh %107 : vector<8x128xf32>
    %109 = arith.mulf %104, %108 : vector<8x128xf32>
    %110 = arith.index_cast %c2_i32 : i32 to index
    %c0_35 = arith.constant 0 : index
    %c0_36 = arith.constant 0 : index
    %111 = vector.load %arg10[%110, %c0_35, %c0_36] : memref<8x8x128xf32, #tpu.memory_space<vmem>>, vector<1x8x128xf32>
    %112 = vector.shape_cast %111 : vector<1x8x128xf32> to vector<8x128xf32>
    %113 = vector.shape_cast %109 : vector<8x128xf32> to vector<1x8x128xf32>
    tpu.vector_store %arg10[%110, %c0_35, %c0_36], %113 {strides = array<i32>} : memref<8x8x128xf32, #tpu.memory_space<vmem>>, vector<1x8x128xf32>,
    %c3_i32 = arith.constant 3 : i32
    %cst_37 = arith.constant dense<0.000000e+00> : vector<8x512xf32>
    %114 = tpu.matmul %109, %3, %cst_37 {dimension_numbers = #tpu.dot_dimension_numbers<[1], [0], [0], [1], [0, 0, 1, 1], [], []>} : vector<8x128xf32>, vector<128x512xf32>, vector<8x512xf32> -> vector<8x512xf32>
    %115 = arith.index_cast %c3_i32 : i32 to index
    %c0_38 = arith.constant 0 : index
    %c0_39 = arith.constant 0 : index
    %116 = vector.load %arg11[%115, %c0_38, %c0_39] : memref<8x8x512xf32, #tpu.memory_space<vmem>>, vector<1x8x512xf32>
    %117 = vector.shape_cast %116 : vector<1x8x512xf32> to vector<8x512xf32>
    %118 = arith.addf %114, %117 : vector<8x512xf32>
    %119 = vector.extract_strided_slice %118 {offsets = [0, 0], sizes = [8, 128], strides = [1, 1]} : vector<8x512xf32> to vector<8x128xf32>
    %120 = arith.negf %119 : vector<8x128xf32>
    %121 = math.exp %120 : vector<8x128xf32>
    %cst_40 = arith.constant 1.000000e+00 : f32
    %122 = vector.broadcast %cst_40 : f32 to vector<8x128xf32>
    %123 = arith.addf %122, %121 : vector<8x128xf32>
    %124 = arith.divf %122, %123 : vector<8x128xf32>
    %125 = vector.extract_strided_slice %118 {offsets = [0, 128], sizes = [8, 128], strides = [1, 1]} : vector<8x512xf32> to vector<8x128xf32>
    %126 = arith.negf %125 : vector<8x128xf32>
    %127 = math.exp %126 : vector<8x128xf32>
    %cst_41 = arith.constant 1.000000e+00 : f32
    %128 = vector.broadcast %cst_41 : f32 to vector<8x128xf32>
    %129 = arith.addf %128, %127 : vector<8x128xf32>
    %130 = arith.divf %128, %129 : vector<8x128xf32>
    %131 = vector.extract_strided_slice %118 {offsets = [0, 256], sizes = [8, 128], strides = [1, 1]} : vector<8x512xf32> to vector<8x128xf32>
    %132 = math.tanh %131 : vector<8x128xf32>
    %133 = vector.extract_strided_slice %118 {offsets = [0, 384], sizes = [8, 128], strides = [1, 1]} : vector<8x512xf32> to vector<8x128xf32>
    %134 = arith.negf %133 : vector<8x128xf32>
    %135 = math.exp %134 : vector<8x128xf32>
    %cst_42 = arith.constant 1.000000e+00 : f32
    %136 = vector.broadcast %cst_42 : f32 to vector<8x128xf32>
    %137 = arith.addf %136, %135 : vector<8x128xf32>
    %138 = arith.divf %136, %137 : vector<8x128xf32>
    %139 = arith.mulf %130, %107 : vector<8x128xf32>
    %140 = arith.mulf %124, %132 : vector<8x128xf32>
    %141 = arith.addf %139, %140 : vector<8x128xf32>
    %142 = math.tanh %141 : vector<8x128xf32>
    %143 = arith.mulf %138, %142 : vector<8x128xf32>
    %144 = arith.index_cast %c3_i32 : i32 to index
    %c0_43 = arith.constant 0 : index
    %c0_44 = arith.constant 0 : index
    %145 = vector.load %arg10[%144, %c0_43, %c0_44] : memref<8x8x128xf32, #tpu.memory_space<vmem>>, vector<1x8x128xf32>
    %146 = vector.shape_cast %145 : vector<1x8x128xf32> to vector<8x128xf32>
    %147 = vector.shape_cast %143 : vector<8x128xf32> to vector<1x8x128xf32>
    tpu.vector_store %arg10[%144, %c0_43, %c0_44], %147 {strides = array<i32>} : memref<8x8x128xf32, #tpu.memory_space<vmem>>, vector<1x8x128xf32>,
    %c4_i32 = arith.constant 4 : i32
    %cst_45 = arith.constant dense<0.000000e+00> : vector<8x512xf32>
    %148 = tpu.matmul %143, %3, %cst_45 {dimension_numbers = #tpu.dot_dimension_numbers<[1], [0], [0], [1], [0, 0, 1, 1], [], []>} : vector<8x128xf32>, vector<128x512xf32>, vector<8x512xf32> -> vector<8x512xf32>
    %149 = arith.index_cast %c4_i32 : i32 to index
    %c0_46 = arith.constant 0 : index
    %c0_47 = arith.constant 0 : index
    %150 = vector.load %arg11[%149, %c0_46, %c0_47] : memref<8x8x512xf32, #tpu.memory_space<vmem>>, vector<1x8x512xf32>
    %151 = vector.shape_cast %150 : vector<1x8x512xf32> to vector<8x512xf32>
    %152 = arith.addf %148, %151 : vector<8x512xf32>
    %153 = vector.extract_strided_slice %152 {offsets = [0, 0], sizes = [8, 128], strides = [1, 1]} : vector<8x512xf32> to vector<8x128xf32>
    %154 = arith.negf %153 : vector<8x128xf32>
    %155 = math.exp %154 : vector<8x128xf32>
    %cst_48 = arith.constant 1.000000e+00 : f32
    %156 = vector.broadcast %cst_48 : f32 to vector<8x128xf32>
    %157 = arith.addf %156, %155 : vector<8x128xf32>
    %158 = arith.divf %156, %157 : vector<8x128xf32>
    %159 = vector.extract_strided_slice %152 {offsets = [0, 128], sizes = [8, 128], strides = [1, 1]} : vector<8x512xf32> to vector<8x128xf32>
    %160 = arith.negf %159 : vector<8x128xf32>
    %161 = math.exp %160 : vector<8x128xf32>
    %cst_49 = arith.constant 1.000000e+00 : f32
    %162 = vector.broadcast %cst_49 : f32 to vector<8x128xf32>
    %163 = arith.addf %162, %161 : vector<8x128xf32>
    %164 = arith.divf %162, %163 : vector<8x128xf32>
    %165 = vector.extract_strided_slice %152 {offsets = [0, 256], sizes = [8, 128], strides = [1, 1]} : vector<8x512xf32> to vector<8x128xf32>
    %166 = math.tanh %165 : vector<8x128xf32>
    %167 = vector.extract_strided_slice %152 {offsets = [0, 384], sizes = [8, 128], strides = [1, 1]} : vector<8x512xf32> to vector<8x128xf32>
    %168 = arith.negf %167 : vector<8x128xf32>
    %169 = math.exp %168 : vector<8x128xf32>
    %cst_50 = arith.constant 1.000000e+00 : f32
    %170 = vector.broadcast %cst_50 : f32 to vector<8x128xf32>
    %171 = arith.addf %170, %169 : vector<8x128xf32>
    %172 = arith.divf %170, %171 : vector<8x128xf32>
    %173 = arith.mulf %164, %141 : vector<8x128xf32>
    %174 = arith.mulf %158, %166 : vector<8x128xf32>
    %175 = arith.addf %173, %174 : vector<8x128xf32>
    %176 = math.tanh %175 : vector<8x128xf32>
    %177 = arith.mulf %172, %176 : vector<8x128xf32>
    %178 = arith.index_cast %c4_i32 : i32 to index
    %c0_51 = arith.constant 0 : index
    %c0_52 = arith.constant 0 : index
    %179 = vector.load %arg10[%178, %c0_51, %c0_52] : memref<8x8x128xf32, #tpu.memory_space<vmem>>, vector<1x8x128xf32>
    %180 = vector.shape_cast %179 : vector<1x8x128xf32> to vector<8x128xf32>
    %181 = vector.shape_cast %177 : vector<8x128xf32> to vector<1x8x128xf32>
    tpu.vector_store %arg10[%178, %c0_51, %c0_52], %181 {strides = array<i32>} : memref<8x8x128xf32, #tpu.memory_space<vmem>>, vector<1x8x128xf32>,
    %c5_i32 = arith.constant 5 : i32
    %cst_53 = arith.constant dense<0.000000e+00> : vector<8x512xf32>
    %182 = tpu.matmul %177, %3, %cst_53 {dimension_numbers = #tpu.dot_dimension_numbers<[1], [0], [0], [1], [0, 0, 1, 1], [], []>} : vector<8x128xf32>, vector<128x512xf32>, vector<8x512xf32> -> vector<8x512xf32>
    %183 = arith.index_cast %c5_i32 : i32 to index
    %c0_54 = arith.constant 0 : index
    %c0_55 = arith.constant 0 : index
    %184 = vector.load %arg11[%183, %c0_54, %c0_55] : memref<8x8x512xf32, #tpu.memory_space<vmem>>, vector<1x8x512xf32>
    %185 = vector.shape_cast %184 : vector<1x8x512xf32> to vector<8x512xf32>
    %186 = arith.addf %182, %185 : vector<8x512xf32>
    %187 = vector.extract_strided_slice %186 {offsets = [0, 0], sizes = [8, 128], strides = [1, 1]} : vector<8x512xf32> to vector<8x128xf32>
    %188 = arith.negf %187 : vector<8x128xf32>
    %189 = math.exp %188 : vector<8x128xf32>
    %cst_56 = arith.constant 1.000000e+00 : f32
    %190 = vector.broadcast %cst_56 : f32 to vector<8x128xf32>
    %191 = arith.addf %190, %189 : vector<8x128xf32>
    %192 = arith.divf %190, %191 : vector<8x128xf32>
    %193 = vector.extract_strided_slice %186 {offsets = [0, 128], sizes = [8, 128], strides = [1, 1]} : vector<8x512xf32> to vector<8x128xf32>
    %194 = arith.negf %193 : vector<8x128xf32>
    %195 = math.exp %194 : vector<8x128xf32>
    %cst_57 = arith.constant 1.000000e+00 : f32
    %196 = vector.broadcast %cst_57 : f32 to vector<8x128xf32>
    %197 = arith.addf %196, %195 : vector<8x128xf32>
    %198 = arith.divf %196, %197 : vector<8x128xf32>
    %199 = vector.extract_strided_slice %186 {offsets = [0, 256], sizes = [8, 128], strides = [1, 1]} : vector<8x512xf32> to vector<8x128xf32>
    %200 = math.tanh %199 : vector<8x128xf32>
    %201 = vector.extract_strided_slice %186 {offsets = [0, 384], sizes = [8, 128], strides = [1, 1]} : vector<8x512xf32> to vector<8x128xf32>
    %202 = arith.negf %201 : vector<8x128xf32>
    %203 = math.exp %202 : vector<8x128xf32>
    %cst_58 = arith.constant 1.000000e+00 : f32
    %204 = vector.broadcast %cst_58 : f32 to vector<8x128xf32>
    %205 = arith.addf %204, %203 : vector<8x128xf32>
    %206 = arith.divf %204, %205 : vector<8x128xf32>
    %207 = arith.mulf %198, %175 : vector<8x128xf32>
    %208 = arith.mulf %192, %200 : vector<8x128xf32>
    %209 = arith.addf %207, %208 : vector<8x128xf32>
    %210 = math.tanh %209 : vector<8x128xf32>
    %211 = arith.mulf %206, %210 : vector<8x128xf32>
    %212 = arith.index_cast %c5_i32 : i32 to index
    %c0_59 = arith.constant 0 : index
    %c0_60 = arith.constant 0 : index
    %213 = vector.load %arg10[%212, %c0_59, %c0_60] : memref<8x8x128xf32, #tpu.memory_space<vmem>>, vector<1x8x128xf32>
    %214 = vector.shape_cast %213 : vector<1x8x128xf32> to vector<8x128xf32>
    %215 = vector.shape_cast %211 : vector<8x128xf32> to vector<1x8x128xf32>
    tpu.vector_store %arg10[%212, %c0_59, %c0_60], %215 {strides = array<i32>} : memref<8x8x128xf32, #tpu.memory_space<vmem>>, vector<1x8x128xf32>,
    %c6_i32 = arith.constant 6 : i32
    %cst_61 = arith.constant dense<0.000000e+00> : vector<8x512xf32>
    %216 = tpu.matmul %211, %3, %cst_61 {dimension_numbers = #tpu.dot_dimension_numbers<[1], [0], [0], [1], [0, 0, 1, 1], [], []>} : vector<8x128xf32>, vector<128x512xf32>, vector<8x512xf32> -> vector<8x512xf32>
    %217 = arith.index_cast %c6_i32 : i32 to index
    %c0_62 = arith.constant 0 : index
    %c0_63 = arith.constant 0 : index
    %218 = vector.load %arg11[%217, %c0_62, %c0_63] : memref<8x8x512xf32, #tpu.memory_space<vmem>>, vector<1x8x512xf32>
    %219 = vector.shape_cast %218 : vector<1x8x512xf32> to vector<8x512xf32>
    %220 = arith.addf %216, %219 : vector<8x512xf32>
    %221 = vector.extract_strided_slice %220 {offsets = [0, 0], sizes = [8, 128], strides = [1, 1]} : vector<8x512xf32> to vector<8x128xf32>
    %222 = arith.negf %221 : vector<8x128xf32>
    %223 = math.exp %222 : vector<8x128xf32>
    %cst_64 = arith.constant 1.000000e+00 : f32
    %224 = vector.broadcast %cst_64 : f32 to vector<8x128xf32>
    %225 = arith.addf %224, %223 : vector<8x128xf32>
    %226 = arith.divf %224, %225 : vector<8x128xf32>
    %227 = vector.extract_strided_slice %220 {offsets = [0, 128], sizes = [8, 128], strides = [1, 1]} : vector<8x512xf32> to vector<8x128xf32>
    %228 = arith.negf %227 : vector<8x128xf32>
    %229 = math.exp %228 : vector<8x128xf32>
    %cst_65 = arith.constant 1.000000e+00 : f32
    %230 = vector.broadcast %cst_65 : f32 to vector<8x128xf32>
    %231 = arith.addf %230, %229 : vector<8x128xf32>
    %232 = arith.divf %230, %231 : vector<8x128xf32>
    %233 = vector.extract_strided_slice %220 {offsets = [0, 256], sizes = [8, 128], strides = [1, 1]} : vector<8x512xf32> to vector<8x128xf32>
    %234 = math.tanh %233 : vector<8x128xf32>
    %235 = vector.extract_strided_slice %220 {offsets = [0, 384], sizes = [8, 128], strides = [1, 1]} : vector<8x512xf32> to vector<8x128xf32>
    %236 = arith.negf %235 : vector<8x128xf32>
    %237 = math.exp %236 : vector<8x128xf32>
    %cst_66 = arith.constant 1.000000e+00 : f32
    %238 = vector.broadcast %cst_66 : f32 to vector<8x128xf32>
    %239 = arith.addf %238, %237 : vector<8x128xf32>
    %240 = arith.divf %238, %239 : vector<8x128xf32>
    %241 = arith.mulf %232, %209 : vector<8x128xf32>
    %242 = arith.mulf %226, %234 : vector<8x128xf32>
    %243 = arith.addf %241, %242 : vector<8x128xf32>
    %244 = math.tanh %243 : vector<8x128xf32>
    %245 = arith.mulf %240, %244 : vector<8x128xf32>
    %246 = arith.index_cast %c6_i32 : i32 to index
    %c0_67 = arith.constant 0 : index
    %c0_68 = arith.constant 0 : index
    %247 = vector.load %arg10[%246, %c0_67, %c0_68] : memref<8x8x128xf32, #tpu.memory_space<vmem>>, vector<1x8x128xf32>
    %248 = vector.shape_cast %247 : vector<1x8x128xf32> to vector<8x128xf32>
    %249 = vector.shape_cast %245 : vector<8x128xf32> to vector<1x8x128xf32>
    tpu.vector_store %arg10[%246, %c0_67, %c0_68], %249 {strides = array<i32>} : memref<8x8x128xf32, #tpu.memory_space<vmem>>, vector<1x8x128xf32>,
    %c7_i32 = arith.constant 7 : i32
    %cst_69 = arith.constant dense<0.000000e+00> : vector<8x512xf32>
    %250 = tpu.matmul %245, %3, %cst_69 {dimension_numbers = #tpu.dot_dimension_numbers<[1], [0], [0], [1], [0, 0, 1, 1], [], []>} : vector<8x128xf32>, vector<128x512xf32>, vector<8x512xf32> -> vector<8x512xf32>
    %251 = arith.index_cast %c7_i32 : i32 to index
    %c0_70 = arith.constant 0 : index
    %c0_71 = arith.constant 0 : index
    %252 = vector.load %arg11[%251, %c0_70, %c0_71] : memref<8x8x512xf32, #tpu.memory_space<vmem>>, vector<1x8x512xf32>
    %253 = vector.shape_cast %252 : vector<1x8x512xf32> to vector<8x512xf32>
    %254 = arith.addf %250, %253 : vector<8x512xf32>
    %255 = vector.extract_strided_slice %254 {offsets = [0, 0], sizes = [8, 128], strides = [1, 1]} : vector<8x512xf32> to vector<8x128xf32>
    %256 = arith.negf %255 : vector<8x128xf32>
    %257 = math.exp %256 : vector<8x128xf32>
    %cst_72 = arith.constant 1.000000e+00 : f32
    %258 = vector.broadcast %cst_72 : f32 to vector<8x128xf32>
    %259 = arith.addf %258, %257 : vector<8x128xf32>
    %260 = arith.divf %258, %259 : vector<8x128xf32>
    %261 = vector.extract_strided_slice %254 {offsets = [0, 128], sizes = [8, 128], strides = [1, 1]} : vector<8x512xf32> to vector<8x128xf32>
    %262 = arith.negf %261 : vector<8x128xf32>
    %263 = math.exp %262 : vector<8x128xf32>
    %cst_73 = arith.constant 1.000000e+00 : f32
    %264 = vector.broadcast %cst_73 : f32 to vector<8x128xf32>
    %265 = arith.addf %264, %263 : vector<8x128xf32>
    %266 = arith.divf %264, %265 : vector<8x128xf32>
    %267 = vector.extract_strided_slice %254 {offsets = [0, 256], sizes = [8, 128], strides = [1, 1]} : vector<8x512xf32> to vector<8x128xf32>
    %268 = math.tanh %267 : vector<8x128xf32>
    %269 = vector.extract_strided_slice %254 {offsets = [0, 384], sizes = [8, 128], strides = [1, 1]} : vector<8x512xf32> to vector<8x128xf32>
    %270 = arith.negf %269 : vector<8x128xf32>
    %271 = math.exp %270 : vector<8x128xf32>
    %cst_74 = arith.constant 1.000000e+00 : f32
    %272 = vector.broadcast %cst_74 : f32 to vector<8x128xf32>
    %273 = arith.addf %272, %271 : vector<8x128xf32>
    %274 = arith.divf %272, %273 : vector<8x128xf32>
    %275 = arith.mulf %266, %243 : vector<8x128xf32>
    %276 = arith.mulf %260, %268 : vector<8x128xf32>
    %277 = arith.addf %275, %276 : vector<8x128xf32>
    %278 = math.tanh %277 : vector<8x128xf32>
    %279 = arith.mulf %274, %278 : vector<8x128xf32>
    %280 = arith.index_cast %c7_i32 : i32 to index
    %c0_75 = arith.constant 0 : index
    %c0_76 = arith.constant 0 : index
    %281 = vector.load %arg10[%280, %c0_75, %c0_76] : memref<8x8x128xf32, #tpu.memory_space<vmem>>, vector<1x8x128xf32>
    %282 = vector.shape_cast %281 : vector<1x8x128xf32> to vector<8x128xf32>
    %283 = vector.shape_cast %279 : vector<8x128xf32> to vector<1x8x128xf32>
    tpu.vector_store %arg10[%280, %c0_75, %c0_76], %283 {strides = array<i32>} : memref<8x8x128xf32, #tpu.memory_space<vmem>>, vector<1x8x128xf32>,
    %c8_i32 = arith.constant 8 : i32
    %c0_77 = arith.constant 0 : index
    %c0_78 = arith.constant 0 : index
    %c0_79 = arith.constant 0 : index
    %284 = vector.load %arg10[%c0_77, %c0_78, %c0_79] : memref<8x8x128xf32, #tpu.memory_space<vmem>>, vector<8x8x128xf32>
    %285 = vector.shape_cast %284 : vector<8x8x128xf32> to vector<64x128xf32>
    %c0_80 = arith.constant 0 : index
    %c0_81 = arith.constant 0 : index
    %286 = vector.load %arg4[%c0_80, %c0_81] : memref<128x512xf32, #tpu.memory_space<vmem>>, vector<128x512xf32>
    %c0_82 = arith.constant 0 : index
    %c0_83 = arith.constant 0 : index
    %287 = vector.load %arg5[%c0_82, %c0_83] : memref<128x512xf32, #tpu.memory_space<vmem>>, vector<128x512xf32>
    %c0_84 = arith.constant 0 : index
    %c0_85 = arith.constant 0 : index
    %288 = vector.load %arg6[%c0_84, %c0_85] : memref<1x512xf32, #tpu.memory_space<vmem>>, vector<1x512xf32>
    %cst_86 = arith.constant dense<0.000000e+00> : vector<64x512xf32>
    %289 = tpu.matmul %285, %286, %cst_86 {dimension_numbers = #tpu.dot_dimension_numbers<[1], [0], [0], [1], [0, 0, 1, 1], [], []>} : vector<64x128xf32>, vector<128x512xf32>, vector<64x512xf32> -> vector<64x512xf32>
    %290 = vector.broadcast %288 : vector<1x512xf32> to vector<64x512xf32>
    %291 = arith.addf %289, %290 : vector<64x512xf32>
    %292 = vector.shape_cast %291 : vector<64x512xf32> to vector<8x8x512xf32>
    %c0_87 = arith.constant 0 : index
    %c0_88 = arith.constant 0 : index
    %c0_89 = arith.constant 0 : index
    %293 = vector.load %arg11[%c0_87, %c0_88, %c0_89] : memref<8x8x512xf32, #tpu.memory_space<vmem>>, vector<8x8x512xf32>
    tpu.vector_store %arg11[%c0_87, %c0_88, %c0_89], %292 {strides = array<i32>} : memref<8x8x512xf32, #tpu.memory_space<vmem>>, vector<8x8x512xf32>,
    %cst_90 = arith.constant 0.000000e+00 : f32
    %294 = vector.broadcast %cst_90 : f32 to vector<8x128xf32>
    %cst_91 = arith.constant 0.000000e+00 : f32
    %295 = vector.broadcast %cst_91 : f32 to vector<8x128xf32>
    %c0_i32_92 = arith.constant 0 : i32
    %cst_93 = arith.constant dense<0.000000e+00> : vector<8x512xf32>
    %296 = tpu.matmul %294, %287, %cst_93 {dimension_numbers = #tpu.dot_dimension_numbers<[1], [0], [0], [1], [0, 0, 1, 1], [], []>} : vector<8x128xf32>, vector<128x512xf32>, vector<8x512xf32> -> vector<8x512xf32>
    %297 = arith.index_cast %c0_i32_92 : i32 to index
    %c0_94 = arith.constant 0 : index
    %c0_95 = arith.constant 0 : index
    %298 = vector.load %arg11[%297, %c0_94, %c0_95] : memref<8x8x512xf32, #tpu.memory_space<vmem>>, vector<1x8x512xf32>
    %299 = vector.shape_cast %298 : vector<1x8x512xf32> to vector<8x512xf32>
    %300 = arith.addf %296, %299 : vector<8x512xf32>
    %301 = vector.extract_strided_slice %300 {offsets = [0, 0], sizes = [8, 128], strides = [1, 1]} : vector<8x512xf32> to vector<8x128xf32>
    %302 = arith.negf %301 : vector<8x128xf32>
    %303 = math.exp %302 : vector<8x128xf32>
    %cst_96 = arith.constant 1.000000e+00 : f32
    %304 = vector.broadcast %cst_96 : f32 to vector<8x128xf32>
    %305 = arith.addf %304, %303 : vector<8x128xf32>
    %306 = arith.divf %304, %305 : vector<8x128xf32>
    %307 = vector.extract_strided_slice %300 {offsets = [0, 128], sizes = [8, 128], strides = [1, 1]} : vector<8x512xf32> to vector<8x128xf32>
    %308 = arith.negf %307 : vector<8x128xf32>
    %309 = math.exp %308 : vector<8x128xf32>
    %cst_97 = arith.constant 1.000000e+00 : f32
    %310 = vector.broadcast %cst_97 : f32 to vector<8x128xf32>
    %311 = arith.addf %310, %309 : vector<8x128xf32>
    %312 = arith.divf %310, %311 : vector<8x128xf32>
    %313 = vector.extract_strided_slice %300 {offsets = [0, 256], sizes = [8, 128], strides = [1, 1]} : vector<8x512xf32> to vector<8x128xf32>
    %314 = math.tanh %313 : vector<8x128xf32>
    %315 = vector.extract_strided_slice %300 {offsets = [0, 384], sizes = [8, 128], strides = [1, 1]} : vector<8x512xf32> to vector<8x128xf32>
    %316 = arith.negf %315 : vector<8x128xf32>
    %317 = math.exp %316 : vector<8x128xf32>
    %cst_98 = arith.constant 1.000000e+00 : f32
    %318 = vector.broadcast %cst_98 : f32 to vector<8x128xf32>
    %319 = arith.addf %318, %317 : vector<8x128xf32>
    %320 = arith.divf %318, %319 : vector<8x128xf32>
    %321 = arith.mulf %312, %295 : vector<8x128xf32>
    %322 = arith.mulf %306, %314 : vector<8x128xf32>
    %323 = arith.addf %321, %322 : vector<8x128xf32>
    %324 = math.tanh %323 : vector<8x128xf32>
    %325 = arith.mulf %320, %324 : vector<8x128xf32>
    %326 = arith.index_cast %c0_i32_92 : i32 to index
    %c0_99 = arith.constant 0 : index
    %c0_100 = arith.constant 0 : index
    %327 = vector.load %arg10[%326, %c0_99, %c0_100] : memref<8x8x128xf32, #tpu.memory_space<vmem>>, vector<1x8x128xf32>
    %328 = vector.shape_cast %327 : vector<1x8x128xf32> to vector<8x128xf32>
    %329 = vector.shape_cast %325 : vector<8x128xf32> to vector<1x8x128xf32>
    tpu.vector_store %arg10[%326, %c0_99, %c0_100], %329 {strides = array<i32>} : memref<8x8x128xf32, #tpu.memory_space<vmem>>, vector<1x8x128xf32>,
    %c1_i32_101 = arith.constant 1 : i32
    %cst_102 = arith.constant dense<0.000000e+00> : vector<8x512xf32>
    %330 = tpu.matmul %325, %287, %cst_102 {dimension_numbers = #tpu.dot_dimension_numbers<[1], [0], [0], [1], [0, 0, 1, 1], [], []>} : vector<8x128xf32>, vector<128x512xf32>, vector<8x512xf32> -> vector<8x512xf32>
    %331 = arith.index_cast %c1_i32_101 : i32 to index
    %c0_103 = arith.constant 0 : index
    %c0_104 = arith.constant 0 : index
    %332 = vector.load %arg11[%331, %c0_103, %c0_104] : memref<8x8x512xf32, #tpu.memory_space<vmem>>, vector<1x8x512xf32>
    %333 = vector.shape_cast %332 : vector<1x8x512xf32> to vector<8x512xf32>
    %334 = arith.addf %330, %333 : vector<8x512xf32>
    %335 = vector.extract_strided_slice %334 {offsets = [0, 0], sizes = [8, 128], strides = [1, 1]} : vector<8x512xf32> to vector<8x128xf32>
    %336 = arith.negf %335 : vector<8x128xf32>
    %337 = math.exp %336 : vector<8x128xf32>
    %cst_105 = arith.constant 1.000000e+00 : f32
    %338 = vector.broadcast %cst_105 : f32 to vector<8x128xf32>
    %339 = arith.addf %338, %337 : vector<8x128xf32>
    %340 = arith.divf %338, %339 : vector<8x128xf32>
    %341 = vector.extract_strided_slice %334 {offsets = [0, 128], sizes = [8, 128], strides = [1, 1]} : vector<8x512xf32> to vector<8x128xf32>
    %342 = arith.negf %341 : vector<8x128xf32>
    %343 = math.exp %342 : vector<8x128xf32>
    %cst_106 = arith.constant 1.000000e+00 : f32
    %344 = vector.broadcast %cst_106 : f32 to vector<8x128xf32>
    %345 = arith.addf %344, %343 : vector<8x128xf32>
    %346 = arith.divf %344, %345 : vector<8x128xf32>
    %347 = vector.extract_strided_slice %334 {offsets = [0, 256], sizes = [8, 128], strides = [1, 1]} : vector<8x512xf32> to vector<8x128xf32>
    %348 = math.tanh %347 : vector<8x128xf32>
    %349 = vector.extract_strided_slice %334 {offsets = [0, 384], sizes = [8, 128], strides = [1, 1]} : vector<8x512xf32> to vector<8x128xf32>
    %350 = arith.negf %349 : vector<8x128xf32>
    %351 = math.exp %350 : vector<8x128xf32>
    %cst_107 = arith.constant 1.000000e+00 : f32
    %352 = vector.broadcast %cst_107 : f32 to vector<8x128xf32>
    %353 = arith.addf %352, %351 : vector<8x128xf32>
    %354 = arith.divf %352, %353 : vector<8x128xf32>
    %355 = arith.mulf %346, %323 : vector<8x128xf32>
    %356 = arith.mulf %340, %348 : vector<8x128xf32>
    %357 = arith.addf %355, %356 : vector<8x128xf32>
    %358 = math.tanh %357 : vector<8x128xf32>
    %359 = arith.mulf %354, %358 : vector<8x128xf32>
    %360 = arith.index_cast %c1_i32_101 : i32 to index
    %c0_108 = arith.constant 0 : index
    %c0_109 = arith.constant 0 : index
    %361 = vector.load %arg10[%360, %c0_108, %c0_109] : memref<8x8x128xf32, #tpu.memory_space<vmem>>, vector<1x8x128xf32>
    %362 = vector.shape_cast %361 : vector<1x8x128xf32> to vector<8x128xf32>
    %363 = vector.shape_cast %359 : vector<8x128xf32> to vector<1x8x128xf32>
    tpu.vector_store %arg10[%360, %c0_108, %c0_109], %363 {strides = array<i32>} : memref<8x8x128xf32, #tpu.memory_space<vmem>>, vector<1x8x128xf32>,
    %c2_i32_110 = arith.constant 2 : i32
    %cst_111 = arith.constant dense<0.000000e+00> : vector<8x512xf32>
    %364 = tpu.matmul %359, %287, %cst_111 {dimension_numbers = #tpu.dot_dimension_numbers<[1], [0], [0], [1], [0, 0, 1, 1], [], []>} : vector<8x128xf32>, vector<128x512xf32>, vector<8x512xf32> -> vector<8x512xf32>
    %365 = arith.index_cast %c2_i32_110 : i32 to index
    %c0_112 = arith.constant 0 : index
    %c0_113 = arith.constant 0 : index
    %366 = vector.load %arg11[%365, %c0_112, %c0_113] : memref<8x8x512xf32, #tpu.memory_space<vmem>>, vector<1x8x512xf32>
    %367 = vector.shape_cast %366 : vector<1x8x512xf32> to vector<8x512xf32>
    %368 = arith.addf %364, %367 : vector<8x512xf32>
    %369 = vector.extract_strided_slice %368 {offsets = [0, 0], sizes = [8, 128], strides = [1, 1]} : vector<8x512xf32> to vector<8x128xf32>
    %370 = arith.negf %369 : vector<8x128xf32>
    %371 = math.exp %370 : vector<8x128xf32>
    %cst_114 = arith.constant 1.000000e+00 : f32
    %372 = vector.broadcast %cst_114 : f32 to vector<8x128xf32>
    %373 = arith.addf %372, %371 : vector<8x128xf32>
    %374 = arith.divf %372, %373 : vector<8x128xf32>
    %375 = vector.extract_strided_slice %368 {offsets = [0, 128], sizes = [8, 128], strides = [1, 1]} : vector<8x512xf32> to vector<8x128xf32>
    %376 = arith.negf %375 : vector<8x128xf32>
    %377 = math.exp %376 : vector<8x128xf32>
    %cst_115 = arith.constant 1.000000e+00 : f32
    %378 = vector.broadcast %cst_115 : f32 to vector<8x128xf32>
    %379 = arith.addf %378, %377 : vector<8x128xf32>
    %380 = arith.divf %378, %379 : vector<8x128xf32>
    %381 = vector.extract_strided_slice %368 {offsets = [0, 256], sizes = [8, 128], strides = [1, 1]} : vector<8x512xf32> to vector<8x128xf32>
    %382 = math.tanh %381 : vector<8x128xf32>
    %383 = vector.extract_strided_slice %368 {offsets = [0, 384], sizes = [8, 128], strides = [1, 1]} : vector<8x512xf32> to vector<8x128xf32>
    %384 = arith.negf %383 : vector<8x128xf32>
    %385 = math.exp %384 : vector<8x128xf32>
    %cst_116 = arith.constant 1.000000e+00 : f32
    %386 = vector.broadcast %cst_116 : f32 to vector<8x128xf32>
    %387 = arith.addf %386, %385 : vector<8x128xf32>
    %388 = arith.divf %386, %387 : vector<8x128xf32>
    %389 = arith.mulf %380, %357 : vector<8x128xf32>
    %390 = arith.mulf %374, %382 : vector<8x128xf32>
    %391 = arith.addf %389, %390 : vector<8x128xf32>
    %392 = math.tanh %391 : vector<8x128xf32>
    %393 = arith.mulf %388, %392 : vector<8x128xf32>
    %394 = arith.index_cast %c2_i32_110 : i32 to index
    %c0_117 = arith.constant 0 : index
    %c0_118 = arith.constant 0 : index
    %395 = vector.load %arg10[%394, %c0_117, %c0_118] : memref<8x8x128xf32, #tpu.memory_space<vmem>>, vector<1x8x128xf32>
    %396 = vector.shape_cast %395 : vector<1x8x128xf32> to vector<8x128xf32>
    %397 = vector.shape_cast %393 : vector<8x128xf32> to vector<1x8x128xf32>
    tpu.vector_store %arg10[%394, %c0_117, %c0_118], %397 {strides = array<i32>} : memref<8x8x128xf32, #tpu.memory_space<vmem>>, vector<1x8x128xf32>,
    %c3_i32_119 = arith.constant 3 : i32
    %cst_120 = arith.constant dense<0.000000e+00> : vector<8x512xf32>
    %398 = tpu.matmul %393, %287, %cst_120 {dimension_numbers = #tpu.dot_dimension_numbers<[1], [0], [0], [1], [0, 0, 1, 1], [], []>} : vector<8x128xf32>, vector<128x512xf32>, vector<8x512xf32> -> vector<8x512xf32>
    %399 = arith.index_cast %c3_i32_119 : i32 to index
    %c0_121 = arith.constant 0 : index
    %c0_122 = arith.constant 0 : index
    %400 = vector.load %arg11[%399, %c0_121, %c0_122] : memref<8x8x512xf32, #tpu.memory_space<vmem>>, vector<1x8x512xf32>
    %401 = vector.shape_cast %400 : vector<1x8x512xf32> to vector<8x512xf32>
    %402 = arith.addf %398, %401 : vector<8x512xf32>
    %403 = vector.extract_strided_slice %402 {offsets = [0, 0], sizes = [8, 128], strides = [1, 1]} : vector<8x512xf32> to vector<8x128xf32>
    %404 = arith.negf %403 : vector<8x128xf32>
    %405 = math.exp %404 : vector<8x128xf32>
    %cst_123 = arith.constant 1.000000e+00 : f32
    %406 = vector.broadcast %cst_123 : f32 to vector<8x128xf32>
    %407 = arith.addf %406, %405 : vector<8x128xf32>
    %408 = arith.divf %406, %407 : vector<8x128xf32>
    %409 = vector.extract_strided_slice %402 {offsets = [0, 128], sizes = [8, 128], strides = [1, 1]} : vector<8x512xf32> to vector<8x128xf32>
    %410 = arith.negf %409 : vector<8x128xf32>
    %411 = math.exp %410 : vector<8x128xf32>
    %cst_124 = arith.constant 1.000000e+00 : f32
    %412 = vector.broadcast %cst_124 : f32 to vector<8x128xf32>
    %413 = arith.addf %412, %411 : vector<8x128xf32>
    %414 = arith.divf %412, %413 : vector<8x128xf32>
    %415 = vector.extract_strided_slice %402 {offsets = [0, 256], sizes = [8, 128], strides = [1, 1]} : vector<8x512xf32> to vector<8x128xf32>
    %416 = math.tanh %415 : vector<8x128xf32>
    %417 = vector.extract_strided_slice %402 {offsets = [0, 384], sizes = [8, 128], strides = [1, 1]} : vector<8x512xf32> to vector<8x128xf32>
    %418 = arith.negf %417 : vector<8x128xf32>
    %419 = math.exp %418 : vector<8x128xf32>
    %cst_125 = arith.constant 1.000000e+00 : f32
    %420 = vector.broadcast %cst_125 : f32 to vector<8x128xf32>
    %421 = arith.addf %420, %419 : vector<8x128xf32>
    %422 = arith.divf %420, %421 : vector<8x128xf32>
    %423 = arith.mulf %414, %391 : vector<8x128xf32>
    %424 = arith.mulf %408, %416 : vector<8x128xf32>
    %425 = arith.addf %423, %424 : vector<8x128xf32>
    %426 = math.tanh %425 : vector<8x128xf32>
    %427 = arith.mulf %422, %426 : vector<8x128xf32>
    %428 = arith.index_cast %c3_i32_119 : i32 to index
    %c0_126 = arith.constant 0 : index
    %c0_127 = arith.constant 0 : index
    %429 = vector.load %arg10[%428, %c0_126, %c0_127] : memref<8x8x128xf32, #tpu.memory_space<vmem>>, vector<1x8x128xf32>
    %430 = vector.shape_cast %429 : vector<1x8x128xf32> to vector<8x128xf32>
    %431 = vector.shape_cast %427 : vector<8x128xf32> to vector<1x8x128xf32>
    tpu.vector_store %arg10[%428, %c0_126, %c0_127], %431 {strides = array<i32>} : memref<8x8x128xf32, #tpu.memory_space<vmem>>, vector<1x8x128xf32>,
    %c4_i32_128 = arith.constant 4 : i32
    %cst_129 = arith.constant dense<0.000000e+00> : vector<8x512xf32>
    %432 = tpu.matmul %427, %287, %cst_129 {dimension_numbers = #tpu.dot_dimension_numbers<[1], [0], [0], [1], [0, 0, 1, 1], [], []>} : vector<8x128xf32>, vector<128x512xf32>, vector<8x512xf32> -> vector<8x512xf32>
    %433 = arith.index_cast %c4_i32_128 : i32 to index
    %c0_130 = arith.constant 0 : index
    %c0_131 = arith.constant 0 : index
    %434 = vector.load %arg11[%433, %c0_130, %c0_131] : memref<8x8x512xf32, #tpu.memory_space<vmem>>, vector<1x8x512xf32>
    %435 = vector.shape_cast %434 : vector<1x8x512xf32> to vector<8x512xf32>
    %436 = arith.addf %432, %435 : vector<8x512xf32>
    %437 = vector.extract_strided_slice %436 {offsets = [0, 0], sizes = [8, 128], strides = [1, 1]} : vector<8x512xf32> to vector<8x128xf32>
    %438 = arith.negf %437 : vector<8x128xf32>
    %439 = math.exp %438 : vector<8x128xf32>
    %cst_132 = arith.constant 1.000000e+00 : f32
    %440 = vector.broadcast %cst_132 : f32 to vector<8x128xf32>
    %441 = arith.addf %440, %439 : vector<8x128xf32>
    %442 = arith.divf %440, %441 : vector<8x128xf32>
    %443 = vector.extract_strided_slice %436 {offsets = [0, 128], sizes = [8, 128], strides = [1, 1]} : vector<8x512xf32> to vector<8x128xf32>
    %444 = arith.negf %443 : vector<8x128xf32>
    %445 = math.exp %444 : vector<8x128xf32>
    %cst_133 = arith.constant 1.000000e+00 : f32
    %446 = vector.broadcast %cst_133 : f32 to vector<8x128xf32>
    %447 = arith.addf %446, %445 : vector<8x128xf32>
    %448 = arith.divf %446, %447 : vector<8x128xf32>
    %449 = vector.extract_strided_slice %436 {offsets = [0, 256], sizes = [8, 128], strides = [1, 1]} : vector<8x512xf32> to vector<8x128xf32>
    %450 = math.tanh %449 : vector<8x128xf32>
    %451 = vector.extract_strided_slice %436 {offsets = [0, 384], sizes = [8, 128], strides = [1, 1]} : vector<8x512xf32> to vector<8x128xf32>
    %452 = arith.negf %451 : vector<8x128xf32>
    %453 = math.exp %452 : vector<8x128xf32>
    %cst_134 = arith.constant 1.000000e+00 : f32
    %454 = vector.broadcast %cst_134 : f32 to vector<8x128xf32>
    %455 = arith.addf %454, %453 : vector<8x128xf32>
    %456 = arith.divf %454, %455 : vector<8x128xf32>
    %457 = arith.mulf %448, %425 : vector<8x128xf32>
    %458 = arith.mulf %442, %450 : vector<8x128xf32>
    %459 = arith.addf %457, %458 : vector<8x128xf32>
    %460 = math.tanh %459 : vector<8x128xf32>
    %461 = arith.mulf %456, %460 : vector<8x128xf32>
    %462 = arith.index_cast %c4_i32_128 : i32 to index
    %c0_135 = arith.constant 0 : index
    %c0_136 = arith.constant 0 : index
    %463 = vector.load %arg10[%462, %c0_135, %c0_136] : memref<8x8x128xf32, #tpu.memory_space<vmem>>, vector<1x8x128xf32>
    %464 = vector.shape_cast %463 : vector<1x8x128xf32> to vector<8x128xf32>
    %465 = vector.shape_cast %461 : vector<8x128xf32> to vector<1x8x128xf32>
    tpu.vector_store %arg10[%462, %c0_135, %c0_136], %465 {strides = array<i32>} : memref<8x8x128xf32, #tpu.memory_space<vmem>>, vector<1x8x128xf32>,
    %c5_i32_137 = arith.constant 5 : i32
    %cst_138 = arith.constant dense<0.000000e+00> : vector<8x512xf32>
    %466 = tpu.matmul %461, %287, %cst_138 {dimension_numbers = #tpu.dot_dimension_numbers<[1], [0], [0], [1], [0, 0, 1, 1], [], []>} : vector<8x128xf32>, vector<128x512xf32>, vector<8x512xf32> -> vector<8x512xf32>
    %467 = arith.index_cast %c5_i32_137 : i32 to index
    %c0_139 = arith.constant 0 : index
    %c0_140 = arith.constant 0 : index
    %468 = vector.load %arg11[%467, %c0_139, %c0_140] : memref<8x8x512xf32, #tpu.memory_space<vmem>>, vector<1x8x512xf32>
    %469 = vector.shape_cast %468 : vector<1x8x512xf32> to vector<8x512xf32>
    %470 = arith.addf %466, %469 : vector<8x512xf32>
    %471 = vector.extract_strided_slice %470 {offsets = [0, 0], sizes = [8, 128], strides = [1, 1]} : vector<8x512xf32> to vector<8x128xf32>
    %472 = arith.negf %471 : vector<8x128xf32>
    %473 = math.exp %472 : vector<8x128xf32>
    %cst_141 = arith.constant 1.000000e+00 : f32
    %474 = vector.broadcast %cst_141 : f32 to vector<8x128xf32>
    %475 = arith.addf %474, %473 : vector<8x128xf32>
    %476 = arith.divf %474, %475 : vector<8x128xf32>
    %477 = vector.extract_strided_slice %470 {offsets = [0, 128], sizes = [8, 128], strides = [1, 1]} : vector<8x512xf32> to vector<8x128xf32>
    %478 = arith.negf %477 : vector<8x128xf32>
    %479 = math.exp %478 : vector<8x128xf32>
    %cst_142 = arith.constant 1.000000e+00 : f32
    %480 = vector.broadcast %cst_142 : f32 to vector<8x128xf32>
    %481 = arith.addf %480, %479 : vector<8x128xf32>
    %482 = arith.divf %480, %481 : vector<8x128xf32>
    %483 = vector.extract_strided_slice %470 {offsets = [0, 256], sizes = [8, 128], strides = [1, 1]} : vector<8x512xf32> to vector<8x128xf32>
    %484 = math.tanh %483 : vector<8x128xf32>
    %485 = vector.extract_strided_slice %470 {offsets = [0, 384], sizes = [8, 128], strides = [1, 1]} : vector<8x512xf32> to vector<8x128xf32>
    %486 = arith.negf %485 : vector<8x128xf32>
    %487 = math.exp %486 : vector<8x128xf32>
    %cst_143 = arith.constant 1.000000e+00 : f32
    %488 = vector.broadcast %cst_143 : f32 to vector<8x128xf32>
    %489 = arith.addf %488, %487 : vector<8x128xf32>
    %490 = arith.divf %488, %489 : vector<8x128xf32>
    %491 = arith.mulf %482, %459 : vector<8x128xf32>
    %492 = arith.mulf %476, %484 : vector<8x128xf32>
    %493 = arith.addf %491, %492 : vector<8x128xf32>
    %494 = math.tanh %493 : vector<8x128xf32>
    %495 = arith.mulf %490, %494 : vector<8x128xf32>
    %496 = arith.index_cast %c5_i32_137 : i32 to index
    %c0_144 = arith.constant 0 : index
    %c0_145 = arith.constant 0 : index
    %497 = vector.load %arg10[%496, %c0_144, %c0_145] : memref<8x8x128xf32, #tpu.memory_space<vmem>>, vector<1x8x128xf32>
    %498 = vector.shape_cast %497 : vector<1x8x128xf32> to vector<8x128xf32>
    %499 = vector.shape_cast %495 : vector<8x128xf32> to vector<1x8x128xf32>
    tpu.vector_store %arg10[%496, %c0_144, %c0_145], %499 {strides = array<i32>} : memref<8x8x128xf32, #tpu.memory_space<vmem>>, vector<1x8x128xf32>,
    %c6_i32_146 = arith.constant 6 : i32
    %cst_147 = arith.constant dense<0.000000e+00> : vector<8x512xf32>
    %500 = tpu.matmul %495, %287, %cst_147 {dimension_numbers = #tpu.dot_dimension_numbers<[1], [0], [0], [1], [0, 0, 1, 1], [], []>} : vector<8x128xf32>, vector<128x512xf32>, vector<8x512xf32> -> vector<8x512xf32>
    %501 = arith.index_cast %c6_i32_146 : i32 to index
    %c0_148 = arith.constant 0 : index
    %c0_149 = arith.constant 0 : index
    %502 = vector.load %arg11[%501, %c0_148, %c0_149] : memref<8x8x512xf32, #tpu.memory_space<vmem>>, vector<1x8x512xf32>
    %503 = vector.shape_cast %502 : vector<1x8x512xf32> to vector<8x512xf32>
    %504 = arith.addf %500, %503 : vector<8x512xf32>
    %505 = vector.extract_strided_slice %504 {offsets = [0, 0], sizes = [8, 128], strides = [1, 1]} : vector<8x512xf32> to vector<8x128xf32>
    %506 = arith.negf %505 : vector<8x128xf32>
    %507 = math.exp %506 : vector<8x128xf32>
    %cst_150 = arith.constant 1.000000e+00 : f32
    %508 = vector.broadcast %cst_150 : f32 to vector<8x128xf32>
    %509 = arith.addf %508, %507 : vector<8x128xf32>
    %510 = arith.divf %508, %509 : vector<8x128xf32>
    %511 = vector.extract_strided_slice %504 {offsets = [0, 128], sizes = [8, 128], strides = [1, 1]} : vector<8x512xf32> to vector<8x128xf32>
    %512 = arith.negf %511 : vector<8x128xf32>
    %513 = math.exp %512 : vector<8x128xf32>
    %cst_151 = arith.constant 1.000000e+00 : f32
    %514 = vector.broadcast %cst_151 : f32 to vector<8x128xf32>
    %515 = arith.addf %514, %513 : vector<8x128xf32>
    %516 = arith.divf %514, %515 : vector<8x128xf32>
    %517 = vector.extract_strided_slice %504 {offsets = [0, 256], sizes = [8, 128], strides = [1, 1]} : vector<8x512xf32> to vector<8x128xf32>
    %518 = math.tanh %517 : vector<8x128xf32>
    %519 = vector.extract_strided_slice %504 {offsets = [0, 384], sizes = [8, 128], strides = [1, 1]} : vector<8x512xf32> to vector<8x128xf32>
    %520 = arith.negf %519 : vector<8x128xf32>
    %521 = math.exp %520 : vector<8x128xf32>
    %cst_152 = arith.constant 1.000000e+00 : f32
    %522 = vector.broadcast %cst_152 : f32 to vector<8x128xf32>
    %523 = arith.addf %522, %521 : vector<8x128xf32>
    %524 = arith.divf %522, %523 : vector<8x128xf32>
    %525 = arith.mulf %516, %493 : vector<8x128xf32>
    %526 = arith.mulf %510, %518 : vector<8x128xf32>
    %527 = arith.addf %525, %526 : vector<8x128xf32>
    %528 = math.tanh %527 : vector<8x128xf32>
    %529 = arith.mulf %524, %528 : vector<8x128xf32>
    %530 = arith.index_cast %c6_i32_146 : i32 to index
    %c0_153 = arith.constant 0 : index
    %c0_154 = arith.constant 0 : index
    %531 = vector.load %arg10[%530, %c0_153, %c0_154] : memref<8x8x128xf32, #tpu.memory_space<vmem>>, vector<1x8x128xf32>
    %532 = vector.shape_cast %531 : vector<1x8x128xf32> to vector<8x128xf32>
    %533 = vector.shape_cast %529 : vector<8x128xf32> to vector<1x8x128xf32>
    tpu.vector_store %arg10[%530, %c0_153, %c0_154], %533 {strides = array<i32>} : memref<8x8x128xf32, #tpu.memory_space<vmem>>, vector<1x8x128xf32>,
    %c7_i32_155 = arith.constant 7 : i32
    %cst_156 = arith.constant dense<0.000000e+00> : vector<8x512xf32>
    %534 = tpu.matmul %529, %287, %cst_156 {dimension_numbers = #tpu.dot_dimension_numbers<[1], [0], [0], [1], [0, 0, 1, 1], [], []>} : vector<8x128xf32>, vector<128x512xf32>, vector<8x512xf32> -> vector<8x512xf32>
    %535 = arith.index_cast %c7_i32_155 : i32 to index
    %c0_157 = arith.constant 0 : index
    %c0_158 = arith.constant 0 : index
    %536 = vector.load %arg11[%535, %c0_157, %c0_158] : memref<8x8x512xf32, #tpu.memory_space<vmem>>, vector<1x8x512xf32>
    %537 = vector.shape_cast %536 : vector<1x8x512xf32> to vector<8x512xf32>
    %538 = arith.addf %534, %537 : vector<8x512xf32>
    %539 = vector.extract_strided_slice %538 {offsets = [0, 0], sizes = [8, 128], strides = [1, 1]} : vector<8x512xf32> to vector<8x128xf32>
    %540 = arith.negf %539 : vector<8x128xf32>
    %541 = math.exp %540 : vector<8x128xf32>
    %cst_159 = arith.constant 1.000000e+00 : f32
    %542 = vector.broadcast %cst_159 : f32 to vector<8x128xf32>
    %543 = arith.addf %542, %541 : vector<8x128xf32>
    %544 = arith.divf %542, %543 : vector<8x128xf32>
    %545 = vector.extract_strided_slice %538 {offsets = [0, 128], sizes = [8, 128], strides = [1, 1]} : vector<8x512xf32> to vector<8x128xf32>
    %546 = arith.negf %545 : vector<8x128xf32>
    %547 = math.exp %546 : vector<8x128xf32>
    %cst_160 = arith.constant 1.000000e+00 : f32
    %548 = vector.broadcast %cst_160 : f32 to vector<8x128xf32>
    %549 = arith.addf %548, %547 : vector<8x128xf32>
    %550 = arith.divf %548, %549 : vector<8x128xf32>
    %551 = vector.extract_strided_slice %538 {offsets = [0, 256], sizes = [8, 128], strides = [1, 1]} : vector<8x512xf32> to vector<8x128xf32>
    %552 = math.tanh %551 : vector<8x128xf32>
    %553 = vector.extract_strided_slice %538 {offsets = [0, 384], sizes = [8, 128], strides = [1, 1]} : vector<8x512xf32> to vector<8x128xf32>
    %554 = arith.negf %553 : vector<8x128xf32>
    %555 = math.exp %554 : vector<8x128xf32>
    %cst_161 = arith.constant 1.000000e+00 : f32
    %556 = vector.broadcast %cst_161 : f32 to vector<8x128xf32>
    %557 = arith.addf %556, %555 : vector<8x128xf32>
    %558 = arith.divf %556, %557 : vector<8x128xf32>
    %559 = arith.mulf %550, %527 : vector<8x128xf32>
    %560 = arith.mulf %544, %552 : vector<8x128xf32>
    %561 = arith.addf %559, %560 : vector<8x128xf32>
    %562 = math.tanh %561 : vector<8x128xf32>
    %563 = arith.mulf %558, %562 : vector<8x128xf32>
    %564 = arith.index_cast %c7_i32_155 : i32 to index
    %c0_162 = arith.constant 0 : index
    %c0_163 = arith.constant 0 : index
    %565 = vector.load %arg10[%564, %c0_162, %c0_163] : memref<8x8x128xf32, #tpu.memory_space<vmem>>, vector<1x8x128xf32>
    %566 = vector.shape_cast %565 : vector<1x8x128xf32> to vector<8x128xf32>
    %567 = vector.shape_cast %563 : vector<8x128xf32> to vector<1x8x128xf32>
    tpu.vector_store %arg10[%564, %c0_162, %c0_163], %567 {strides = array<i32>} : memref<8x8x128xf32, #tpu.memory_space<vmem>>, vector<1x8x128xf32>,
    %c8_i32_164 = arith.constant 8 : i32
    %c0_165 = arith.constant 0 : index
    %c0_166 = arith.constant 0 : index
    %c0_167 = arith.constant 0 : index
    %568 = vector.load %arg10[%c0_165, %c0_166, %c0_167] : memref<8x8x128xf32, #tpu.memory_space<vmem>>, vector<8x8x128xf32>
    %569 = vector.shape_cast %568 : vector<8x8x128xf32> to vector<64x128xf32>
    %c0_168 = arith.constant 0 : index
    %c0_169 = arith.constant 0 : index
    %570 = vector.load %arg7[%c0_168, %c0_169] : memref<128x128xf32, #tpu.memory_space<vmem>>, vector<128x128xf32>
    %cst_170 = arith.constant dense<0.000000e+00> : vector<64x128xf32>
    %571 = tpu.matmul %569, %570, %cst_170 {dimension_numbers = #tpu.dot_dimension_numbers<[1], [0], [0], [1], [0, 0, 1, 1], [], []>} : vector<64x128xf32>, vector<128x128xf32>, vector<64x128xf32> -> vector<64x128xf32>
    %c0_171 = arith.constant 0 : index
    %c0_172 = arith.constant 0 : index
    %572 = vector.load %arg8[%c0_171, %c0_172] : memref<1x128xf32, #tpu.memory_space<vmem>>, vector<1x128xf32>
    %573 = vector.broadcast %572 : vector<1x128xf32> to vector<64x128xf32>
    %574 = arith.addf %571, %573 : vector<64x128xf32>
    %575 = vector.shape_cast %574 : vector<64x128xf32> to vector<8x8x128xf32>
    %c0_173 = arith.constant 0 : index
    %c0_174 = arith.constant 0 : index
    %c0_175 = arith.constant 0 : index
    %576 = vector.load %arg9[%c0_173, %c0_174, %c0_175] : memref<8x8x128xf32, #tpu.memory_space<vmem>>, vector<8x8x128xf32>
    tpu.vector_store %arg9[%c0_173, %c0_174, %c0_175], %575 {strides = array<i32>} : memref<8x8x128xf32, #tpu.memory_space<vmem>>, vector<8x8x128xf32>,
    return
  }
}

</mosaic_0001>

<llo_original>
// kernel: tpu_custom_call.1
$region0: #{tpu_custom_call.1}
  #allocation0 [shape = 'u32[]', space=smem, size = 0x4, offset = 0x4, fixed_abs, tag = 'smem constant byte address 0x4 - core index']
  #allocation1 [shape = 'u32[72,128]{1,0:T(1,128)}', space=vmem, size = 0x9000, scoped, tag = 'internal scratch']
  #allocation2 [shape = 'f32[8,8,128]{2,1,0:T(8,128)}', space=vmem, size = 0x8000, scoped, tag = 'scratch operand']
  #allocation3 [shape = 'f32[8,8,512]{2,1,0:T(8,128)}', space=vmem, size = 0x20000, scoped, tag = 'scratch operand']
  %s0 = inlined_call_operand.hbm [shape: f32[8,8,128], index: 0, kind: input, shape index: {}]
  %s1 = inlined_call_operand.hbm [shape: f32[128,512], index: 1, kind: input, shape index: {}]
  %s2 = inlined_call_operand.hbm [shape: f32[128,512], index: 2, kind: input, shape index: {}]
  %s3 = inlined_call_operand.hbm [shape: f32[1,512], index: 3, kind: input, shape index: {}]
  %s4 = inlined_call_operand.hbm [shape: f32[128,512], index: 4, kind: input, shape index: {}]
  %s5 = inlined_call_operand.hbm [shape: f32[128,512], index: 5, kind: input, shape index: {}]
  %s6 = inlined_call_operand.vmem [shape: f32[1,512], index: 6, kind: input, shape index: {}]
  %s7 = inlined_call_operand.hbm [shape: f32[128,128], index: 7, kind: input, shape index: {}]
  %s8 = inlined_call_operand.vmem [shape: f32[1,128], index: 8, kind: input, shape index: {}]
  %s9 = inlined_call_operand.hbm [shape: f32[8,8,128], index: 9, kind: output, shape index: {}]
  %s10 = sld [smem:[#allocation0]]
  $region74: #{tpu_custom_call.1} parent=0
    _
  %s12 = ssub.s32 1, %s10
  %s13 = scalar_select 0, %s12, %s10
  $region1: #{tpu_custom_call.1} parent=0
    #allocation4 [shape = 'u8[32768]{0}', space=vmem, size = 0x8000, scoped, tag = 'input window, operand 0, single buffered']
    #allocation5 [shape = 's32[1]{0}', space=sflag, size = 0x4, scoped, tag = 'scoped memory for tpu_custom_call.1']
    #allocation6 [shape = 's32[1]{0}', space=sflag, size = 0x4, scoped, tag = 'scoped memory for tpu_custom_call.1']
    #allocation7 [shape = 'u8[262144]{0}', space=vmem, size = 0x40000, scoped, tag = 'input window, operand 1, single buffered']
    #allocation8 [shape = 's32[1]{0}', space=sflag, size = 0x4, scoped, tag = 'scoped memory for tpu_custom_call.1']
    #allocation9 [shape = 'u8[262144]{0}', space=vmem, size = 0x40000, scoped, tag = 'input window, operand 2, single buffered']
    #allocation10 [shape = 'u8[2048]{0}', space=vmem, size = 0x800, scoped, tag = 'input window, operand 3, single buffered']
    #allocation11 [shape = 's32[1]{0}', space=sflag, size = 0x4, scoped, tag = 'scoped memory for tpu_custom_call.1']
    #allocation12 [shape = 'u8[262144]{0}', space=vmem, size = 0x40000, scoped, tag = 'input window, operand 4, single buffered']
    #allocation13 [shape = 'u8[262144]{0}', space=vmem, size = 0x40000, scoped, tag = 'input window, operand 5, single buffered']
    #allocation14 [shape = 's32[1]{0}', space=sflag, size = 0x4, scoped, tag = 'scoped memory for tpu_custom_call.1']
    #allocation15 [shape = 'u8[65536]{0}', space=vmem, size = 0x10000, scoped, tag = 'input window, operand 7, single buffered']
    #allocation16 [shape = 'u8[32768]{0}', space=vmem, size = 0x8000, scoped, tag = 'output window, operand 0, single buffered']
    %14 = vsyncpa [#allocation5], 0
    %15 = vsyncpa [#allocation8], 0
    %16 = vsyncpa [#allocation11], 0
    %17 = vsyncpa [#allocation14], 0
    %18 = vsyncpa [#allocation6], 0
    // Predicated region
    $region2: #{tpu_custom_call.1} parent=1 // pred_check
      _
    $region3: #{tpu_custom_call.1} parent=1 // pred_check_branch
      %20 = sbr.rel (0) target = $region5
    $region4: #{tpu_custom_call.1} parent=1 // pred_region
      %22 = vsyncadd [#allocation5], 0
      %s23 = sshll.u32 %s0, 4
      %s24 = int_to_ptr.hbm [resolvable:$true] %s23
      %s25 = sshll.u32 [#allocation4], 4
      %s26 = int_to_ptr.vmem [resolvable:$true] %s25
      %31 = dma.hbm_to_vmem [thread:$0]  %s24, 1024, %s26, [#allocation5], 128, 128, 8
    $region5: #{tpu_custom_call.1} parent=1 // pred_fallthru
      _
    // Predicated region
    $region6: #{tpu_custom_call.1} parent=1 // pred_check
      _
    $region7: #{tpu_custom_call.1} parent=1 // pred_check_branch
      %33 = sbr.rel (0) target = $region9
    $region8: #{tpu_custom_call.1} parent=1 // pred_region
      %35 = vsyncadd [#allocation8], 0
      %s36 = sshll.u32 %s1, 4
      %s37 = int_to_ptr.hbm [resolvable:$true] %s36
      %s38 = sshll.u32 [#allocation7], 4
      %s39 = int_to_ptr.vmem [resolvable:$true] %s38
      %44 = dma.hbm_to_vmem [thread:$0]  %s37, 8192, %s39, [#allocation8], 512, 512, 32
    $region9: #{tpu_custom_call.1} parent=1 // pred_fallthru
      _
    // Predicated region
    $region10: #{tpu_custom_call.1} parent=1 // pred_check
      _
    $region11: #{tpu_custom_call.1} parent=1 // pred_check_branch
      %46 = sbr.rel (0) target = $region13
    $region12: #{tpu_custom_call.1} parent=1 // pred_region
      %48 = vsyncadd [#allocation8], 0
      %s49 = sshll.u32 %s2, 4
      %s50 = int_to_ptr.hbm [resolvable:$true] %s49
      %s51 = sshll.u32 [#allocation9], 4
      %s52 = int_to_ptr.vmem [resolvable:$true] %s51
      %57 = dma.hbm_to_vmem [thread:$0]  %s50, 8192, %s52, [#allocation8], 512, 512, 32
    $region13: #{tpu_custom_call.1} parent=1 // pred_fallthru
      _
    // Predicated region
    $region14: #{tpu_custom_call.1} parent=1 // pred_check
      _
    $region15: #{tpu_custom_call.1} parent=1 // pred_check_branch
      %59 = sbr.rel (0) target = $region17
    $region16: #{tpu_custom_call.1} parent=1 // pred_region
      %61 = vsyncadd [#allocation11], 0
      %s63 = sshll.u32 %s3, 4
      %s64 = int_to_ptr.hbm [resolvable:$true] %s63
      %s65 = sshll.u32 [#allocation10], 4
      %s66 = int_to_ptr.vmem [resolvable:$true] %s65
      %68 = dma.hbm_to_vmem [thread:$0]  %s64, 64, %s66, [#allocation11]
    $region17: #{tpu_custom_call.1} parent=1 // pred_fallthru
      _
    // Predicated region
    $region18: #{tpu_custom_call.1} parent=1 // pred_check
      _
    $region19: #{tpu_custom_call.1} parent=1 // pred_check_branch
      %70 = sbr.rel (0) target = $region21
    $region20: #{tpu_custom_call.1} parent=1 // pred_region
      %72 = vsyncadd [#allocation11], 0
      %s73 = sshll.u32 %s4, 4
      %s74 = int_to_ptr.hbm [resolvable:$true] %s73
      %s75 = sshll.u32 [#allocation12], 4
      %s76 = int_to_ptr.vmem [resolvable:$true] %s75
      %81 = dma.hbm_to_vmem [thread:$0]  %s74, 8192, %s76, [#allocation11], 512, 512, 32
    $region21: #{tpu_custom_call.1} parent=1 // pred_fallthru
      _
    // Predicated region
    $region22: #{tpu_custom_call.1} parent=1 // pred_check
      _
    $region23: #{tpu_custom_call.1} parent=1 // pred_check_branch
      %83 = sbr.rel (0) target = $region25
    $region24: #{tpu_custom_call.1} parent=1 // pred_region
      %85 = vsyncadd [#allocation14], 0
      %s86 = sshll.u32 %s5, 4
      %s87 = int_to_ptr.hbm [resolvable:$true] %s86
      %s88 = sshll.u32 [#allocation13], 4
      %s89 = int_to_ptr.vmem [resolvable:$true] %s88
      %94 = dma.hbm_to_vmem [thread:$0]  %s87, 8192, %s89, [#allocation14], 512, 512, 32
    $region25: #{tpu_custom_call.1} parent=1 // pred_fallthru
      _
    // Predicated region
    $region26: #{tpu_custom_call.1} parent=1 // pred_check
      _
    $region27: #{tpu_custom_call.1} parent=1 // pred_check_branch
      %96 = sbr.rel (0) target = $region29
    $region28: #{tpu_custom_call.1} parent=1 // pred_region
      _
    $region29: #{tpu_custom_call.1} parent=1 // pred_fallthru
      _
    // Predicated region
    $region30: #{tpu_custom_call.1} parent=1 // pred_check
      _
    $region31: #{tpu_custom_call.1} parent=1 // pred_check_branch
      %98 = sbr.rel (0) target = $region33
    $region32: #{tpu_custom_call.1} parent=1 // pred_region
      %100 = vsyncadd [#allocation14], 0
      %s101 = sshll.u32 %s7, 4
      %s102 = int_to_ptr.hbm [resolvable:$true] %s101
      %s103 = sshll.u32 [#allocation15], 4
      %s104 = int_to_ptr.vmem [resolvable:$true] %s103
      %109 = dma.hbm_to_vmem [thread:$0]  %s102, 2048, %s104, [#allocation14], 128, 128, 8
    $region33: #{tpu_custom_call.1} parent=1 // pred_fallthru
      _
    // Predicated region
    $region34: #{tpu_custom_call.1} parent=1 // pred_check
      _
    $region35: #{tpu_custom_call.1} parent=1 // pred_check_branch
      %111 = sbr.rel (0) target = $region37
    $region36: #{tpu_custom_call.1} parent=1 // pred_region
      _
    $region37: #{tpu_custom_call.1} parent=1 // pred_fallthru
      _
    // Predicated region
    $region38: #{tpu_custom_call.1} parent=1 // pred_check
      _
    $region39: #{tpu_custom_call.1} parent=1 // pred_check_branch
      %113 = sbr.rel (0) target = $region41
    $region40: #{tpu_custom_call.1} parent=1 // pred_region
      %115 = dma.done [#allocation5], 1024
    $region41: #{tpu_custom_call.1} parent=1 // pred_fallthru
      _
    // Predicated region
    $region42: #{tpu_custom_call.1} parent=1 // pred_check
      _
    $region43: #{tpu_custom_call.1} parent=1 // pred_check_branch
      %117 = sbr.rel (0) target = $region45
    $region44: #{tpu_custom_call.1} parent=1 // pred_region
      %119 = dma.done [#allocation8], 8192
    $region45: #{tpu_custom_call.1} parent=1 // pred_fallthru
      _
    // Predicated region
    $region46: #{tpu_custom_call.1} parent=1 // pred_check
      _
    $region47: #{tpu_custom_call.1} parent=1 // pred_check_branch
      %121 = sbr.rel (0) target = $region49
    $region48: #{tpu_custom_call.1} parent=1 // pred_region
      %123 = dma.done [#allocation8], 8192
    $region49: #{tpu_custom_call.1} parent=1 // pred_fallthru
      _
    // Predicated region
    $region50: #{tpu_custom_call.1} parent=1 // pred_check
      _
    $region51: #{tpu_custom_call.1} parent=1 // pred_check_branch
      %125 = sbr.rel (0) target = $region53
    $region52: #{tpu_custom_call.1} parent=1 // pred_region
      %127 = dma.done [#allocation11], 64
    $region53: #{tpu_custom_call.1} parent=1 // pred_fallthru
      _
    // Predicated region
    $region54: #{tpu_custom_call.1} parent=1 // pred_check
      _
    $region55: #{tpu_custom_call.1} parent=1 // pred_check_branch
      %129 = sbr.rel (0) target = $region57
    $region56: #{tpu_custom_call.1} parent=1 // pred_region
      %131 = dma.done [#allocation11], 8192
    $region57: #{tpu_custom_call.1} parent=1 // pred_fallthru
      _
    // Predicated region
    $region58: #{tpu_custom_call.1} parent=1 // pred_check
      _
    $region59: #{tpu_custom_call.1} parent=1 // pred_check_branch
      %133 = sbr.rel (0) target = $region61
    $region60: #{tpu_custom_call.1} parent=1 // pred_region
      %135 = dma.done [#allocation14], 8192
    $region61: #{tpu_custom_call.1} parent=1 // pred_fallthru
      _
    // Predicated region
    $region62: #{tpu_custom_call.1} parent=1 // pred_check
      _
    $region63: #{tpu_custom_call.1} parent=1 // pred_check_branch
      %137 = sbr.rel (0) target = $region65
    $region64: #{tpu_custom_call.1} parent=1 // pred_region
      %139 = dma.done [#allocation14], 2048
    $region65: #{tpu_custom_call.1} parent=1 // pred_fallthru
      _
    %v140 = vld [vmem:[#allocation4] sm:$0xff]
    %v141 = vld [vmem:[#allocation4 + $0x8] sm:$0xff]
    %v142 = vld [vmem:[#allocation4 + $0x10] sm:$0xff]
    %v143 = vld [vmem:[#allocation4 + $0x18] sm:$0xff]
    %v144 = vld [vmem:[#allocation4 + $0x20] sm:$0xff]
    %v145 = vld [vmem:[#allocation4 + $0x28] sm:$0xff]
    %v146 = vld [vmem:[#allocation4 + $0x30] sm:$0xff]
    %v147 = vld [vmem:[#allocation4 + $0x38] sm:$0xff]
    %v148 = vld [vmem:[#allocation7] sm:$0xff]
    %v149 = vld [vmem:[#allocation7 + $0x8] sm:$0xff]
    %v150 = vld [vmem:[#allocation7 + $0x10] sm:$0xff]
    %v151 = vld [vmem:[#allocation7 + $0x18] sm:$0xff]
    %v152 = vld [vmem:[#allocation7 + $0x20] sm:$0xff]
    %v153 = vld [vmem:[#allocation7 + $0x28] sm:$0xff]
    %v154 = vld [vmem:[#allocation7 + $0x30] sm:$0xff]
    %v155 = vld [vmem:[#allocation7 + $0x38] sm:$0xff]
    %v156 = vld [vmem:[#allocation7 + $0x40] sm:$0xff]
    %v157 = vld [vmem:[#allocation7 + $0x48] sm:$0xff]
    %v158 = vld [vmem:[#allocation7 + $0x50] sm:$0xff]
    %v159 = vld [vmem:[#allocation7 + $0x58] sm:$0xff]
    %v160 = vld [vmem:[#allocation7 + $0x60] sm:$0xff]
    %v161 = vld [vmem:[#allocation7 + $0x68] sm:$0xff]
    %v162 = vld [vmem:[#allocation7 + $0x70] sm:$0xff]
    %v163 = vld [vmem:[#allocation7 + $0x78] sm:$0xff]
    %v164 = vld [vmem:[#allocation7 + $0x80] sm:$0xff]
    %v165 = vld [vmem:[#allocation7 + $0x88] sm:$0xff]
    %v166 = vld [vmem:[#allocation7 + $0x90] sm:$0xff]
    %v167 = vld [vmem:[#allocation7 + $0x98] sm:$0xff]
    %v168 = vld [vmem:[#allocation7 + $0xa0] sm:$0xff]
    %v169 = vld [vmem:[#allocation7 + $0xa8] sm:$0xff]
    %v170 = vld [vmem:[#allocation7 + $0xb0] sm:$0xff]
    %v171 = vld [vmem:[#allocation7 + $0xb8] sm:$0xff]
    %v172 = vld [vmem:[#allocation7 + $0xc0] sm:$0xff]
    %v173 = vld [vmem:[#allocation7 + $0xc8] sm:$0xff]
    %v174 = vld [vmem:[#allocation7 + $0xd0] sm:$0xff]
    %v175 = vld [vmem:[#allocation7 + $0xd8] sm:$0xff]
    %v176 = vld [vmem:[#allocation7 + $0xe0] sm:$0xff]
    %v177 = vld [vmem:[#allocation7 + $0xe8] sm:$0xff]
    %v178 = vld [vmem:[#allocation7 + $0xf0] sm:$0xff]
    %v179 = vld [vmem:[#allocation7 + $0xf8] sm:$0xff]
    %v180 = vld [vmem:[#allocation7 + $0x100] sm:$0xff]
    %v181 = vld [vmem:[#allocation7 + $0x108] sm:$0xff]
    %v182 = vld [vmem:[#allocation7 + $0x110] sm:$0xff]
    %v183 = vld [vmem:[#allocation7 + $0x118] sm:$0xff]
    %v184 = vld [vmem:[#allocation7 + $0x120] sm:$0xff]
    %v185 = vld [vmem:[#allocation7 + $0x128] sm:$0xff]
    %v186 = vld [vmem:[#allocation7 + $0x130] sm:$0xff]
    %v187 = vld [vmem:[#allocation7 + $0x138] sm:$0xff]
    %v188 = vld [vmem:[#allocation7 + $0x140] sm:$0xff]
    %v189 = vld [vmem:[#allocation7 + $0x148] sm:$0xff]
    %v190 = vld [vmem:[#allocation7 + $0x150] sm:$0xff]
    %v191 = vld [vmem:[#allocation7 + $0x158] sm:$0xff]
    %v192 = vld [vmem:[#allocation7 + $0x160] sm:$0xff]
    %v193 = vld [vmem:[#allocation7 + $0x168] sm:$0xff]
    %v194 = vld [vmem:[#allocation7 + $0x170] sm:$0xff]
    %v195 = vld [vmem:[#allocation7 + $0x178] sm:$0xff]
    %v196 = vld [vmem:[#allocation7 + $0x180] sm:$0xff]
    %v197 = vld [vmem:[#allocation7 + $0x188] sm:$0xff]
    %v198 = vld [vmem:[#allocation7 + $0x190] sm:$0xff]
    %v199 = vld [vmem:[#allocation7 + $0x198] sm:$0xff]
    %v200 = vld [vmem:[#allocation7 + $0x1a0] sm:$0xff]
    %v201 = vld [vmem:[#allocation7 + $0x1a8] sm:$0xff]
    %v202 = vld [vmem:[#allocation7 + $0x1b0] sm:$0xff]
    %v203 = vld [vmem:[#allocation7 + $0x1b8] sm:$0xff]
    %v204 = vld [vmem:[#allocation7 + $0x1c0] sm:$0xff]
    %v205 = vld [vmem:[#allocation7 + $0x1c8] sm:$0xff]
    %v206 = vld [vmem:[#allocation7 + $0x1d0] sm:$0xff]
    %v207 = vld [vmem:[#allocation7 + $0x1d8] sm:$0xff]
    %v208 = vld [vmem:[#allocation7 + $0x1e0] sm:$0xff]
    %v209 = vld [vmem:[#allocation7 + $0x1e8] sm:$0xff]
    %v210 = vld [vmem:[#allocation7 + $0x1f0] sm:$0xff]
    %v211 = vld [vmem:[#allocation7 + $0x1f8] sm:$0xff]
    %v212 = vld [vmem:[#allocation9] sm:$0xff]
    %v213 = vld [vmem:[#allocation9 + $0x8] sm:$0xff]
    %v214 = vld [vmem:[#allocation9 + $0x10] sm:$0xff]
    %v215 = vld [vmem:[#allocation9 + $0x18] sm:$0xff]
    %v216 = vld [vmem:[#allocation9 + $0x20] sm:$0xff]
    %v217 = vld [vmem:[#allocation9 + $0x28] sm:$0xff]
    %v218 = vld [vmem:[#allocation9 + $0x30] sm:$0xff]
    %v219 = vld [vmem:[#allocation9 + $0x38] sm:$0xff]
    %v220 = vld [vmem:[#allocation9 + $0x40] sm:$0xff]
    %v221 = vld [vmem:[#allocation9 + $0x48] sm:$0xff]
    %v222 = vld [vmem:[#allocation9 + $0x50] sm:$0xff]
    %v223 = vld [vmem:[#allocation9 + $0x58] sm:$0xff]
    %v224 = vld [vmem:[#allocation9 + $0x60] sm:$0xff]
    %v225 = vld [vmem:[#allocation9 + $0x68] sm:$0xff]
    %v226 = vld [vmem:[#allocation9 + $0x70] sm:$0xff]
    %v227 = vld [vmem:[#allocation9 + $0x78] sm:$0xff]
    %v228 = vld [vmem:[#allocation9 + $0x80] sm:$0xff]
    %v229 = vld [vmem:[#allocation9 + $0x88] sm:$0xff]
    %v230 = vld [vmem:[#allocation9 + $0x90] sm:$0xff]
    %v231 = vld [vmem:[#allocation9 + $0x98] sm:$0xff]
    %v232 = vld [vmem:[#allocation9 + $0xa0] sm:$0xff]
    %v233 = vld [vmem:[#allocation9 + $0xa8] sm:$0xff]
    %v234 = vld [vmem:[#allocation9 + $0xb0] sm:$0xff]
    %v235 = vld [vmem:[#allocation9 + $0xb8] sm:$0xff]
    %v236 = vld [vmem:[#allocation9 + $0xc0] sm:$0xff]
    %v237 = vld [vmem:[#allocation9 + $0xc8] sm:$0xff]
    %v238 = vld [vmem:[#allocation9 + $0xd0] sm:$0xff]
    %v239 = vld [vmem:[#allocation9 + $0xd8] sm:$0xff]
    %v240 = vld [vmem:[#allocation9 + $0xe0] sm:$0xff]
    %v241 = vld [vmem:[#allocation9 + $0xe8] sm:$0xff]
    %v242 = vld [vmem:[#allocation9 + $0xf0] sm:$0xff]
    %v243 = vld [vmem:[#allocation9 + $0xf8] sm:$0xff]
    %v244 = vld [vmem:[#allocation9 + $0x100] sm:$0xff]
    %v245 = vld [vmem:[#allocation9 + $0x108] sm:$0xff]
    %v246 = vld [vmem:[#allocation9 + $0x110] sm:$0xff]
    %v247 = vld [vmem:[#allocation9 + $0x118] sm:$0xff]
    %v248 = vld [vmem:[#allocation9 + $0x120] sm:$0xff]
    %v249 = vld [vmem:[#allocation9 + $0x128] sm:$0xff]
    %v250 = vld [vmem:[#allocation9 + $0x130] sm:$0xff]
    %v251 = vld [vmem:[#allocation9 + $0x138] sm:$0xff]
    %v252 = vld [vmem:[#allocation9 + $0x140] sm:$0xff]
    %v253 = vld [vmem:[#allocation9 + $0x148] sm:$0xff]
    %v254 = vld [vmem:[#allocation9 + $0x150] sm:$0xff]
    %v255 = vld [vmem:[#allocation9 + $0x158] sm:$0xff]
    %v256 = vld [vmem:[#allocation9 + $0x160] sm:$0xff]
    %v257 = vld [vmem:[#allocation9 + $0x168] sm:$0xff]
    %v258 = vld [vmem:[#allocation9 + $0x170] sm:$0xff]
    %v259 = vld [vmem:[#allocation9 + $0x178] sm:$0xff]
    %v260 = vld [vmem:[#allocation9 + $0x180] sm:$0xff]
    %v261 = vld [vmem:[#allocation9 + $0x188] sm:$0xff]
    %v262 = vld [vmem:[#allocation9 + $0x190] sm:$0xff]
    %v263 = vld [vmem:[#allocation9 + $0x198] sm:$0xff]
    %v264 = vld [vmem:[#allocation9 + $0x1a0] sm:$0xff]
    %v265 = vld [vmem:[#allocation9 + $0x1a8] sm:$0xff]
    %v266 = vld [vmem:[#allocation9 + $0x1b0] sm:$0xff]
    %v267 = vld [vmem:[#allocation9 + $0x1b8] sm:$0xff]
    %v268 = vld [vmem:[#allocation9 + $0x1c0] sm:$0xff]
    %v269 = vld [vmem:[#allocation9 + $0x1c8] sm:$0xff]
    %v270 = vld [vmem:[#allocation9 + $0x1d0] sm:$0xff]
    %v271 = vld [vmem:[#allocation9 + $0x1d8] sm:$0xff]
    %v272 = vld [vmem:[#allocation9 + $0x1e0] sm:$0xff]
    %v273 = vld [vmem:[#allocation9 + $0x1e8] sm:$0xff]
    %v274 = vld [vmem:[#allocation9 + $0x1f0] sm:$0xff]
    %v275 = vld [vmem:[#allocation9 + $0x1f8] sm:$0xff]
    %v276 = vld [vmem:[#allocation10] sm:$0xf]
    %v278 = vperm.slane %v276, 0
    %v279 = vperm.slane %v276, 1
    %v280 = vperm.slane %v276, 2
    %v281 = vperm.slane %v276, 3
    %286 = vmatpush.msra.mxu0 %v208
    %287 = vmatpush.msra.mxu0 %v204
    %288 = vmatpush.msra.mxu0 %v200
    %289 = vmatpush.msra.mxu0 %v196
    %290 = vmatpush.msra.mxu0 %v192
    %291 = vmatpush.msra.mxu0 %v188
    %292 = vmatpush.msra.mxu0 %v184
    %293 = vmatpush.msra.mxu0 %v180
    %294 = vmatpush.msra.mxu0 %v176
    %295 = vmatpush.msra.mxu0 %v172
    %296 = vmatpush.msra.mxu0 %v168
    %297 = vmatpush.msra.mxu0 %v164
    %298 = vmatpush.msra.mxu0 %v160
    %299 = vmatpush.msra.mxu0 %v156
    %300 = vmatpush.msra.mxu0 %v152
    %301 = vmatpush.msra.mxu0 %v148
    %302 = vmatmul.f32.gmra.mxu0 %v140
    %v303 = vpop.f32.mrf.mxu0
    %v304 = vadd.f32 %v278, %v303
    %305 = vmatmul.f32.gmra.mxu0 %v141
    %v306 = vpop.f32.mrf.mxu0
    %v307 = vadd.f32 %v278, %v306
    %308 = vmatmul.f32.gmra.mxu0 %v142
    %v309 = vpop.f32.mrf.mxu0
    %v310 = vadd.f32 %v278, %v309
    %311 = vmatmul.f32.gmra.mxu0 %v143
    %v312 = vpop.f32.mrf.mxu0
    %v313 = vadd.f32 %v278, %v312
    %314 = vmatmul.f32.gmra.mxu0 %v144
    %v315 = vpop.f32.mrf.mxu0
    %v316 = vadd.f32 %v278, %v315
    %317 = vmatmul.f32.gmra.mxu0 %v145
    %v318 = vpop.f32.mrf.mxu0
    %v319 = vadd.f32 %v278, %v318
    %320 = vmatmul.f32.gmra.mxu0 %v146
    %v321 = vpop.f32.mrf.mxu0
    %v322 = vadd.f32 %v278, %v321
    %323 = vmatmul.f32.gmra.mxu0 %v147
    %v324 = vpop.f32.mrf.mxu0
    %v325 = vadd.f32 %v278, %v324
    %326 = vdwg.mxu0
    %327 = vmatpush.msra.mxu0 %v209
    %328 = vmatpush.msra.mxu0 %v205
    %329 = vmatpush.msra.mxu0 %v201
    %330 = vmatpush.msra.mxu0 %v197
    %331 = vmatpush.msra.mxu0 %v193
    %332 = vmatpush.msra.mxu0 %v189
    %333 = vmatpush.msra.mxu0 %v185
    %334 = vmatpush.msra.mxu0 %v181
    %335 = vmatpush.msra.mxu0 %v177
    %336 = vmatpush.msra.mxu0 %v173
    %337 = vmatpush.msra.mxu0 %v169
    %338 = vmatpush.msra.mxu0 %v165
    %339 = vmatpush.msra.mxu0 %v161
    %340 = vmatpush.msra.mxu0 %v157
    %341 = vmatpush.msra.mxu0 %v153
    %342 = vmatpush.msra.mxu0 %v149
    %343 = vmatmul.f32.gmra.mxu0 %v140
    %v344 = vpop.f32.mrf.mxu0
    %v345 = vadd.f32 %v279, %v344
    %346 = vmatmul.f32.gmra.mxu0 %v141
    %v347 = vpop.f32.mrf.mxu0
    %v348 = vadd.f32 %v279, %v347
    %349 = vmatmul.f32.gmra.mxu0 %v142
    %v350 = vpop.f32.mrf.mxu0
    %v351 = vadd.f32 %v279, %v350
    %352 = vmatmul.f32.gmra.mxu0 %v143
    %v353 = vpop.f32.mrf.mxu0
    %v354 = vadd.f32 %v279, %v353
    %355 = vmatmul.f32.gmra.mxu0 %v144
    %v356 = vpop.f32.mrf.mxu0
    %v357 = vadd.f32 %v279, %v356
    %358 = vmatmul.f32.gmra.mxu0 %v145
    %v359 = vpop.f32.mrf.mxu0
    %v360 = vadd.f32 %v279, %v359
    %361 = vmatmul.f32.gmra.mxu0 %v146
    %v362 = vpop.f32.mrf.mxu0
    %v363 = vadd.f32 %v279, %v362
    %364 = vmatmul.f32.gmra.mxu0 %v147
    %v365 = vpop.f32.mrf.mxu0
    %v366 = vadd.f32 %v279, %v365
    %367 = vdwg.mxu0
    %368 = vmatpush.msra.mxu0 %v210
    %369 = vmatpush.msra.mxu0 %v206
    %370 = vmatpush.msra.mxu0 %v202
    %371 = vmatpush.msra.mxu0 %v198
    %372 = vmatpush.msra.mxu0 %v194
    %373 = vmatpush.msra.mxu0 %v190
    %374 = vmatpush.msra.mxu0 %v186
    %375 = vmatpush.msra.mxu0 %v182
    %376 = vmatpush.msra.mxu0 %v178
    %377 = vmatpush.msra.mxu0 %v174
    %378 = vmatpush.msra.mxu0 %v170
    %379 = vmatpush.msra.mxu0 %v166
    %380 = vmatpush.msra.mxu0 %v162
    %381 = vmatpush.msra.mxu0 %v158
    %382 = vmatpush.msra.mxu0 %v154
    %383 = vmatpush.msra.mxu0 %v150
    %384 = vmatmul.f32.gmra.mxu0 %v140
    %v385 = vpop.f32.mrf.mxu0
    %v386 = vadd.f32 %v280, %v385
    %387 = vmatmul.f32.gmra.mxu0 %v141
    %v388 = vpop.f32.mrf.mxu0
    %v389 = vadd.f32 %v280, %v388
    %390 = vmatmul.f32.gmra.mxu0 %v142
    %v391 = vpop.f32.mrf.mxu0
    %v392 = vadd.f32 %v280, %v391
    %393 = vmatmul.f32.gmra.mxu0 %v143
    %v394 = vpop.f32.mrf.mxu0
    %v395 = vadd.f32 %v280, %v394
    %396 = vmatmul.f32.gmra.mxu0 %v144
    %v397 = vpop.f32.mrf.mxu0
    %v398 = vadd.f32 %v280, %v397
    %399 = vmatmul.f32.gmra.mxu0 %v145
    %v400 = vpop.f32.mrf.mxu0
    %v401 = vadd.f32 %v280, %v400
    %402 = vmatmul.f32.gmra.mxu0 %v146
    %v403 = vpop.f32.mrf.mxu0
    %v404 = vadd.f32 %v280, %v403
    %405 = vmatmul.f32.gmra.mxu0 %v147
    %v406 = vpop.f32.mrf.mxu0
    %v407 = vadd.f32 %v280, %v406
    %408 = vdwg.mxu0
    %409 = vmatpush.msra.mxu0 %v211
    %410 = vmatpush.msra.mxu0 %v207
    %411 = vmatpush.msra.mxu0 %v203
    %412 = vmatpush.msra.mxu0 %v199
    %413 = vmatpush.msra.mxu0 %v195
    %414 = vmatpush.msra.mxu0 %v191
    %415 = vmatpush.msra.mxu0 %v187
    %416 = vmatpush.msra.mxu0 %v183
    %417 = vmatpush.msra.mxu0 %v179
    %418 = vmatpush.msra.mxu0 %v175
    %419 = vmatpush.msra.mxu0 %v171
    %420 = vmatpush.msra.mxu0 %v167
    %421 = vmatpush.msra.mxu0 %v163
    %422 = vmatpush.msra.mxu0 %v159
    %423 = vmatpush.msra.mxu0 %v155
    %424 = vmatpush.msra.mxu0 %v151
    %425 = vmatmul.f32.gmra.mxu0 %v140
    %v426 = vpop.f32.mrf.mxu0
    %v427 = vadd.f32 %v281, %v426
    %428 = vmatmul.f32.gmra.mxu0 %v141
    %v429 = vpop.f32.mrf.mxu0
    %v430 = vadd.f32 %v281, %v429
    %431 = vmatmul.f32.gmra.mxu0 %v142
    %v432 = vpop.f32.mrf.mxu0
    %v433 = vadd.f32 %v281, %v432
    %434 = vmatmul.f32.gmra.mxu0 %v143
    %v435 = vpop.f32.mrf.mxu0
    %v436 = vadd.f32 %v281, %v435
    %437 = vmatmul.f32.gmra.mxu0 %v144
    %v438 = vpop.f32.mrf.mxu0
    %v439 = vadd.f32 %v281, %v438
    %440 = vmatmul.f32.gmra.mxu0 %v145
    %v441 = vpop.f32.mrf.mxu0
    %v442 = vadd.f32 %v281, %v441
    %443 = vmatmul.f32.gmra.mxu0 %v146
    %v444 = vpop.f32.mrf.mxu0
    %v445 = vadd.f32 %v281, %v444
    %446 = vmatmul.f32.gmra.mxu0 %v147
    %v447 = vpop.f32.mrf.mxu0
    %v448 = vadd.f32 %v281, %v447
    %449 = vdwg.mxu0
    %450 = vst [vmem:[#allocation3] sm:$0xff] %v304
    %451 = vst [vmem:[#allocation3 + $0x8] sm:$0xff] %v345
    %452 = vst [vmem:[#allocation3 + $0x10] sm:$0xff] %v386
    %453 = vst [vmem:[#allocation3 + $0x18] sm:$0xff] %v427
    %454 = vst [vmem:[#allocation3 + $0x20] sm:$0xff] %v307
    %455 = vst [vmem:[#allocation3 + $0x28] sm:$0xff] %v348
    %456 = vst [vmem:[#allocation3 + $0x30] sm:$0xff] %v389
    %457 = vst [vmem:[#allocation3 + $0x38] sm:$0xff] %v430
    %458 = vst [vmem:[#allocation3 + $0x40] sm:$0xff] %v310
    %459 = vst [vmem:[#allocation3 + $0x48] sm:$0xff] %v351
    %460 = vst [vmem:[#allocation3 + $0x50] sm:$0xff] %v392
    %461 = vst [vmem:[#allocation3 + $0x58] sm:$0xff] %v433
    %462 = vst [vmem:[#allocation3 + $0x60] sm:$0xff] %v313
    %463 = vst [vmem:[#allocation3 + $0x68] sm:$0xff] %v354
    %464 = vst [vmem:[#allocation3 + $0x70] sm:$0xff] %v395
    %465 = vst [vmem:[#allocation3 + $0x78] sm:$0xff] %v436
    %466 = vst [vmem:[#allocation3 + $0x80] sm:$0xff] %v316
    %467 = vst [vmem:[#allocation3 + $0x88] sm:$0xff] %v357
    %468 = vst [vmem:[#allocation3 + $0x90] sm:$0xff] %v398
    %469 = vst [vmem:[#allocation3 + $0x98] sm:$0xff] %v439
    %470 = vst [vmem:[#allocation3 + $0xa0] sm:$0xff] %v319
    %471 = vst [vmem:[#allocation3 + $0xa8] sm:$0xff] %v360
    %472 = vst [vmem:[#allocation3 + $0xb0] sm:$0xff] %v401
    %473 = vst [vmem:[#allocation3 + $0xb8] sm:$0xff] %v442
    %474 = vst [vmem:[#allocation3 + $0xc0] sm:$0xff] %v322
    %475 = vst [vmem:[#allocation3 + $0xc8] sm:$0xff] %v363
    %476 = vst [vmem:[#allocation3 + $0xd0] sm:$0xff] %v404
    %477 = vst [vmem:[#allocation3 + $0xd8] sm:$0xff] %v445
    %478 = vst [vmem:[#allocation3 + $0xe0] sm:$0xff] %v325
    %479 = vst [vmem:[#allocation3 + $0xe8] sm:$0xff] %v366
    %480 = vst [vmem:[#allocation3 + $0xf0] sm:$0xff] %v407
    %481 = vst [vmem:[#allocation3 + $0xf8] sm:$0xff] %v448
    %v482 = vld [vmem:[#allocation3] sm:$0xff]
    %v483 = vld [vmem:[#allocation3 + $0x8] sm:$0xff]
    %v484 = vld [vmem:[#allocation3 + $0x10] sm:$0xff]
    %v485 = vld [vmem:[#allocation3 + $0x18] sm:$0xff]
    %486 = vmatpush.msra.mxu0 %v272
    %487 = vmatpush.msra.mxu0 %v268
    %488 = vmatpush.msra.mxu0 %v264
    %489 = vmatpush.msra.mxu0 %v260
    %490 = vmatpush.msra.mxu0 %v256
    %491 = vmatpush.msra.mxu0 %v252
    %492 = vmatpush.msra.mxu0 %v248
    %493 = vmatpush.msra.mxu0 %v244
    %494 = vmatpush.msra.mxu0 %v240
    %495 = vmatpush.msra.mxu0 %v236
    %496 = vmatpush.msra.mxu0 %v232
    %497 = vmatpush.msra.mxu0 %v228
    %498 = vmatpush.msra.mxu0 %v224
    %499 = vmatpush.msra.mxu0 %v220
    %500 = vmatpush.msra.mxu0 %v216
    %501 = vmatpush.msra.mxu0 %v212
    %502 = vmatmul.f32.gmra.mxu0 0.0
    %v503 = vpop.f32.mrf.mxu0
    %v504 = vadd.f32 %v482, %v503
    %505 = vdwg.mxu0
    %506 = vmatpush.msra.mxu0 %v273
    %507 = vmatpush.msra.mxu0 %v269
    %508 = vmatpush.msra.mxu0 %v265
    %509 = vmatpush.msra.mxu0 %v261
    %510 = vmatpush.msra.mxu0 %v257
    %511 = vmatpush.msra.mxu0 %v253
    %512 = vmatpush.msra.mxu0 %v249
    %513 = vmatpush.msra.mxu0 %v245
    %514 = vmatpush.msra.mxu0 %v241
    %515 = vmatpush.msra.mxu0 %v237
    %516 = vmatpush.msra.mxu0 %v233
    %517 = vmatpush.msra.mxu0 %v229
    %518 = vmatpush.msra.mxu0 %v225
    %519 = vmatpush.msra.mxu0 %v221
    %520 = vmatpush.msra.mxu0 %v217
    %521 = vmatpush.msra.mxu0 %v213
    %522 = vmatmul.f32.gmra.mxu0 0.0
    %v523 = vpop.f32.mrf.mxu0
    %v524 = vadd.f32 %v483, %v523
    %525 = vdwg.mxu0
    %526 = vmatpush.msra.mxu0 %v274
    %527 = vmatpush.msra.mxu0 %v270
    %528 = vmatpush.msra.mxu0 %v266
    %529 = vmatpush.msra.mxu0 %v262
    %530 = vmatpush.msra.mxu0 %v258
    %531 = vmatpush.msra.mxu0 %v254
    %532 = vmatpush.msra.mxu0 %v250
    %533 = vmatpush.msra.mxu0 %v246
    %534 = vmatpush.msra.mxu0 %v242
    %535 = vmatpush.msra.mxu0 %v238
    %536 = vmatpush.msra.mxu0 %v234
    %537 = vmatpush.msra.mxu0 %v230
    %538 = vmatpush.msra.mxu0 %v226
    %539 = vmatpush.msra.mxu0 %v222
    %540 = vmatpush.msra.mxu0 %v218
    %541 = vmatpush.msra.mxu0 %v214
    %542 = vmatmul.f32.gmra.mxu0 0.0
    %v543 = vpop.f32.mrf.mxu0
    %v544 = vadd.f32 %v484, %v543
    %545 = vdwg.mxu0
    %546 = vmatpush.msra.mxu0 %v275
    %547 = vmatpush.msra.mxu0 %v271
    %548 = vmatpush.msra.mxu0 %v267
    %549 = vmatpush.msra.mxu0 %v263
    %550 = vmatpush.msra.mxu0 %v259
    %551 = vmatpush.msra.mxu0 %v255
    %552 = vmatpush.msra.mxu0 %v251
    %553 = vmatpush.msra.mxu0 %v247
    %554 = vmatpush.msra.mxu0 %v243
    %555 = vmatpush.msra.mxu0 %v239
    %556 = vmatpush.msra.mxu0 %v235
    %557 = vmatpush.msra.mxu0 %v231
    %558 = vmatpush.msra.mxu0 %v227
    %559 = vmatpush.msra.mxu0 %v223
    %560 = vmatpush.msra.mxu0 %v219
    %561 = vmatpush.msra.mxu0 %v215
    %562 = vmatmul.f32.gmra.mxu0 0.0
    %v563 = vpop.f32.mrf.mxu0
    %v564 = vadd.f32 %v485, %v563
    %565 = vdwg.mxu0
    %v566 = vxor.u32 %v504, 2147483648
    %v567 = vmul.f32 %v566, 1.442695
    %v568 = vpow.pop %v567
    %v569 = vadd.f32 %v568, 1.0
    %v570 = vrcp.pop %v569
    %v571 = vmul.f32 %v569, %v570
    %v572 = vsub.f32 1.0, %v571
    %v573 = vmul.f32 %v570, %v572
    %v574 = vadd.f32 %v570, %v573
    %vm575 = vweird.f32 %v569
    %vm576 = vweird.f32 %v570
    %vm577 = vmor %vm575, %vm576
    %v578 = vsel %vm577, %v570, %v574
    %v579 = vand.u32 2147483647, %v569
    %vm580 = vcmp.eq.f32.partialorder %v579, 8.507059e+37
    %v581 = vand.u32 %v569, 2147483648
    %v582 = vor.u32 1.1754944e-38, %v581
    %v583 = vsel %vm580, %v582, %v578
    %v584 = vmul.f32 1.0, %v583
    %v585 = vxor.u32 %v524, 2147483648
    %v586 = vmul.f32 %v585, 1.442695
    %v587 = vpow.pop %v586
    %v588 = vadd.f32 %v587, 1.0
    %v589 = vrcp.pop %v588
    %v590 = vmul.f32 %v588, %v589
    %v591 = vsub.f32 1.0, %v590
    %v592 = vmul.f32 %v589, %v591
    %v593 = vadd.f32 %v589, %v592
    %vm594 = vweird.f32 %v588
    %vm595 = vweird.f32 %v589
    %vm596 = vmor %vm594, %vm595
    %v597 = vsel %vm596, %v589, %v593
    %v598 = vand.u32 2147483647, %v588
    %vm599 = vcmp.eq.f32.partialorder %v598, 8.507059e+37
    %v600 = vand.u32 %v588, 2147483648
    %v601 = vor.u32 1.1754944e-38, %v600
    %v602 = vsel %vm599, %v601, %v597
    %v603 = vmul.f32 1.0, %v602
    %v604 = vtanh.pop %v544
    %v605 = vxor.u32 %v564, 2147483648
    %v606 = vmul.f32 %v605, 1.442695
    %v607 = vpow.pop %v606
    %v608 = vadd.f32 %v607, 1.0
    %v609 = vrcp.pop %v608
    %v610 = vmul.f32 %v608, %v609
    %v611 = vsub.f32 1.0, %v610
    %v612 = vmul.f32 %v609, %v611
    %v613 = vadd.f32 %v609, %v612
    %vm614 = vweird.f32 %v608
    %vm615 = vweird.f32 %v609
    %vm616 = vmor %vm614, %vm615
    %v617 = vsel %vm616, %v609, %v613
    %v618 = vand.u32 2147483647, %v608
    %vm619 = vcmp.eq.f32.partialorder %v618, 8.507059e+37
    %v620 = vand.u32 %v608, 2147483648
    %v621 = vor.u32 1.1754944e-38, %v620
    %v622 = vsel %vm619, %v621, %v617
    %v623 = vmul.f32 1.0, %v622
    %v624 = vmul.f32 %v603, 0.0
    %v625 = vmul.f32 %v584, %v604
    %v626 = vadd.f32 %v624, %v625
    %v627 = vtanh.pop %v626
    %v628 = vmul.f32 %v623, %v627
    %629 = vst [vmem:[#allocation2] sm:$0xff] %v628
    %s630 = scalar_lea.vmem [#allocation3], 32
    %v631 = vld [vmem:[%s630] sm:$0xff]
    %v632 = vld [vmem:[%s630 + $0x8] sm:$0xff]
    %v633 = vld [vmem:[%s630 + $0x10] sm:$0xff]
    %v634 = vld [vmem:[%s630 + $0x18] sm:$0xff]
    %635 = vmatpush.msra.mxu0 %v272
    %636 = vmatpush.msra.mxu0 %v268
    %637 = vmatpush.msra.mxu0 %v264
    %638 = vmatpush.msra.mxu0 %v260
    %639 = vmatpush.msra.mxu0 %v256
    %640 = vmatpush.msra.mxu0 %v252
    %641 = vmatpush.msra.mxu0 %v248
    %642 = vmatpush.msra.mxu0 %v244
    %643 = vmatpush.msra.mxu0 %v240
    %644 = vmatpush.msra.mxu0 %v236
    %645 = vmatpush.msra.mxu0 %v232
    %646 = vmatpush.msra.mxu0 %v228
    %647 = vmatpush.msra.mxu0 %v224
    %648 = vmatpush.msra.mxu0 %v220
    %649 = vmatpush.msra.mxu0 %v216
    %650 = vmatpush.msra.mxu0 %v212
    %651 = vmatmul.f32.gmra.mxu0 %v628
    %v652 = vpop.f32.mrf.mxu0
    %v653 = vadd.f32 %v631, %v652
    %654 = vdwg.mxu0
    %655 = vmatpush.msra.mxu0 %v273
    %656 = vmatpush.msra.mxu0 %v269
    %657 = vmatpush.msra.mxu0 %v265
    %658 = vmatpush.msra.mxu0 %v261
    %659 = vmatpush.msra.mxu0 %v257
    %660 = vmatpush.msra.mxu0 %v253
    %661 = vmatpush.msra.mxu0 %v249
    %662 = vmatpush.msra.mxu0 %v245
    %663 = vmatpush.msra.mxu0 %v241
    %664 = vmatpush.msra.mxu0 %v237
    %665 = vmatpush.msra.mxu0 %v233
    %666 = vmatpush.msra.mxu0 %v229
    %667 = vmatpush.msra.mxu0 %v225
    %668 = vmatpush.msra.mxu0 %v221
    %669 = vmatpush.msra.mxu0 %v217
    %670 = vmatpush.msra.mxu0 %v213
    %671 = vmatmul.f32.gmra.mxu0 %v628
    %v672 = vpop.f32.mrf.mxu0
    %v673 = vadd.f32 %v632, %v672
    %674 = vdwg.mxu0
    %675 = vmatpush.msra.mxu0 %v274
    %676 = vmatpush.msra.mxu0 %v270
    %677 = vmatpush.msra.mxu0 %v266
    %678 = vmatpush.msra.mxu0 %v262
    %679 = vmatpush.msra.mxu0 %v258
    %680 = vmatpush.msra.mxu0 %v254
    %681 = vmatpush.msra.mxu0 %v250
    %682 = vmatpush.msra.mxu0 %v246
    %683 = vmatpush.msra.mxu0 %v242
    %684 = vmatpush.msra.mxu0 %v238
    %685 = vmatpush.msra.mxu0 %v234
    %686 = vmatpush.msra.mxu0 %v230
    %687 = vmatpush.msra.mxu0 %v226
    %688 = vmatpush.msra.mxu0 %v222
    %689 = vmatpush.msra.mxu0 %v218
    %690 = vmatpush.msra.mxu0 %v214
    %691 = vmatmul.f32.gmra.mxu0 %v628
    %v692 = vpop.f32.mrf.mxu0
    %v693 = vadd.f32 %v633, %v692
    %694 = vdwg.mxu0
    %695 = vmatpush.msra.mxu0 %v275
    %696 = vmatpush.msra.mxu0 %v271
    %697 = vmatpush.msra.mxu0 %v267
    %698 = vmatpush.msra.mxu0 %v263
    %699 = vmatpush.msra.mxu0 %v259
    %700 = vmatpush.msra.mxu0 %v255
    %701 = vmatpush.msra.mxu0 %v251
    %702 = vmatpush.msra.mxu0 %v247
    %703 = vmatpush.msra.mxu0 %v243
    %704 = vmatpush.msra.mxu0 %v239
    %705 = vmatpush.msra.mxu0 %v235
    %706 = vmatpush.msra.mxu0 %v231
    %707 = vmatpush.msra.mxu0 %v227
    %708 = vmatpush.msra.mxu0 %v223
    %709 = vmatpush.msra.mxu0 %v219
    %710 = vmatpush.msra.mxu0 %v215
    %711 = vmatmul.f32.gmra.mxu0 %v628
    %v712 = vpop.f32.mrf.mxu0
    %v713 = vadd.f32 %v634, %v712
    %714 = vdwg.mxu0
    %v715 = vxor.u32 %v653, 2147483648
    %v716 = vmul.f32 %v715, 1.442695
    %v717 = vpow.pop %v716
    %v718 = vadd.f32 %v717, 1.0
    %v719 = vrcp.pop %v718
    %v720 = vmul.f32 %v718, %v719
    %v721 = vsub.f32 1.0, %v720
    %v722 = vmul.f32 %v719, %v721
    %v723 = vadd.f32 %v719, %v722
    %vm724 = vweird.f32 %v718
    %vm725 = vweird.f32 %v719
    %vm726 = vmor %vm724, %vm725
    %v727 = vsel %vm726, %v719, %v723
    %v728 = vand.u32 2147483647, %v718
    %vm729 = vcmp.eq.f32.partialorder %v728, 8.507059e+37
    %v730 = vand.u32 %v718, 2147483648
    %v731 = vor.u32 1.1754944e-38, %v730
    %v732 = vsel %vm729, %v731, %v727
    %v733 = vmul.f32 1.0, %v732
    %v734 = vxor.u32 %v673, 2147483648
    %v735 = vmul.f32 %v734, 1.442695
    %v736 = vpow.pop %v735
    %v737 = vadd.f32 %v736, 1.0
    %v738 = vrcp.pop %v737
    %v739 = vmul.f32 %v737, %v738
    %v740 = vsub.f32 1.0, %v739
    %v741 = vmul.f32 %v738, %v740
    %v742 = vadd.f32 %v738, %v741
    %vm743 = vweird.f32 %v737
    %vm744 = vweird.f32 %v738
    %vm745 = vmor %vm743, %vm744
    %v746 = vsel %vm745, %v738, %v742
    %v747 = vand.u32 2147483647, %v737
    %vm748 = vcmp.eq.f32.partialorder %v747, 8.507059e+37
    %v749 = vand.u32 %v737, 2147483648
    %v750 = vor.u32 1.1754944e-38, %v749
    %v751 = vsel %vm748, %v750, %v746
    %v752 = vmul.f32 1.0, %v751
    %v753 = vtanh.pop %v693
    %v754 = vxor.u32 %v713, 2147483648
    %v755 = vmul.f32 %v754, 1.442695
    %v756 = vpow.pop %v755
    %v757 = vadd.f32 %v756, 1.0
    %v758 = vrcp.pop %v757
    %v759 = vmul.f32 %v757, %v758
    %v760 = vsub.f32 1.0, %v759
    %v761 = vmul.f32 %v758, %v760
    %v762 = vadd.f32 %v758, %v761
    %vm763 = vweird.f32 %v757
    %vm764 = vweird.f32 %v758
    %vm765 = vmor %vm763, %vm764
    %v766 = vsel %vm765, %v758, %v762
    %v767 = vand.u32 2147483647, %v757
    %vm768 = vcmp.eq.f32.partialorder %v767, 8.507059e+37
    %v769 = vand.u32 %v757, 2147483648
    %v770 = vor.u32 1.1754944e-38, %v769
    %v771 = vsel %vm768, %v770, %v766
    %v772 = vmul.f32 1.0, %v771
    %v773 = vmul.f32 %v752, %v626
    %v774 = vmul.f32 %v733, %v753
    %v775 = vadd.f32 %v773, %v774
    %v776 = vtanh.pop %v775
    %v777 = vmul.f32 %v772, %v776
    %s778 = scalar_lea.vmem [#allocation2], 8
    %779 = vst [vmem:[%s778] sm:$0xff] %v777
    %s780 = scalar_lea.vmem [#allocation3], 64
    %v781 = vld [vmem:[%s780] sm:$0xff]
    %v782 = vld [vmem:[%s780 + $0x8] sm:$0xff]
    %v783 = vld [vmem:[%s780 + $0x10] sm:$0xff]
    %v784 = vld [vmem:[%s780 + $0x18] sm:$0xff]
    %785 = vmatpush.msra.mxu0 %v272
    %786 = vmatpush.msra.mxu0 %v268
    %787 = vmatpush.msra.mxu0 %v264
    %788 = vmatpush.msra.mxu0 %v260
    %789 = vmatpush.msra.mxu0 %v256
    %790 = vmatpush.msra.mxu0 %v252
    %791 = vmatpush.msra.mxu0 %v248
    %792 = vmatpush.msra.mxu0 %v244
    %793 = vmatpush.msra.mxu0 %v240
    %794 = vmatpush.msra.mxu0 %v236
    %795 = vmatpush.msra.mxu0 %v232
    %796 = vmatpush.msra.mxu0 %v228
    %797 = vmatpush.msra.mxu0 %v224
    %798 = vmatpush.msra.mxu0 %v220
    %799 = vmatpush.msra.mxu0 %v216
    %800 = vmatpush.msra.mxu0 %v212
    %801 = vmatmul.f32.gmra.mxu0 %v777
    %v802 = vpop.f32.mrf.mxu0
    %v803 = vadd.f32 %v781, %v802
    %804 = vdwg.mxu0
    %805 = vmatpush.msra.mxu0 %v273
    %806 = vmatpush.msra.mxu0 %v269
    %807 = vmatpush.msra.mxu0 %v265
    %808 = vmatpush.msra.mxu0 %v261
    %809 = vmatpush.msra.mxu0 %v257
    %810 = vmatpush.msra.mxu0 %v253
    %811 = vmatpush.msra.mxu0 %v249
    %812 = vmatpush.msra.mxu0 %v245
    %813 = vmatpush.msra.mxu0 %v241
    %814 = vmatpush.msra.mxu0 %v237
    %815 = vmatpush.msra.mxu0 %v233
    %816 = vmatpush.msra.mxu0 %v229
    %817 = vmatpush.msra.mxu0 %v225
    %818 = vmatpush.msra.mxu0 %v221
    %819 = vmatpush.msra.mxu0 %v217
    %820 = vmatpush.msra.mxu0 %v213
    %821 = vmatmul.f32.gmra.mxu0 %v777
    %v822 = vpop.f32.mrf.mxu0
    %v823 = vadd.f32 %v782, %v822
    %824 = vdwg.mxu0
    %825 = vmatpush.msra.mxu0 %v274
    %826 = vmatpush.msra.mxu0 %v270
    %827 = vmatpush.msra.mxu0 %v266
    %828 = vmatpush.msra.mxu0 %v262
    %829 = vmatpush.msra.mxu0 %v258
    %830 = vmatpush.msra.mxu0 %v254
    %831 = vmatpush.msra.mxu0 %v250
    %832 = vmatpush.msra.mxu0 %v246
    %833 = vmatpush.msra.mxu0 %v242
    %834 = vmatpush.msra.mxu0 %v238
    %835 = vmatpush.msra.mxu0 %v234
    %836 = vmatpush.msra.mxu0 %v230
    %837 = vmatpush.msra.mxu0 %v226
    %838 = vmatpush.msra.mxu0 %v222
    %839 = vmatpush.msra.mxu0 %v218
    %840 = vmatpush.msra.mxu0 %v214
    %841 = vmatmul.f32.gmra.mxu0 %v777
    %v842 = vpop.f32.mrf.mxu0
    %v843 = vadd.f32 %v783, %v842
    %844 = vdwg.mxu0
    %845 = vmatpush.msra.mxu0 %v275
    %846 = vmatpush.msra.mxu0 %v271
    %847 = vmatpush.msra.mxu0 %v267
    %848 = vmatpush.msra.mxu0 %v263
    %849 = vmatpush.msra.mxu0 %v259
    %850 = vmatpush.msra.mxu0 %v255
    %851 = vmatpush.msra.mxu0 %v251
    %852 = vmatpush.msra.mxu0 %v247
    %853 = vmatpush.msra.mxu0 %v243
    %854 = vmatpush.msra.mxu0 %v239
    %855 = vmatpush.msra.mxu0 %v235
    %856 = vmatpush.msra.mxu0 %v231
    %857 = vmatpush.msra.mxu0 %v227
    %858 = vmatpush.msra.mxu0 %v223
    %859 = vmatpush.msra.mxu0 %v219
    %860 = vmatpush.msra.mxu0 %v215
    %861 = vmatmul.f32.gmra.mxu0 %v777
    %v862 = vpop.f32.mrf.mxu0
    %v863 = vadd.f32 %v784, %v862
    %864 = vdwg.mxu0
    %v865 = vxor.u32 %v803, 2147483648
    %v866 = vmul.f32 %v865, 1.442695
    %v867 = vpow.pop %v866
    %v868 = vadd.f32 %v867, 1.0
    %v869 = vrcp.pop %v868
    %v870 = vmul.f32 %v868, %v869
    %v871 = vsub.f32 1.0, %v870
    %v872 = vmul.f32 %v869, %v871
    %v873 = vadd.f32 %v869, %v872
    %vm874 = vweird.f32 %v868
    %vm875 = vweird.f32 %v869
    %vm876 = vmor %vm874, %vm875
    %v877 = vsel %vm876, %v869, %v873
    %v878 = vand.u32 2147483647, %v868
    %vm879 = vcmp.eq.f32.partialorder %v878, 8.507059e+37
    %v880 = vand.u32 %v868, 2147483648
    %v881 = vor.u32 1.1754944e-38, %v880
    %v882 = vsel %vm879, %v881, %v877
    %v883 = vmul.f32 1.0, %v882
    %v884 = vxor.u32 %v823, 2147483648
    %v885 = vmul.f32 %v884, 1.442695
    %v886 = vpow.pop %v885
    %v887 = vadd.f32 %v886, 1.0
    %v888 = vrcp.pop %v887
    %v889 = vmul.f32 %v887, %v888
    %v890 = vsub.f32 1.0, %v889
    %v891 = vmul.f32 %v888, %v890
    %v892 = vadd.f32 %v888, %v891
    %vm893 = vweird.f32 %v887
    %vm894 = vweird.f32 %v888
    %vm895 = vmor %vm893, %vm894
    %v896 = vsel %vm895, %v888, %v892
    %v897 = vand.u32 2147483647, %v887
    %vm898 = vcmp.eq.f32.partialorder %v897, 8.507059e+37
    %v899 = vand.u32 %v887, 2147483648
    %v900 = vor.u32 1.1754944e-38, %v899
    %v901 = vsel %vm898, %v900, %v896
    %v902 = vmul.f32 1.0, %v901
    %v903 = vtanh.pop %v843
    %v904 = vxor.u32 %v863, 2147483648
    %v905 = vmul.f32 %v904, 1.442695
    %v906 = vpow.pop %v905
    %v907 = vadd.f32 %v906, 1.0
    %v908 = vrcp.pop %v907
    %v909 = vmul.f32 %v907, %v908
    %v910 = vsub.f32 1.0, %v909
    %v911 = vmul.f32 %v908, %v910
    %v912 = vadd.f32 %v908, %v911
    %vm913 = vweird.f32 %v907
    %vm914 = vweird.f32 %v908
    %vm915 = vmor %vm913, %vm914
    %v916 = vsel %vm915, %v908, %v912
    %v917 = vand.u32 2147483647, %v907
    %vm918 = vcmp.eq.f32.partialorder %v917, 8.507059e+37
    %v919 = vand.u32 %v907, 2147483648
    %v920 = vor.u32 1.1754944e-38, %v919
    %v921 = vsel %vm918, %v920, %v916
    %v922 = vmul.f32 1.0, %v921
    %v923 = vmul.f32 %v902, %v775
    %v924 = vmul.f32 %v883, %v903
    %v925 = vadd.f32 %v923, %v924
    %v926 = vtanh.pop %v925
    %v927 = vmul.f32 %v922, %v926
    %s928 = scalar_lea.vmem [#allocation2], 16
    %929 = vst [vmem:[%s928] sm:$0xff] %v927
    %s930 = scalar_lea.vmem [#allocation3], 96
    %v931 = vld [vmem:[%s930] sm:$0xff]
    %v932 = vld [vmem:[%s930 + $0x8] sm:$0xff]
    %v933 = vld [vmem:[%s930 + $0x10] sm:$0xff]
    %v934 = vld [vmem:[%s930 + $0x18] sm:$0xff]
    %935 = vmatpush.msra.mxu0 %v272
    %936 = vmatpush.msra.mxu0 %v268
    %937 = vmatpush.msra.mxu0 %v264
    %938 = vmatpush.msra.mxu0 %v260
    %939 = vmatpush.msra.mxu0 %v256
    %940 = vmatpush.msra.mxu0 %v252
    %941 = vmatpush.msra.mxu0 %v248
    %942 = vmatpush.msra.mxu0 %v244
    %943 = vmatpush.msra.mxu0 %v240
    %944 = vmatpush.msra.mxu0 %v236
    %945 = vmatpush.msra.mxu0 %v232
    %946 = vmatpush.msra.mxu0 %v228
    %947 = vmatpush.msra.mxu0 %v224
    %948 = vmatpush.msra.mxu0 %v220
    %949 = vmatpush.msra.mxu0 %v216
    %950 = vmatpush.msra.mxu0 %v212
    %951 = vmatmul.f32.gmra.mxu0 %v927
    %v952 = vpop.f32.mrf.mxu0
    %v953 = vadd.f32 %v931, %v952
    %954 = vdwg.mxu0
    %955 = vmatpush.msra.mxu0 %v273
    %956 = vmatpush.msra.mxu0 %v269
    %957 = vmatpush.msra.mxu0 %v265
    %958 = vmatpush.msra.mxu0 %v261
    %959 = vmatpush.msra.mxu0 %v257
    %960 = vmatpush.msra.mxu0 %v253
    %961 = vmatpush.msra.mxu0 %v249
    %962 = vmatpush.msra.mxu0 %v245
    %963 = vmatpush.msra.mxu0 %v241
    %964 = vmatpush.msra.mxu0 %v237
    %965 = vmatpush.msra.mxu0 %v233
    %966 = vmatpush.msra.mxu0 %v229
    %967 = vmatpush.msra.mxu0 %v225
    %968 = vmatpush.msra.mxu0 %v221
    %969 = vmatpush.msra.mxu0 %v217
    %970 = vmatpush.msra.mxu0 %v213
    %971 = vmatmul.f32.gmra.mxu0 %v927
    %v972 = vpop.f32.mrf.mxu0
    %v973 = vadd.f32 %v932, %v972
    %974 = vdwg.mxu0
    %975 = vmatpush.msra.mxu0 %v274
    %976 = vmatpush.msra.mxu0 %v270
    %977 = vmatpush.msra.mxu0 %v266
    %978 = vmatpush.msra.mxu0 %v262
    %979 = vmatpush.msra.mxu0 %v258
    %980 = vmatpush.msra.mxu0 %v254
    %981 = vmatpush.msra.mxu0 %v250
    %982 = vmatpush.msra.mxu0 %v246
    %983 = vmatpush.msra.mxu0 %v242
    %984 = vmatpush.msra.mxu0 %v238
    %985 = vmatpush.msra.mxu0 %v234
    %986 = vmatpush.msra.mxu0 %v230
    %987 = vmatpush.msra.mxu0 %v226
    %988 = vmatpush.msra.mxu0 %v222
    %989 = vmatpush.msra.mxu0 %v218
    %990 = vmatpush.msra.mxu0 %v214
    %991 = vmatmul.f32.gmra.mxu0 %v927
    %v992 = vpop.f32.mrf.mxu0
    %v993 = vadd.f32 %v933, %v992
    %994 = vdwg.mxu0
    %995 = vmatpush.msra.mxu0 %v275
    %996 = vmatpush.msra.mxu0 %v271
    %997 = vmatpush.msra.mxu0 %v267
    %998 = vmatpush.msra.mxu0 %v263
    %999 = vmatpush.msra.mxu0 %v259
    %1000 = vmatpush.msra.mxu0 %v255
    %1001 = vmatpush.msra.mxu0 %v251
    %1002 = vmatpush.msra.mxu0 %v247
    %1003 = vmatpush.msra.mxu0 %v243
    %1004 = vmatpush.msra.mxu0 %v239
    %1005 = vmatpush.msra.mxu0 %v235
    %1006 = vmatpush.msra.mxu0 %v231
    %1007 = vmatpush.msra.mxu0 %v227
    %1008 = vmatpush.msra.mxu0 %v223
    %1009 = vmatpush.msra.mxu0 %v219
    %1010 = vmatpush.msra.mxu0 %v215
    %1011 = vmatmul.f32.gmra.mxu0 %v927
    %v1012 = vpop.f32.mrf.mxu0
    %v1013 = vadd.f32 %v934, %v1012
    %1014 = vdwg.mxu0
    %v1015 = vxor.u32 %v953, 2147483648
    %v1016 = vmul.f32 %v1015, 1.442695
    %v1017 = vpow.pop %v1016
    %v1018 = vadd.f32 %v1017, 1.0
    %v1019 = vrcp.pop %v1018
    %v1020 = vmul.f32 %v1018, %v1019
    %v1021 = vsub.f32 1.0, %v1020
    %v1022 = vmul.f32 %v1019, %v1021
    %v1023 = vadd.f32 %v1019, %v1022
    %vm1024 = vweird.f32 %v1018
    %vm1025 = vweird.f32 %v1019
    %vm1026 = vmor %vm1024, %vm1025
    %v1027 = vsel %vm1026, %v1019, %v1023
    %v1028 = vand.u32 2147483647, %v1018
    %vm1029 = vcmp.eq.f32.partialorder %v1028, 8.507059e+37
    %v1030 = vand.u32 %v1018, 2147483648
    %v1031 = vor.u32 1.1754944e-38, %v1030
    %v1032 = vsel %vm1029, %v1031, %v1027
    %v1033 = vmul.f32 1.0, %v1032
    %v1034 = vxor.u32 %v973, 2147483648
    %v1035 = vmul.f32 %v1034, 1.442695
    %v1036 = vpow.pop %v1035
    %v1037 = vadd.f32 %v1036, 1.0
    %v1038 = vrcp.pop %v1037
    %v1039 = vmul.f32 %v1037, %v1038
    %v1040 = vsub.f32 1.0, %v1039
    %v1041 = vmul.f32 %v1038, %v1040
    %v1042 = vadd.f32 %v1038, %v1041
    %vm1043 = vweird.f32 %v1037
    %vm1044 = vweird.f32 %v1038
    %vm1045 = vmor %vm1043, %vm1044
    %v1046 = vsel %vm1045, %v1038, %v1042
    %v1047 = vand.u32 2147483647, %v1037
    %vm1048 = vcmp.eq.f32.partialorder %v1047, 8.507059e+37
    %v1049 = vand.u32 %v1037, 2147483648
    %v1050 = vor.u32 1.1754944e-38, %v1049
    %v1051 = vsel %vm1048, %v1050, %v1046
    %v1052 = vmul.f32 1.0, %v1051
    %v1053 = vtanh.pop %v993
    %v1054 = vxor.u32 %v1013, 2147483648
    %v1055 = vmul.f32 %v1054, 1.442695
    %v1056 = vpow.pop %v1055
    %v1057 = vadd.f32 %v1056, 1.0
    %v1058 = vrcp.pop %v1057
    %v1059 = vmul.f32 %v1057, %v1058
    %v1060 = vsub.f32 1.0, %v1059
    %v1061 = vmul.f32 %v1058, %v1060
    %v1062 = vadd.f32 %v1058, %v1061
    %vm1063 = vweird.f32 %v1057
    %vm1064 = vweird.f32 %v1058
    %vm1065 = vmor %vm1063, %vm1064
    %v1066 = vsel %vm1065, %v1058, %v1062
    %v1067 = vand.u32 2147483647, %v1057
    %vm1068 = vcmp.eq.f32.partialorder %v1067, 8.507059e+37
    %v1069 = vand.u32 %v1057, 2147483648
    %v1070 = vor.u32 1.1754944e-38, %v1069
    %v1071 = vsel %vm1068, %v1070, %v1066
    %v1072 = vmul.f32 1.0, %v1071
    %v1073 = vmul.f32 %v1052, %v925
    %v1074 = vmul.f32 %v1033, %v1053
    %v1075 = vadd.f32 %v1073, %v1074
    %v1076 = vtanh.pop %v1075
    %v1077 = vmul.f32 %v1072, %v1076
    %s1078 = scalar_lea.vmem [#allocation2], 24
    %1079 = vst [vmem:[%s1078] sm:$0xff] %v1077
    %s1080 = scalar_lea.vmem [#allocation3], 128
    %v1081 = vld [vmem:[%s1080] sm:$0xff]
    %v1082 = vld [vmem:[%s1080 + $0x8] sm:$0xff]
    %v1083 = vld [vmem:[%s1080 + $0x10] sm:$0xff]
    %v1084 = vld [vmem:[%s1080 + $0x18] sm:$0xff]
    %1085 = vmatpush.msra.mxu0 %v272
    %1086 = vmatpush.msra.mxu0 %v268
    %1087 = vmatpush.msra.mxu0 %v264
    %1088 = vmatpush.msra.mxu0 %v260
    %1089 = vmatpush.msra.mxu0 %v256
    %1090 = vmatpush.msra.mxu0 %v252
    %1091 = vmatpush.msra.mxu0 %v248
    %1092 = vmatpush.msra.mxu0 %v244
    %1093 = vmatpush.msra.mxu0 %v240
    %1094 = vmatpush.msra.mxu0 %v236
    %1095 = vmatpush.msra.mxu0 %v232
    %1096 = vmatpush.msra.mxu0 %v228
    %1097 = vmatpush.msra.mxu0 %v224
    %1098 = vmatpush.msra.mxu0 %v220
    %1099 = vmatpush.msra.mxu0 %v216
    %1100 = vmatpush.msra.mxu0 %v212
    %1101 = vmatmul.f32.gmra.mxu0 %v1077
    %v1102 = vpop.f32.mrf.mxu0
    %v1103 = vadd.f32 %v1081, %v1102
    %1104 = vdwg.mxu0
    %1105 = vmatpush.msra.mxu0 %v273
    %1106 = vmatpush.msra.mxu0 %v269
    %1107 = vmatpush.msra.mxu0 %v265
    %1108 = vmatpush.msra.mxu0 %v261
    %1109 = vmatpush.msra.mxu0 %v257
    %1110 = vmatpush.msra.mxu0 %v253
    %1111 = vmatpush.msra.mxu0 %v249
    %1112 = vmatpush.msra.mxu0 %v245
    %1113 = vmatpush.msra.mxu0 %v241
    %1114 = vmatpush.msra.mxu0 %v237
    %1115 = vmatpush.msra.mxu0 %v233
    %1116 = vmatpush.msra.mxu0 %v229
    %1117 = vmatpush.msra.mxu0 %v225
    %1118 = vmatpush.msra.mxu0 %v221
    %1119 = vmatpush.msra.mxu0 %v217
    %1120 = vmatpush.msra.mxu0 %v213
    %1121 = vmatmul.f32.gmra.mxu0 %v1077
    %v1122 = vpop.f32.mrf.mxu0
    %v1123 = vadd.f32 %v1082, %v1122
    %1124 = vdwg.mxu0
    %1125 = vmatpush.msra.mxu0 %v274
    %1126 = vmatpush.msra.mxu0 %v270
    %1127 = vmatpush.msra.mxu0 %v266
    %1128 = vmatpush.msra.mxu0 %v262
    %1129 = vmatpush.msra.mxu0 %v258
    %1130 = vmatpush.msra.mxu0 %v254
    %1131 = vmatpush.msra.mxu0 %v250
    %1132 = vmatpush.msra.mxu0 %v246
    %1133 = vmatpush.msra.mxu0 %v242
    %1134 = vmatpush.msra.mxu0 %v238
    %1135 = vmatpush.msra.mxu0 %v234
    %1136 = vmatpush.msra.mxu0 %v230
    %1137 = vmatpush.msra.mxu0 %v226
    %1138 = vmatpush.msra.mxu0 %v222
    %1139 = vmatpush.msra.mxu0 %v218
    %1140 = vmatpush.msra.mxu0 %v214
    %1141 = vmatmul.f32.gmra.mxu0 %v1077
    %v1142 = vpop.f32.mrf.mxu0
    %v1143 = vadd.f32 %v1083, %v1142
    %1144 = vdwg.mxu0
    %1145 = vmatpush.msra.mxu0 %v275
    %1146 = vmatpush.msra.mxu0 %v271
    %1147 = vmatpush.msra.mxu0 %v267
    %1148 = vmatpush.msra.mxu0 %v263
    %1149 = vmatpush.msra.mxu0 %v259
    %1150 = vmatpush.msra.mxu0 %v255
    %1151 = vmatpush.msra.mxu0 %v251
    %1152 = vmatpush.msra.mxu0 %v247
    %1153 = vmatpush.msra.mxu0 %v243
    %1154 = vmatpush.msra.mxu0 %v239
    %1155 = vmatpush.msra.mxu0 %v235
    %1156 = vmatpush.msra.mxu0 %v231
    %1157 = vmatpush.msra.mxu0 %v227
    %1158 = vmatpush.msra.mxu0 %v223
    %1159 = vmatpush.msra.mxu0 %v219
    %1160 = vmatpush.msra.mxu0 %v215
    %1161 = vmatmul.f32.gmra.mxu0 %v1077
    %v1162 = vpop.f32.mrf.mxu0
    %v1163 = vadd.f32 %v1084, %v1162
    %1164 = vdwg.mxu0
    %v1165 = vxor.u32 %v1103, 2147483648
    %v1166 = vmul.f32 %v1165, 1.442695
    %v1167 = vpow.pop %v1166
    %v1168 = vadd.f32 %v1167, 1.0
    %v1169 = vrcp.pop %v1168
    %v1170 = vmul.f32 %v1168, %v1169
    %v1171 = vsub.f32 1.0, %v1170
    %v1172 = vmul.f32 %v1169, %v1171
    %v1173 = vadd.f32 %v1169, %v1172
    %vm1174 = vweird.f32 %v1168
    %vm1175 = vweird.f32 %v1169
    %vm1176 = vmor %vm1174, %vm1175
    %v1177 = vsel %vm1176, %v1169, %v1173
    %v1178 = vand.u32 2147483647, %v1168
    %vm1179 = vcmp.eq.f32.partialorder %v1178, 8.507059e+37
    %v1180 = vand.u32 %v1168, 2147483648
    %v1181 = vor.u32 1.1754944e-38, %v1180
    %v1182 = vsel %vm1179, %v1181, %v1177
    %v1183 = vmul.f32 1.0, %v1182
    %v1184 = vxor.u32 %v1123, 2147483648
    %v1185 = vmul.f32 %v1184, 1.442695
    %v1186 = vpow.pop %v1185
    %v1187 = vadd.f32 %v1186, 1.0
    %v1188 = vrcp.pop %v1187
    %v1189 = vmul.f32 %v1187, %v1188
    %v1190 = vsub.f32 1.0, %v1189
    %v1191 = vmul.f32 %v1188, %v1190
    %v1192 = vadd.f32 %v1188, %v1191
    %vm1193 = vweird.f32 %v1187
    %vm1194 = vweird.f32 %v1188
    %vm1195 = vmor %vm1193, %vm1194
    %v1196 = vsel %vm1195, %v1188, %v1192
    %v1197 = vand.u32 2147483647, %v1187
    %vm1198 = vcmp.eq.f32.partialorder %v1197, 8.507059e+37
    %v1199 = vand.u32 %v1187, 2147483648
    %v1200 = vor.u32 1.1754944e-38, %v1199
    %v1201 = vsel %vm1198, %v1200, %v1196
    %v1202 = vmul.f32 1.0, %v1201
    %v1203 = vtanh.pop %v1143
    %v1204 = vxor.u32 %v1163, 2147483648
    %v1205 = vmul.f32 %v1204, 1.442695
    %v1206 = vpow.pop %v1205
    %v1207 = vadd.f32 %v1206, 1.0
    %v1208 = vrcp.pop %v1207
    %v1209 = vmul.f32 %v1207, %v1208
    %v1210 = vsub.f32 1.0, %v1209
    %v1211 = vmul.f32 %v1208, %v1210
    %v1212 = vadd.f32 %v1208, %v1211
    %vm1213 = vweird.f32 %v1207
    %vm1214 = vweird.f32 %v1208
    %vm1215 = vmor %vm1213, %vm1214
    %v1216 = vsel %vm1215, %v1208, %v1212
    %v1217 = vand.u32 2147483647, %v1207
    %vm1218 = vcmp.eq.f32.partialorder %v1217, 8.507059e+37
    %v1219 = vand.u32 %v1207, 2147483648
    %v1220 = vor.u32 1.1754944e-38, %v1219
    %v1221 = vsel %vm1218, %v1220, %v1216
    %v1222 = vmul.f32 1.0, %v1221
    %v1223 = vmul.f32 %v1202, %v1075
    %v1224 = vmul.f32 %v1183, %v1203
    %v1225 = vadd.f32 %v1223, %v1224
    %v1226 = vtanh.pop %v1225
    %v1227 = vmul.f32 %v1222, %v1226
    %s1228 = scalar_lea.vmem [#allocation2], 32
    %1229 = vst [vmem:[%s1228] sm:$0xff] %v1227
    %s1230 = scalar_lea.vmem [#allocation3], 160
    %v1231 = vld [vmem:[%s1230] sm:$0xff]
    %v1232 = vld [vmem:[%s1230 + $0x8] sm:$0xff]
    %v1233 = vld [vmem:[%s1230 + $0x10] sm:$0xff]
    %v1234 = vld [vmem:[%s1230 + $0x18] sm:$0xff]
    %1235 = vmatpush.msra.mxu0 %v272
    %1236 = vmatpush.msra.mxu0 %v268
    %1237 = vmatpush.msra.mxu0 %v264
    %1238 = vmatpush.msra.mxu0 %v260
    %1239 = vmatpush.msra.mxu0 %v256
    %1240 = vmatpush.msra.mxu0 %v252
    %1241 = vmatpush.msra.mxu0 %v248
    %1242 = vmatpush.msra.mxu0 %v244
    %1243 = vmatpush.msra.mxu0 %v240
    %1244 = vmatpush.msra.mxu0 %v236
    %1245 = vmatpush.msra.mxu0 %v232
    %1246 = vmatpush.msra.mxu0 %v228
    %1247 = vmatpush.msra.mxu0 %v224
    %1248 = vmatpush.msra.mxu0 %v220
    %1249 = vmatpush.msra.mxu0 %v216
    %1250 = vmatpush.msra.mxu0 %v212
    %1251 = vmatmul.f32.gmra.mxu0 %v1227
    %v1252 = vpop.f32.mrf.mxu0
    %v1253 = vadd.f32 %v1231, %v1252
    %1254 = vdwg.mxu0
    %1255 = vmatpush.msra.mxu0 %v273
    %1256 = vmatpush.msra.mxu0 %v269
    %1257 = vmatpush.msra.mxu0 %v265
    %1258 = vmatpush.msra.mxu0 %v261
    %1259 = vmatpush.msra.mxu0 %v257
    %1260 = vmatpush.msra.mxu0 %v253
    %1261 = vmatpush.msra.mxu0 %v249
    %1262 = vmatpush.msra.mxu0 %v245
    %1263 = vmatpush.msra.mxu0 %v241
    %1264 = vmatpush.msra.mxu0 %v237
    %1265 = vmatpush.msra.mxu0 %v233
    %1266 = vmatpush.msra.mxu0 %v229
    %1267 = vmatpush.msra.mxu0 %v225
    %1268 = vmatpush.msra.mxu0 %v221
    %1269 = vmatpush.msra.mxu0 %v217
    %1270 = vmatpush.msra.mxu0 %v213
    %1271 = vmatmul.f32.gmra.mxu0 %v1227
    %v1272 = vpop.f32.mrf.mxu0
    %v1273 = vadd.f32 %v1232, %v1272
    %1274 = vdwg.mxu0
    %1275 = vmatpush.msra.mxu0 %v274
    %1276 = vmatpush.msra.mxu0 %v270
    %1277 = vmatpush.msra.mxu0 %v266
    %1278 = vmatpush.msra.mxu0 %v262
    %1279 = vmatpush.msra.mxu0 %v258
    %1280 = vmatpush.msra.mxu0 %v254
    %1281 = vmatpush.msra.mxu0 %v250
    %1282 = vmatpush.msra.mxu0 %v246
    %1283 = vmatpush.msra.mxu0 %v242
    %1284 = vmatpush.msra.mxu0 %v238
    %1285 = vmatpush.msra.mxu0 %v234
    %1286 = vmatpush.msra.mxu0 %v230
    %1287 = vmatpush.msra.mxu0 %v226
    %1288 = vmatpush.msra.mxu0 %v222
    %1289 = vmatpush.msra.mxu0 %v218
    %1290 = vmatpush.msra.mxu0 %v214
    %1291 = vmatmul.f32.gmra.mxu0 %v1227
    %v1292 = vpop.f32.mrf.mxu0
    %v1293 = vadd.f32 %v1233, %v1292
    %1294 = vdwg.mxu0
    %1295 = vmatpush.msra.mxu0 %v275
    %1296 = vmatpush.msra.mxu0 %v271
    %1297 = vmatpush.msra.mxu0 %v267
    %1298 = vmatpush.msra.mxu0 %v263
    %1299 = vmatpush.msra.mxu0 %v259
    %1300 = vmatpush.msra.mxu0 %v255
    %1301 = vmatpush.msra.mxu0 %v251
    %1302 = vmatpush.msra.mxu0 %v247
    %1303 = vmatpush.msra.mxu0 %v243
    %1304 = vmatpush.msra.mxu0 %v239
    %1305 = vmatpush.msra.mxu0 %v235
    %1306 = vmatpush.msra.mxu0 %v231
    %1307 = vmatpush.msra.mxu0 %v227
    %1308 = vmatpush.msra.mxu0 %v223
    %1309 = vmatpush.msra.mxu0 %v219
    %1310 = vmatpush.msra.mxu0 %v215
    %1311 = vmatmul.f32.gmra.mxu0 %v1227
    %v1312 = vpop.f32.mrf.mxu0
    %v1313 = vadd.f32 %v1234, %v1312
    %1314 = vdwg.mxu0
    %v1315 = vxor.u32 %v1253, 2147483648
    %v1316 = vmul.f32 %v1315, 1.442695
    %v1317 = vpow.pop %v1316
    %v1318 = vadd.f32 %v1317, 1.0
    %v1319 = vrcp.pop %v1318
    %v1320 = vmul.f32 %v1318, %v1319
    %v1321 = vsub.f32 1.0, %v1320
    %v1322 = vmul.f32 %v1319, %v1321
    %v1323 = vadd.f32 %v1319, %v1322
    %vm1324 = vweird.f32 %v1318
    %vm1325 = vweird.f32 %v1319
    %vm1326 = vmor %vm1324, %vm1325
    %v1327 = vsel %vm1326, %v1319, %v1323
    %v1328 = vand.u32 2147483647, %v1318
    %vm1329 = vcmp.eq.f32.partialorder %v1328, 8.507059e+37
    %v1330 = vand.u32 %v1318, 2147483648
    %v1331 = vor.u32 1.1754944e-38, %v1330
    %v1332 = vsel %vm1329, %v1331, %v1327
    %v1333 = vmul.f32 1.0, %v1332
    %v1334 = vxor.u32 %v1273, 2147483648
    %v1335 = vmul.f32 %v1334, 1.442695
    %v1336 = vpow.pop %v1335
    %v1337 = vadd.f32 %v1336, 1.0
    %v1338 = vrcp.pop %v1337
    %v1339 = vmul.f32 %v1337, %v1338
    %v1340 = vsub.f32 1.0, %v1339
    %v1341 = vmul.f32 %v1338, %v1340
    %v1342 = vadd.f32 %v1338, %v1341
    %vm1343 = vweird.f32 %v1337
    %vm1344 = vweird.f32 %v1338
    %vm1345 = vmor %vm1343, %vm1344
    %v1346 = vsel %vm1345, %v1338, %v1342
    %v1347 = vand.u32 2147483647, %v1337
    %vm1348 = vcmp.eq.f32.partialorder %v1347, 8.507059e+37
    %v1349 = vand.u32 %v1337, 2147483648
    %v1350 = vor.u32 1.1754944e-38, %v1349
    %v1351 = vsel %vm1348, %v1350, %v1346
    %v1352 = vmul.f32 1.0, %v1351
    %v1353 = vtanh.pop %v1293
    %v1354 = vxor.u32 %v1313, 2147483648
    %v1355 = vmul.f32 %v1354, 1.442695
    %v1356 = vpow.pop %v1355
    %v1357 = vadd.f32 %v1356, 1.0
    %v1358 = vrcp.pop %v1357
    %v1359 = vmul.f32 %v1357, %v1358
    %v1360 = vsub.f32 1.0, %v1359
    %v1361 = vmul.f32 %v1358, %v1360
    %v1362 = vadd.f32 %v1358, %v1361
    %vm1363 = vweird.f32 %v1357
    %vm1364 = vweird.f32 %v1358
    %vm1365 = vmor %vm1363, %vm1364
    %v1366 = vsel %vm1365, %v1358, %v1362
    %v1367 = vand.u32 2147483647, %v1357
    %vm1368 = vcmp.eq.f32.partialorder %v1367, 8.507059e+37
    %v1369 = vand.u32 %v1357, 2147483648
    %v1370 = vor.u32 1.1754944e-38, %v1369
    %v1371 = vsel %vm1368, %v1370, %v1366
    %v1372 = vmul.f32 1.0, %v1371
    %v1373 = vmul.f32 %v1352, %v1225
    %v1374 = vmul.f32 %v1333, %v1353
    %v1375 = vadd.f32 %v1373, %v1374
    %v1376 = vtanh.pop %v1375
    %v1377 = vmul.f32 %v1372, %v1376
    %s1378 = scalar_lea.vmem [#allocation2], 40
    %1379 = vst [vmem:[%s1378] sm:$0xff] %v1377
    %s1380 = scalar_lea.vmem [#allocation3], 192
    %v1381 = vld [vmem:[%s1380] sm:$0xff]
    %v1382 = vld [vmem:[%s1380 + $0x8] sm:$0xff]
    %v1383 = vld [vmem:[%s1380 + $0x10] sm:$0xff]
    %v1384 = vld [vmem:[%s1380 + $0x18] sm:$0xff]
    %1385 = vmatpush.msra.mxu0 %v272
    %1386 = vmatpush.msra.mxu0 %v268
    %1387 = vmatpush.msra.mxu0 %v264
    %1388 = vmatpush.msra.mxu0 %v260
    %1389 = vmatpush.msra.mxu0 %v256
    %1390 = vmatpush.msra.mxu0 %v252
    %1391 = vmatpush.msra.mxu0 %v248
    %1392 = vmatpush.msra.mxu0 %v244
    %1393 = vmatpush.msra.mxu0 %v240
    %1394 = vmatpush.msra.mxu0 %v236
    %1395 = vmatpush.msra.mxu0 %v232
    %1396 = vmatpush.msra.mxu0 %v228
    %1397 = vmatpush.msra.mxu0 %v224
    %1398 = vmatpush.msra.mxu0 %v220
    %1399 = vmatpush.msra.mxu0 %v216
    %1400 = vmatpush.msra.mxu0 %v212
    %1401 = vmatmul.f32.gmra.mxu0 %v1377
    %v1402 = vpop.f32.mrf.mxu0
    %v1403 = vadd.f32 %v1381, %v1402
    %1404 = vdwg.mxu0
    %1405 = vmatpush.msra.mxu0 %v273
    %1406 = vmatpush.msra.mxu0 %v269
    %1407 = vmatpush.msra.mxu0 %v265
    %1408 = vmatpush.msra.mxu0 %v261
    %1409 = vmatpush.msra.mxu0 %v257
    %1410 = vmatpush.msra.mxu0 %v253
    %1411 = vmatpush.msra.mxu0 %v249
    %1412 = vmatpush.msra.mxu0 %v245
    %1413 = vmatpush.msra.mxu0 %v241
    %1414 = vmatpush.msra.mxu0 %v237
    %1415 = vmatpush.msra.mxu0 %v233
    %1416 = vmatpush.msra.mxu0 %v229
    %1417 = vmatpush.msra.mxu0 %v225
    %1418 = vmatpush.msra.mxu0 %v221
    %1419 = vmatpush.msra.mxu0 %v217
    %1420 = vmatpush.msra.mxu0 %v213
    %1421 = vmatmul.f32.gmra.mxu0 %v1377
    %v1422 = vpop.f32.mrf.mxu0
    %v1423 = vadd.f32 %v1382, %v1422
    %1424 = vdwg.mxu0
    %1425 = vmatpush.msra.mxu0 %v274
    %1426 = vmatpush.msra.mxu0 %v270
    %1427 = vmatpush.msra.mxu0 %v266
    %1428 = vmatpush.msra.mxu0 %v262
    %1429 = vmatpush.msra.mxu0 %v258
    %1430 = vmatpush.msra.mxu0 %v254
    %1431 = vmatpush.msra.mxu0 %v250
    %1432 = vmatpush.msra.mxu0 %v246
    %1433 = vmatpush.msra.mxu0 %v242
    %1434 = vmatpush.msra.mxu0 %v238
    %1435 = vmatpush.msra.mxu0 %v234
    %1436 = vmatpush.msra.mxu0 %v230
    %1437 = vmatpush.msra.mxu0 %v226
    %1438 = vmatpush.msra.mxu0 %v222
    %1439 = vmatpush.msra.mxu0 %v218
    %1440 = vmatpush.msra.mxu0 %v214
    %1441 = vmatmul.f32.gmra.mxu0 %v1377
    %v1442 = vpop.f32.mrf.mxu0
    %v1443 = vadd.f32 %v1383, %v1442
    %1444 = vdwg.mxu0
    %1445 = vmatpush.msra.mxu0 %v275
    %1446 = vmatpush.msra.mxu0 %v271
    %1447 = vmatpush.msra.mxu0 %v267
    %1448 = vmatpush.msra.mxu0 %v263
    %1449 = vmatpush.msra.mxu0 %v259
    %1450 = vmatpush.msra.mxu0 %v255
    %1451 = vmatpush.msra.mxu0 %v251
    %1452 = vmatpush.msra.mxu0 %v247
    %1453 = vmatpush.msra.mxu0 %v243
    %1454 = vmatpush.msra.mxu0 %v239
    %1455 = vmatpush.msra.mxu0 %v235
    %1456 = vmatpush.msra.mxu0 %v231
    %1457 = vmatpush.msra.mxu0 %v227
    %1458 = vmatpush.msra.mxu0 %v223
    %1459 = vmatpush.msra.mxu0 %v219
    %1460 = vmatpush.msra.mxu0 %v215
    %1461 = vmatmul.f32.gmra.mxu0 %v1377
    %v1462 = vpop.f32.mrf.mxu0
    %v1463 = vadd.f32 %v1384, %v1462
    %1464 = vdwg.mxu0
    %v1465 = vxor.u32 %v1403, 2147483648
    %v1466 = vmul.f32 %v1465, 1.442695
    %v1467 = vpow.pop %v1466
    %v1468 = vadd.f32 %v1467, 1.0
    %v1469 = vrcp.pop %v1468
    %v1470 = vmul.f32 %v1468, %v1469
    %v1471 = vsub.f32 1.0, %v1470
    %v1472 = vmul.f32 %v1469, %v1471
    %v1473 = vadd.f32 %v1469, %v1472
    %vm1474 = vweird.f32 %v1468
    %vm1475 = vweird.f32 %v1469
    %vm1476 = vmor %vm1474, %vm1475
    %v1477 = vsel %vm1476, %v1469, %v1473
    %v1478 = vand.u32 2147483647, %v1468
    %vm1479 = vcmp.eq.f32.partialorder %v1478, 8.507059e+37
    %v1480 = vand.u32 %v1468, 2147483648
    %v1481 = vor.u32 1.1754944e-38, %v1480
    %v1482 = vsel %vm1479, %v1481, %v1477
    %v1483 = vmul.f32 1.0, %v1482
    %v1484 = vxor.u32 %v1423, 2147483648
    %v1485 = vmul.f32 %v1484, 1.442695
    %v1486 = vpow.pop %v1485
    %v1487 = vadd.f32 %v1486, 1.0
    %v1488 = vrcp.pop %v1487
    %v1489 = vmul.f32 %v1487, %v1488
    %v1490 = vsub.f32 1.0, %v1489
    %v1491 = vmul.f32 %v1488, %v1490
    %v1492 = vadd.f32 %v1488, %v1491
    %vm1493 = vweird.f32 %v1487
    %vm1494 = vweird.f32 %v1488
    %vm1495 = vmor %vm1493, %vm1494
    %v1496 = vsel %vm1495, %v1488, %v1492
    %v1497 = vand.u32 2147483647, %v1487
    %vm1498 = vcmp.eq.f32.partialorder %v1497, 8.507059e+37
    %v1499 = vand.u32 %v1487, 2147483648
    %v1500 = vor.u32 1.1754944e-38, %v1499
    %v1501 = vsel %vm1498, %v1500, %v1496
    %v1502 = vmul.f32 1.0, %v1501
    %v1503 = vtanh.pop %v1443
    %v1504 = vxor.u32 %v1463, 2147483648
    %v1505 = vmul.f32 %v1504, 1.442695
    %v1506 = vpow.pop %v1505
    %v1507 = vadd.f32 %v1506, 1.0
    %v1508 = vrcp.pop %v1507
    %v1509 = vmul.f32 %v1507, %v1508
    %v1510 = vsub.f32 1.0, %v1509
    %v1511 = vmul.f32 %v1508, %v1510
    %v1512 = vadd.f32 %v1508, %v1511
    %vm1513 = vweird.f32 %v1507
    %vm1514 = vweird.f32 %v1508
    %vm1515 = vmor %vm1513, %vm1514
    %v1516 = vsel %vm1515, %v1508, %v1512
    %v1517 = vand.u32 2147483647, %v1507
    %vm1518 = vcmp.eq.f32.partialorder %v1517, 8.507059e+37
    %v1519 = vand.u32 %v1507, 2147483648
    %v1520 = vor.u32 1.1754944e-38, %v1519
    %v1521 = vsel %vm1518, %v1520, %v1516
    %v1522 = vmul.f32 1.0, %v1521
    %v1523 = vmul.f32 %v1502, %v1375
    %v1524 = vmul.f32 %v1483, %v1503
    %v1525 = vadd.f32 %v1523, %v1524
    %v1526 = vtanh.pop %v1525
    %v1527 = vmul.f32 %v1522, %v1526
    %s1528 = scalar_lea.vmem [#allocation2], 48
    %1529 = vst [vmem:[%s1528] sm:$0xff] %v1527
    %s1530 = scalar_lea.vmem [#allocation3], 224
    %v1531 = vld [vmem:[%s1530] sm:$0xff]
    %v1532 = vld [vmem:[%s1530 + $0x8] sm:$0xff]
    %v1533 = vld [vmem:[%s1530 + $0x10] sm:$0xff]
    %v1534 = vld [vmem:[%s1530 + $0x18] sm:$0xff]
    %1535 = vmatpush.msra.mxu0 %v272
    %1536 = vmatpush.msra.mxu0 %v268
    %1537 = vmatpush.msra.mxu0 %v264
    %1538 = vmatpush.msra.mxu0 %v260
    %1539 = vmatpush.msra.mxu0 %v256
    %1540 = vmatpush.msra.mxu0 %v252
    %1541 = vmatpush.msra.mxu0 %v248
    %1542 = vmatpush.msra.mxu0 %v244
    %1543 = vmatpush.msra.mxu0 %v240
    %1544 = vmatpush.msra.mxu0 %v236
    %1545 = vmatpush.msra.mxu0 %v232
    %1546 = vmatpush.msra.mxu0 %v228
    %1547 = vmatpush.msra.mxu0 %v224
    %1548 = vmatpush.msra.mxu0 %v220
    %1549 = vmatpush.msra.mxu0 %v216
    %1550 = vmatpush.msra.mxu0 %v212
    %1551 = vmatmul.f32.gmra.mxu0 %v1527
    %v1552 = vpop.f32.mrf.mxu0
    %v1553 = vadd.f32 %v1531, %v1552
    %1554 = vdwg.mxu0
    %1555 = vmatpush.msra.mxu0 %v273
    %1556 = vmatpush.msra.mxu0 %v269
    %1557 = vmatpush.msra.mxu0 %v265
    %1558 = vmatpush.msra.mxu0 %v261
    %1559 = vmatpush.msra.mxu0 %v257
    %1560 = vmatpush.msra.mxu0 %v253
    %1561 = vmatpush.msra.mxu0 %v249
    %1562 = vmatpush.msra.mxu0 %v245
    %1563 = vmatpush.msra.mxu0 %v241
    %1564 = vmatpush.msra.mxu0 %v237
    %1565 = vmatpush.msra.mxu0 %v233
    %1566 = vmatpush.msra.mxu0 %v229
    %1567 = vmatpush.msra.mxu0 %v225
    %1568 = vmatpush.msra.mxu0 %v221
    %1569 = vmatpush.msra.mxu0 %v217
    %1570 = vmatpush.msra.mxu0 %v213
    %1571 = vmatmul.f32.gmra.mxu0 %v1527
    %v1572 = vpop.f32.mrf.mxu0
    %v1573 = vadd.f32 %v1532, %v1572
    %1574 = vdwg.mxu0
    %1575 = vmatpush.msra.mxu0 %v274
    %1576 = vmatpush.msra.mxu0 %v270
    %1577 = vmatpush.msra.mxu0 %v266
    %1578 = vmatpush.msra.mxu0 %v262
    %1579 = vmatpush.msra.mxu0 %v258
    %1580 = vmatpush.msra.mxu0 %v254
    %1581 = vmatpush.msra.mxu0 %v250
    %1582 = vmatpush.msra.mxu0 %v246
    %1583 = vmatpush.msra.mxu0 %v242
    %1584 = vmatpush.msra.mxu0 %v238
    %1585 = vmatpush.msra.mxu0 %v234
    %1586 = vmatpush.msra.mxu0 %v230
    %1587 = vmatpush.msra.mxu0 %v226
    %1588 = vmatpush.msra.mxu0 %v222
    %1589 = vmatpush.msra.mxu0 %v218
    %1590 = vmatpush.msra.mxu0 %v214
    %1591 = vmatmul.f32.gmra.mxu0 %v1527
    %v1592 = vpop.f32.mrf.mxu0
    %v1593 = vadd.f32 %v1533, %v1592
    %1594 = vdwg.mxu0
    %1595 = vmatpush.msra.mxu0 %v275
    %1596 = vmatpush.msra.mxu0 %v271
    %1597 = vmatpush.msra.mxu0 %v267
    %1598 = vmatpush.msra.mxu0 %v263
    %1599 = vmatpush.msra.mxu0 %v259
    %1600 = vmatpush.msra.mxu0 %v255
    %1601 = vmatpush.msra.mxu0 %v251
    %1602 = vmatpush.msra.mxu0 %v247
    %1603 = vmatpush.msra.mxu0 %v243
    %1604 = vmatpush.msra.mxu0 %v239
    %1605 = vmatpush.msra.mxu0 %v235
    %1606 = vmatpush.msra.mxu0 %v231
    %1607 = vmatpush.msra.mxu0 %v227
    %1608 = vmatpush.msra.mxu0 %v223
    %1609 = vmatpush.msra.mxu0 %v219
    %1610 = vmatpush.msra.mxu0 %v215
    %1611 = vmatmul.f32.gmra.mxu0 %v1527
    %v1612 = vpop.f32.mrf.mxu0
    %v1613 = vadd.f32 %v1534, %v1612
    %1614 = vdwg.mxu0
    %v1615 = vxor.u32 %v1553, 2147483648
    %v1616 = vmul.f32 %v1615, 1.442695
    %v1617 = vpow.pop %v1616
    %v1618 = vadd.f32 %v1617, 1.0
    %v1619 = vrcp.pop %v1618
    %v1620 = vmul.f32 %v1618, %v1619
    %v1621 = vsub.f32 1.0, %v1620
    %v1622 = vmul.f32 %v1619, %v1621
    %v1623 = vadd.f32 %v1619, %v1622
    %vm1624 = vweird.f32 %v1618
    %vm1625 = vweird.f32 %v1619
    %vm1626 = vmor %vm1624, %vm1625
    %v1627 = vsel %vm1626, %v1619, %v1623
    %v1628 = vand.u32 2147483647, %v1618
    %vm1629 = vcmp.eq.f32.partialorder %v1628, 8.507059e+37
    %v1630 = vand.u32 %v1618, 2147483648
    %v1631 = vor.u32 1.1754944e-38, %v1630
    %v1632 = vsel %vm1629, %v1631, %v1627
    %v1633 = vmul.f32 1.0, %v1632
    %v1634 = vxor.u32 %v1573, 2147483648
    %v1635 = vmul.f32 %v1634, 1.442695
    %v1636 = vpow.pop %v1635
    %v1637 = vadd.f32 %v1636, 1.0
    %v1638 = vrcp.pop %v1637
    %v1639 = vmul.f32 %v1637, %v1638
    %v1640 = vsub.f32 1.0, %v1639
    %v1641 = vmul.f32 %v1638, %v1640
    %v1642 = vadd.f32 %v1638, %v1641
    %vm1643 = vweird.f32 %v1637
    %vm1644 = vweird.f32 %v1638
    %vm1645 = vmor %vm1643, %vm1644
    %v1646 = vsel %vm1645, %v1638, %v1642
    %v1647 = vand.u32 2147483647, %v1637
    %vm1648 = vcmp.eq.f32.partialorder %v1647, 8.507059e+37
    %v1649 = vand.u32 %v1637, 2147483648
    %v1650 = vor.u32 1.1754944e-38, %v1649
    %v1651 = vsel %vm1648, %v1650, %v1646
    %v1652 = vmul.f32 1.0, %v1651
    %v1653 = vtanh.pop %v1593
    %v1654 = vxor.u32 %v1613, 2147483648
    %v1655 = vmul.f32 %v1654, 1.442695
    %v1656 = vpow.pop %v1655
    %v1657 = vadd.f32 %v1656, 1.0
    %v1658 = vrcp.pop %v1657
    %v1659 = vmul.f32 %v1657, %v1658
    %v1660 = vsub.f32 1.0, %v1659
    %v1661 = vmul.f32 %v1658, %v1660
    %v1662 = vadd.f32 %v1658, %v1661
    %vm1663 = vweird.f32 %v1657
    %vm1664 = vweird.f32 %v1658
    %vm1665 = vmor %vm1663, %vm1664
    %v1666 = vsel %vm1665, %v1658, %v1662
    %v1667 = vand.u32 2147483647, %v1657
    %vm1668 = vcmp.eq.f32.partialorder %v1667, 8.507059e+37
    %v1669 = vand.u32 %v1657, 2147483648
    %v1670 = vor.u32 1.1754944e-38, %v1669
    %v1671 = vsel %vm1668, %v1670, %v1666
    %v1672 = vmul.f32 1.0, %v1671
    %v1673 = vmul.f32 %v1652, %v1525
    %v1674 = vmul.f32 %v1633, %v1653
    %v1675 = vadd.f32 %v1673, %v1674
    %v1676 = vtanh.pop %v1675
    %v1677 = vmul.f32 %v1672, %v1676
    %s1678 = scalar_lea.vmem [#allocation2], 56
    %1679 = vst [vmem:[%s1678] sm:$0xff] %v1677
    %v1680 = vld [vmem:[#allocation2] sm:$0xff]
    %v1681 = vld [vmem:[#allocation2 + $0x8] sm:$0xff]
    %v1682 = vld [vmem:[#allocation2 + $0x10] sm:$0xff]
    %v1683 = vld [vmem:[#allocation2 + $0x18] sm:$0xff]
    %v1684 = vld [vmem:[#allocation2 + $0x20] sm:$0xff]
    %v1685 = vld [vmem:[#allocation2 + $0x28] sm:$0xff]
    %v1686 = vld [vmem:[#allocation2 + $0x30] sm:$0xff]
    %v1687 = vld [vmem:[#allocation2 + $0x38] sm:$0xff]
    %v1688 = vld [vmem:[#allocation12] sm:$0xff]
    %v1689 = vld [vmem:[#allocation12 + $0x8] sm:$0xff]
    %v1690 = vld [vmem:[#allocation12 + $0x10] sm:$0xff]
    %v1691 = vld [vmem:[#allocation12 + $0x18] sm:$0xff]
    %v1692 = vld [vmem:[#allocation12 + $0x20] sm:$0xff]
    %v1693 = vld [vmem:[#allocation12 + $0x28] sm:$0xff]
    %v1694 = vld [vmem:[#allocation12 + $0x30] sm:$0xff]
    %v1695 = vld [vmem:[#allocation12 + $0x38] sm:$0xff]
    %v1696 = vld [vmem:[#allocation12 + $0x40] sm:$0xff]
    %v1697 = vld [vmem:[#allocation12 + $0x48] sm:$0xff]
    %v1698 = vld [vmem:[#allocation12 + $0x50] sm:$0xff]
    %v1699 = vld [vmem:[#allocation12 + $0x58] sm:$0xff]
    %v1700 = vld [vmem:[#allocation12 + $0x60] sm:$0xff]
    %v1701 = vld [vmem:[#allocation12 + $0x68] sm:$0xff]
    %v1702 = vld [vmem:[#allocation12 + $0x70] sm:$0xff]
    %v1703 = vld [vmem:[#allocation12 + $0x78] sm:$0xff]
    %v1704 = vld [vmem:[#allocation12 + $0x80] sm:$0xff]
    %v1705 = vld [vmem:[#allocation12 + $0x88] sm:$0xff]
    %v1706 = vld [vmem:[#allocation12 + $0x90] sm:$0xff]
    %v1707 = vld [vmem:[#allocation12 + $0x98] sm:$0xff]
    %v1708 = vld [vmem:[#allocation12 + $0xa0] sm:$0xff]
    %v1709 = vld [vmem:[#allocation12 + $0xa8] sm:$0xff]
    %v1710 = vld [vmem:[#allocation12 + $0xb0] sm:$0xff]
    %v1711 = vld [vmem:[#allocation12 + $0xb8] sm:$0xff]
    %v1712 = vld [vmem:[#allocation12 + $0xc0] sm:$0xff]
    %v1713 = vld [vmem:[#allocation12 + $0xc8] sm:$0xff]
    %v1714 = vld [vmem:[#allocation12 + $0xd0] sm:$0xff]
    %v1715 = vld [vmem:[#allocation12 + $0xd8] sm:$0xff]
    %v1716 = vld [vmem:[#allocation12 + $0xe0] sm:$0xff]
    %v1717 = vld [vmem:[#allocation12 + $0xe8] sm:$0xff]
    %v1718 = vld [vmem:[#allocation12 + $0xf0] sm:$0xff]
    %v1719 = vld [vmem:[#allocation12 + $0xf8] sm:$0xff]
    %v1720 = vld [vmem:[#allocation12 + $0x100] sm:$0xff]
    %v1721 = vld [vmem:[#allocation12 + $0x108] sm:$0xff]
    %v1722 = vld [vmem:[#allocation12 + $0x110] sm:$0xff]
    %v1723 = vld [vmem:[#allocation12 + $0x118] sm:$0xff]
    %v1724 = vld [vmem:[#allocation12 + $0x120] sm:$0xff]
    %v1725 = vld [vmem:[#allocation12 + $0x128] sm:$0xff]
    %v1726 = vld [vmem:[#allocation12 + $0x130] sm:$0xff]
    %v1727 = vld [vmem:[#allocation12 + $0x138] sm:$0xff]
    %v1728 = vld [vmem:[#allocation12 + $0x140] sm:$0xff]
    %v1729 = vld [vmem:[#allocation12 + $0x148] sm:$0xff]
    %v1730 = vld [vmem:[#allocation12 + $0x150] sm:$0xff]
    %v1731 = vld [vmem:[#allocation12 + $0x158] sm:$0xff]
    %v1732 = vld [vmem:[#allocation12 + $0x160] sm:$0xff]
    %v1733 = vld [vmem:[#allocation12 + $0x168] sm:$0xff]
    %v1734 = vld [vmem:[#allocation12 + $0x170] sm:$0xff]
    %v1735 = vld [vmem:[#allocation12 + $0x178] sm:$0xff]
    %v1736 = vld [vmem:[#allocation12 + $0x180] sm:$0xff]
    %v1737 = vld [vmem:[#allocation12 + $0x188] sm:$0xff]
    %v1738 = vld [vmem:[#allocation12 + $0x190] sm:$0xff]
    %v1739 = vld [vmem:[#allocation12 + $0x198] sm:$0xff]
    %v1740 = vld [vmem:[#allocation12 + $0x1a0] sm:$0xff]
    %v1741 = vld [vmem:[#allocation12 + $0x1a8] sm:$0xff]
    %v1742 = vld [vmem:[#allocation12 + $0x1b0] sm:$0xff]
    %v1743 = vld [vmem:[#allocation12 + $0x1b8] sm:$0xff]
    %v1744 = vld [vmem:[#allocation12 + $0x1c0] sm:$0xff]
    %v1745 = vld [vmem:[#allocation12 + $0x1c8] sm:$0xff]
    %v1746 = vld [vmem:[#allocation12 + $0x1d0] sm:$0xff]
    %v1747 = vld [vmem:[#allocation12 + $0x1d8] sm:$0xff]
    %v1748 = vld [vmem:[#allocation12 + $0x1e0] sm:$0xff]
    %v1749 = vld [vmem:[#allocation12 + $0x1e8] sm:$0xff]
    %v1750 = vld [vmem:[#allocation12 + $0x1f0] sm:$0xff]
    %v1751 = vld [vmem:[#allocation12 + $0x1f8] sm:$0xff]
    %v1752 = vld [vmem:[#allocation13] sm:$0xff]
    %v1753 = vld [vmem:[#allocation13 + $0x8] sm:$0xff]
    %v1754 = vld [vmem:[#allocation13 + $0x10] sm:$0xff]
    %v1755 = vld [vmem:[#allocation13 + $0x18] sm:$0xff]
    %v1756 = vld [vmem:[#allocation13 + $0x20] sm:$0xff]
    %v1757 = vld [vmem:[#allocation13 + $0x28] sm:$0xff]
    %v1758 = vld [vmem:[#allocation13 + $0x30] sm:$0xff]
    %v1759 = vld [vmem:[#allocation13 + $0x38] sm:$0xff]
    %v1760 = vld [vmem:[#allocation13 + $0x40] sm:$0xff]
    %v1761 = vld [vmem:[#allocation13 + $0x48] sm:$0xff]
    %v1762 = vld [vmem:[#allocation13 + $0x50] sm:$0xff]
    %v1763 = vld [vmem:[#allocation13 + $0x58] sm:$0xff]
    %v1764 = vld [vmem:[#allocation13 + $0x60] sm:$0xff]
    %v1765 = vld [vmem:[#allocation13 + $0x68] sm:$0xff]
    %v1766 = vld [vmem:[#allocation13 + $0x70] sm:$0xff]
    %v1767 = vld [vmem:[#allocation13 + $0x78] sm:$0xff]
    %v1768 = vld [vmem:[#allocation13 + $0x80] sm:$0xff]
    %v1769 = vld [vmem:[#allocation13 + $0x88] sm:$0xff]
    %v1770 = vld [vmem:[#allocation13 + $0x90] sm:$0xff]
    %v1771 = vld [vmem:[#allocation13 + $0x98] sm:$0xff]
    %v1772 = vld [vmem:[#allocation13 + $0xa0] sm:$0xff]
    %v1773 = vld [vmem:[#allocation13 + $0xa8] sm:$0xff]
    %v1774 = vld [vmem:[#allocation13 + $0xb0] sm:$0xff]
    %v1775 = vld [vmem:[#allocation13 + $0xb8] sm:$0xff]
    %v1776 = vld [vmem:[#allocation13 + $0xc0] sm:$0xff]
    %v1777 = vld [vmem:[#allocation13 + $0xc8] sm:$0xff]
    %v1778 = vld [vmem:[#allocation13 + $0xd0] sm:$0xff]
    %v1779 = vld [vmem:[#allocation13 + $0xd8] sm:$0xff]
    %v1780 = vld [vmem:[#allocation13 + $0xe0] sm:$0xff]
    %v1781 = vld [vmem:[#allocation13 + $0xe8] sm:$0xff]
    %v1782 = vld [vmem:[#allocation13 + $0xf0] sm:$0xff]
    %v1783 = vld [vmem:[#allocation13 + $0xf8] sm:$0xff]
    %v1784 = vld [vmem:[#allocation13 + $0x100] sm:$0xff]
    %v1785 = vld [vmem:[#allocation13 + $0x108] sm:$0xff]
    %v1786 = vld [vmem:[#allocation13 + $0x110] sm:$0xff]
    %v1787 = vld [vmem:[#allocation13 + $0x118] sm:$0xff]
    %v1788 = vld [vmem:[#allocation13 + $0x120] sm:$0xff]
    %v1789 = vld [vmem:[#allocation13 + $0x128] sm:$0xff]
    %v1790 = vld [vmem:[#allocation13 + $0x130] sm:$0xff]
    %v1791 = vld [vmem:[#allocation13 + $0x138] sm:$0xff]
    %v1792 = vld [vmem:[#allocation13 + $0x140] sm:$0xff]
    %v1793 = vld [vmem:[#allocation13 + $0x148] sm:$0xff]
    %v1794 = vld [vmem:[#allocation13 + $0x150] sm:$0xff]
    %v1795 = vld [vmem:[#allocation13 + $0x158] sm:$0xff]
    %v1796 = vld [vmem:[#allocation13 + $0x160] sm:$0xff]
    %v1797 = vld [vmem:[#allocation13 + $0x168] sm:$0xff]
    %v1798 = vld [vmem:[#allocation13 + $0x170] sm:$0xff]
    %v1799 = vld [vmem:[#allocation13 + $0x178] sm:$0xff]
    %v1800 = vld [vmem:[#allocation13 + $0x180] sm:$0xff]
    %v1801 = vld [vmem:[#allocation13 + $0x188] sm:$0xff]
    %v1802 = vld [vmem:[#allocation13 + $0x190] sm:$0xff]
    %v1803 = vld [vmem:[#allocation13 + $0x198] sm:$0xff]
    %v1804 = vld [vmem:[#allocation13 + $0x1a0] sm:$0xff]
    %v1805 = vld [vmem:[#allocation13 + $0x1a8] sm:$0xff]
    %v1806 = vld [vmem:[#allocation13 + $0x1b0] sm:$0xff]
    %v1807 = vld [vmem:[#allocation13 + $0x1b8] sm:$0xff]
    %v1808 = vld [vmem:[#allocation13 + $0x1c0] sm:$0xff]
    %v1809 = vld [vmem:[#allocation13 + $0x1c8] sm:$0xff]
    %v1810 = vld [vmem:[#allocation13 + $0x1d0] sm:$0xff]
    %v1811 = vld [vmem:[#allocation13 + $0x1d8] sm:$0xff]
    %v1812 = vld [vmem:[#allocation13 + $0x1e0] sm:$0xff]
    %v1813 = vld [vmem:[#allocation13 + $0x1e8] sm:$0xff]
    %v1814 = vld [vmem:[#allocation13 + $0x1f0] sm:$0xff]
    %v1815 = vld [vmem:[#allocation13 + $0x1f8] sm:$0xff]
    %v1816 = vld [vmem:[%s6] sm:$0xf]
    %v1818 = vperm.slane %v1816, 0
    %v1819 = vperm.slane %v1816, 1
    %v1820 = vperm.slane %v1816, 2
    %v1821 = vperm.slane %v1816, 3
    %1826 = vmatpush.msra.mxu0 %v1748
    %1827 = vmatpush.msra.mxu0 %v1744
    %1828 = vmatpush.msra.mxu0 %v1740
    %1829 = vmatpush.msra.mxu0 %v1736
    %1830 = vmatpush.msra.mxu0 %v1732
    %1831 = vmatpush.msra.mxu0 %v1728
    %1832 = vmatpush.msra.mxu0 %v1724
    %1833 = vmatpush.msra.mxu0 %v1720
    %1834 = vmatpush.msra.mxu0 %v1716
    %1835 = vmatpush.msra.mxu0 %v1712
    %1836 = vmatpush.msra.mxu0 %v1708
    %1837 = vmatpush.msra.mxu0 %v1704
    %1838 = vmatpush.msra.mxu0 %v1700
    %1839 = vmatpush.msra.mxu0 %v1696
    %1840 = vmatpush.msra.mxu0 %v1692
    %1841 = vmatpush.msra.mxu0 %v1688
    %1842 = vmatmul.f32.gmra.mxu0 %v1680
    %v1843 = vpop.f32.mrf.mxu0
    %v1844 = vadd.f32 %v1818, %v1843
    %1845 = vmatmul.f32.gmra.mxu0 %v1681
    %v1846 = vpop.f32.mrf.mxu0
    %v1847 = vadd.f32 %v1818, %v1846
    %1848 = vmatmul.f32.gmra.mxu0 %v1682
    %v1849 = vpop.f32.mrf.mxu0
    %v1850 = vadd.f32 %v1818, %v1849
    %1851 = vmatmul.f32.gmra.mxu0 %v1683
    %v1852 = vpop.f32.mrf.mxu0
    %v1853 = vadd.f32 %v1818, %v1852
    %1854 = vmatmul.f32.gmra.mxu0 %v1684
    %v1855 = vpop.f32.mrf.mxu0
    %v1856 = vadd.f32 %v1818, %v1855
    %1857 = vmatmul.f32.gmra.mxu0 %v1685
    %v1858 = vpop.f32.mrf.mxu0
    %v1859 = vadd.f32 %v1818, %v1858
    %1860 = vmatmul.f32.gmra.mxu0 %v1686
    %v1861 = vpop.f32.mrf.mxu0
    %v1862 = vadd.f32 %v1818, %v1861
    %1863 = vmatmul.f32.gmra.mxu0 %v1687
    %v1864 = vpop.f32.mrf.mxu0
    %v1865 = vadd.f32 %v1818, %v1864
    %1866 = vdwg.mxu0
    %1867 = vmatpush.msra.mxu0 %v1749
    %1868 = vmatpush.msra.mxu0 %v1745
    %1869 = vmatpush.msra.mxu0 %v1741
    %1870 = vmatpush.msra.mxu0 %v1737
    %1871 = vmatpush.msra.mxu0 %v1733
    %1872 = vmatpush.msra.mxu0 %v1729
    %1873 = vmatpush.msra.mxu0 %v1725
    %1874 = vmatpush.msra.mxu0 %v1721
    %1875 = vmatpush.msra.mxu0 %v1717
    %1876 = vmatpush.msra.mxu0 %v1713
    %1877 = vmatpush.msra.mxu0 %v1709
    %1878 = vmatpush.msra.mxu0 %v1705
    %1879 = vmatpush.msra.mxu0 %v1701
    %1880 = vmatpush.msra.mxu0 %v1697
    %1881 = vmatpush.msra.mxu0 %v1693
    %1882 = vmatpush.msra.mxu0 %v1689
    %1883 = vmatmul.f32.gmra.mxu0 %v1680
    %v1884 = vpop.f32.mrf.mxu0
    %v1885 = vadd.f32 %v1819, %v1884
    %1886 = vmatmul.f32.gmra.mxu0 %v1681
    %v1887 = vpop.f32.mrf.mxu0
    %v1888 = vadd.f32 %v1819, %v1887
    %1889 = vmatmul.f32.gmra.mxu0 %v1682
    %v1890 = vpop.f32.mrf.mxu0
    %v1891 = vadd.f32 %v1819, %v1890
    %1892 = vmatmul.f32.gmra.mxu0 %v1683
    %v1893 = vpop.f32.mrf.mxu0
    %v1894 = vadd.f32 %v1819, %v1893
    %1895 = vmatmul.f32.gmra.mxu0 %v1684
    %v1896 = vpop.f32.mrf.mxu0
    %v1897 = vadd.f32 %v1819, %v1896
    %1898 = vmatmul.f32.gmra.mxu0 %v1685
    %v1899 = vpop.f32.mrf.mxu0
    %v1900 = vadd.f32 %v1819, %v1899
    %1901 = vmatmul.f32.gmra.mxu0 %v1686
    %v1902 = vpop.f32.mrf.mxu0
    %v1903 = vadd.f32 %v1819, %v1902
    %1904 = vmatmul.f32.gmra.mxu0 %v1687
    %v1905 = vpop.f32.mrf.mxu0
    %v1906 = vadd.f32 %v1819, %v1905
    %1907 = vdwg.mxu0
    %1908 = vmatpush.msra.mxu0 %v1750
    %1909 = vmatpush.msra.mxu0 %v1746
    %1910 = vmatpush.msra.mxu0 %v1742
    %1911 = vmatpush.msra.mxu0 %v1738
    %1912 = vmatpush.msra.mxu0 %v1734
    %1913 = vmatpush.msra.mxu0 %v1730
    %1914 = vmatpush.msra.mxu0 %v1726
    %1915 = vmatpush.msra.mxu0 %v1722
    %1916 = vmatpush.msra.mxu0 %v1718
    %1917 = vmatpush.msra.mxu0 %v1714
    %1918 = vmatpush.msra.mxu0 %v1710
    %1919 = vmatpush.msra.mxu0 %v1706
    %1920 = vmatpush.msra.mxu0 %v1702
    %1921 = vmatpush.msra.mxu0 %v1698
    %1922 = vmatpush.msra.mxu0 %v1694
    %1923 = vmatpush.msra.mxu0 %v1690
    %1924 = vmatmul.f32.gmra.mxu0 %v1680
    %v1925 = vpop.f32.mrf.mxu0
    %v1926 = vadd.f32 %v1820, %v1925
    %1927 = vmatmul.f32.gmra.mxu0 %v1681
    %v1928 = vpop.f32.mrf.mxu0
    %v1929 = vadd.f32 %v1820, %v1928
    %1930 = vmatmul.f32.gmra.mxu0 %v1682
    %v1931 = vpop.f32.mrf.mxu0
    %v1932 = vadd.f32 %v1820, %v1931
    %1933 = vmatmul.f32.gmra.mxu0 %v1683
    %v1934 = vpop.f32.mrf.mxu0
    %v1935 = vadd.f32 %v1820, %v1934
    %1936 = vmatmul.f32.gmra.mxu0 %v1684
    %v1937 = vpop.f32.mrf.mxu0
    %v1938 = vadd.f32 %v1820, %v1937
    %1939 = vmatmul.f32.gmra.mxu0 %v1685
    %v1940 = vpop.f32.mrf.mxu0
    %v1941 = vadd.f32 %v1820, %v1940
    %1942 = vmatmul.f32.gmra.mxu0 %v1686
    %v1943 = vpop.f32.mrf.mxu0
    %v1944 = vadd.f32 %v1820, %v1943
    %1945 = vmatmul.f32.gmra.mxu0 %v1687
    %v1946 = vpop.f32.mrf.mxu0
    %v1947 = vadd.f32 %v1820, %v1946
    %1948 = vdwg.mxu0
    %1949 = vmatpush.msra.mxu0 %v1751
    %1950 = vmatpush.msra.mxu0 %v1747
    %1951 = vmatpush.msra.mxu0 %v1743
    %1952 = vmatpush.msra.mxu0 %v1739
    %1953 = vmatpush.msra.mxu0 %v1735
    %1954 = vmatpush.msra.mxu0 %v1731
    %1955 = vmatpush.msra.mxu0 %v1727
    %1956 = vmatpush.msra.mxu0 %v1723
    %1957 = vmatpush.msra.mxu0 %v1719
    %1958 = vmatpush.msra.mxu0 %v1715
    %1959 = vmatpush.msra.mxu0 %v1711
    %1960 = vmatpush.msra.mxu0 %v1707
    %1961 = vmatpush.msra.mxu0 %v1703
    %1962 = vmatpush.msra.mxu0 %v1699
    %1963 = vmatpush.msra.mxu0 %v1695
    %1964 = vmatpush.msra.mxu0 %v1691
    %1965 = vmatmul.f32.gmra.mxu0 %v1680
    %v1966 = vpop.f32.mrf.mxu0
    %v1967 = vadd.f32 %v1821, %v1966
    %1968 = vmatmul.f32.gmra.mxu0 %v1681
    %v1969 = vpop.f32.mrf.mxu0
    %v1970 = vadd.f32 %v1821, %v1969
    %1971 = vmatmul.f32.gmra.mxu0 %v1682
    %v1972 = vpop.f32.mrf.mxu0
    %v1973 = vadd.f32 %v1821, %v1972
    %1974 = vmatmul.f32.gmra.mxu0 %v1683
    %v1975 = vpop.f32.mrf.mxu0
    %v1976 = vadd.f32 %v1821, %v1975
    %1977 = vmatmul.f32.gmra.mxu0 %v1684
    %v1978 = vpop.f32.mrf.mxu0
    %v1979 = vadd.f32 %v1821, %v1978
    %1980 = vmatmul.f32.gmra.mxu0 %v1685
    %v1981 = vpop.f32.mrf.mxu0
    %v1982 = vadd.f32 %v1821, %v1981
    %1983 = vmatmul.f32.gmra.mxu0 %v1686
    %v1984 = vpop.f32.mrf.mxu0
    %v1985 = vadd.f32 %v1821, %v1984
    %1986 = vmatmul.f32.gmra.mxu0 %v1687
    %v1987 = vpop.f32.mrf.mxu0
    %v1988 = vadd.f32 %v1821, %v1987
    %1989 = vdwg.mxu0
    %1990 = vst [vmem:[#allocation3] sm:$0xff] %v1844
    %1991 = vst [vmem:[#allocation3 + $0x8] sm:$0xff] %v1885
    %1992 = vst [vmem:[#allocation3 + $0x10] sm:$0xff] %v1926
    %1993 = vst [vmem:[#allocation3 + $0x18] sm:$0xff] %v1967
    %1994 = vst [vmem:[#allocation3 + $0x20] sm:$0xff] %v1847
    %1995 = vst [vmem:[#allocation3 + $0x28] sm:$0xff] %v1888
    %1996 = vst [vmem:[#allocation3 + $0x30] sm:$0xff] %v1929
    %1997 = vst [vmem:[#allocation3 + $0x38] sm:$0xff] %v1970
    %1998 = vst [vmem:[#allocation3 + $0x40] sm:$0xff] %v1850
    %1999 = vst [vmem:[#allocation3 + $0x48] sm:$0xff] %v1891
    %2000 = vst [vmem:[#allocation3 + $0x50] sm:$0xff] %v1932
    %2001 = vst [vmem:[#allocation3 + $0x58] sm:$0xff] %v1973
    %2002 = vst [vmem:[#allocation3 + $0x60] sm:$0xff] %v1853
    %2003 = vst [vmem:[#allocation3 + $0x68] sm:$0xff] %v1894
    %2004 = vst [vmem:[#allocation3 + $0x70] sm:$0xff] %v1935
    %2005 = vst [vmem:[#allocation3 + $0x78] sm:$0xff] %v1976
    %2006 = vst [vmem:[#allocation3 + $0x80] sm:$0xff] %v1856
    %2007 = vst [vmem:[#allocation3 + $0x88] sm:$0xff] %v1897
    %2008 = vst [vmem:[#allocation3 + $0x90] sm:$0xff] %v1938
    %2009 = vst [vmem:[#allocation3 + $0x98] sm:$0xff] %v1979
    %2010 = vst [vmem:[#allocation3 + $0xa0] sm:$0xff] %v1859
    %2011 = vst [vmem:[#allocation3 + $0xa8] sm:$0xff] %v1900
    %2012 = vst [vmem:[#allocation3 + $0xb0] sm:$0xff] %v1941
    %2013 = vst [vmem:[#allocation3 + $0xb8] sm:$0xff] %v1982
    %2014 = vst [vmem:[#allocation3 + $0xc0] sm:$0xff] %v1862
    %2015 = vst [vmem:[#allocation3 + $0xc8] sm:$0xff] %v1903
    %2016 = vst [vmem:[#allocation3 + $0xd0] sm:$0xff] %v1944
    %2017 = vst [vmem:[#allocation3 + $0xd8] sm:$0xff] %v1985
    %2018 = vst [vmem:[#allocation3 + $0xe0] sm:$0xff] %v1865
    %2019 = vst [vmem:[#allocation3 + $0xe8] sm:$0xff] %v1906
    %2020 = vst [vmem:[#allocation3 + $0xf0] sm:$0xff] %v1947
    %2021 = vst [vmem:[#allocation3 + $0xf8] sm:$0xff] %v1988
    %v2022 = vld [vmem:[#allocation3] sm:$0xff]
    %v2023 = vld [vmem:[#allocation3 + $0x8] sm:$0xff]
    %v2024 = vld [vmem:[#allocation3 + $0x10] sm:$0xff]
    %v2025 = vld [vmem:[#allocation3 + $0x18] sm:$0xff]
    %2026 = vmatpush.msra.mxu0 %v1812
    %2027 = vmatpush.msra.mxu0 %v1808
    %2028 = vmatpush.msra.mxu0 %v1804
    %2029 = vmatpush.msra.mxu0 %v1800
    %2030 = vmatpush.msra.mxu0 %v1796
    %2031 = vmatpush.msra.mxu0 %v1792
    %2032 = vmatpush.msra.mxu0 %v1788
    %2033 = vmatpush.msra.mxu0 %v1784
    %2034 = vmatpush.msra.mxu0 %v1780
    %2035 = vmatpush.msra.mxu0 %v1776
    %2036 = vmatpush.msra.mxu0 %v1772
    %2037 = vmatpush.msra.mxu0 %v1768
    %2038 = vmatpush.msra.mxu0 %v1764
    %2039 = vmatpush.msra.mxu0 %v1760
    %2040 = vmatpush.msra.mxu0 %v1756
    %2041 = vmatpush.msra.mxu0 %v1752
    %2042 = vmatmul.f32.gmra.mxu0 0.0
    %v2043 = vpop.f32.mrf.mxu0
    %v2044 = vadd.f32 %v2022, %v2043
    %2045 = vdwg.mxu0
    %2046 = vmatpush.msra.mxu0 %v1813
    %2047 = vmatpush.msra.mxu0 %v1809
    %2048 = vmatpush.msra.mxu0 %v1805
    %2049 = vmatpush.msra.mxu0 %v1801
    %2050 = vmatpush.msra.mxu0 %v1797
    %2051 = vmatpush.msra.mxu0 %v1793
    %2052 = vmatpush.msra.mxu0 %v1789
    %2053 = vmatpush.msra.mxu0 %v1785
    %2054 = vmatpush.msra.mxu0 %v1781
    %2055 = vmatpush.msra.mxu0 %v1777
    %2056 = vmatpush.msra.mxu0 %v1773
    %2057 = vmatpush.msra.mxu0 %v1769
    %2058 = vmatpush.msra.mxu0 %v1765
    %2059 = vmatpush.msra.mxu0 %v1761
    %2060 = vmatpush.msra.mxu0 %v1757
    %2061 = vmatpush.msra.mxu0 %v1753
    %2062 = vmatmul.f32.gmra.mxu0 0.0
    %v2063 = vpop.f32.mrf.mxu0
    %v2064 = vadd.f32 %v2023, %v2063
    %2065 = vdwg.mxu0
    %2066 = vmatpush.msra.mxu0 %v1814
    %2067 = vmatpush.msra.mxu0 %v1810
    %2068 = vmatpush.msra.mxu0 %v1806
    %2069 = vmatpush.msra.mxu0 %v1802
    %2070 = vmatpush.msra.mxu0 %v1798
    %2071 = vmatpush.msra.mxu0 %v1794
    %2072 = vmatpush.msra.mxu0 %v1790
    %2073 = vmatpush.msra.mxu0 %v1786
    %2074 = vmatpush.msra.mxu0 %v1782
    %2075 = vmatpush.msra.mxu0 %v1778
    %2076 = vmatpush.msra.mxu0 %v1774
    %2077 = vmatpush.msra.mxu0 %v1770
    %2078 = vmatpush.msra.mxu0 %v1766
    %2079 = vmatpush.msra.mxu0 %v1762
    %2080 = vmatpush.msra.mxu0 %v1758
    %2081 = vmatpush.msra.mxu0 %v1754
    %2082 = vmatmul.f32.gmra.mxu0 0.0
    %v2083 = vpop.f32.mrf.mxu0
    %v2084 = vadd.f32 %v2024, %v2083
    %2085 = vdwg.mxu0
    %2086 = vmatpush.msra.mxu0 %v1815
    %2087 = vmatpush.msra.mxu0 %v1811
    %2088 = vmatpush.msra.mxu0 %v1807
    %2089 = vmatpush.msra.mxu0 %v1803
    %2090 = vmatpush.msra.mxu0 %v1799
    %2091 = vmatpush.msra.mxu0 %v1795
    %2092 = vmatpush.msra.mxu0 %v1791
    %2093 = vmatpush.msra.mxu0 %v1787
    %2094 = vmatpush.msra.mxu0 %v1783
    %2095 = vmatpush.msra.mxu0 %v1779
    %2096 = vmatpush.msra.mxu0 %v1775
    %2097 = vmatpush.msra.mxu0 %v1771
    %2098 = vmatpush.msra.mxu0 %v1767
    %2099 = vmatpush.msra.mxu0 %v1763
    %2100 = vmatpush.msra.mxu0 %v1759
    %2101 = vmatpush.msra.mxu0 %v1755
    %2102 = vmatmul.f32.gmra.mxu0 0.0
    %v2103 = vpop.f32.mrf.mxu0
    %v2104 = vadd.f32 %v2025, %v2103
    %2105 = vdwg.mxu0
    %v2106 = vxor.u32 %v2044, 2147483648
    %v2107 = vmul.f32 %v2106, 1.442695
    %v2108 = vpow.pop %v2107
    %v2109 = vadd.f32 %v2108, 1.0
    %v2110 = vrcp.pop %v2109
    %v2111 = vmul.f32 %v2109, %v2110
    %v2112 = vsub.f32 1.0, %v2111
    %v2113 = vmul.f32 %v2110, %v2112
    %v2114 = vadd.f32 %v2110, %v2113
    %vm2115 = vweird.f32 %v2109
    %vm2116 = vweird.f32 %v2110
    %vm2117 = vmor %vm2115, %vm2116
    %v2118 = vsel %vm2117, %v2110, %v2114
    %v2119 = vand.u32 2147483647, %v2109
    %vm2120 = vcmp.eq.f32.partialorder %v2119, 8.507059e+37
    %v2121 = vand.u32 %v2109, 2147483648
    %v2122 = vor.u32 1.1754944e-38, %v2121
    %v2123 = vsel %vm2120, %v2122, %v2118
    %v2124 = vmul.f32 1.0, %v2123
    %v2125 = vxor.u32 %v2064, 2147483648
    %v2126 = vmul.f32 %v2125, 1.442695
    %v2127 = vpow.pop %v2126
    %v2128 = vadd.f32 %v2127, 1.0
    %v2129 = vrcp.pop %v2128
    %v2130 = vmul.f32 %v2128, %v2129
    %v2131 = vsub.f32 1.0, %v2130
    %v2132 = vmul.f32 %v2129, %v2131
    %v2133 = vadd.f32 %v2129, %v2132
    %vm2134 = vweird.f32 %v2128
    %vm2135 = vweird.f32 %v2129
    %vm2136 = vmor %vm2134, %vm2135
    %v2137 = vsel %vm2136, %v2129, %v2133
    %v2138 = vand.u32 2147483647, %v2128
    %vm2139 = vcmp.eq.f32.partialorder %v2138, 8.507059e+37
    %v2140 = vand.u32 %v2128, 2147483648
    %v2141 = vor.u32 1.1754944e-38, %v2140
    %v2142 = vsel %vm2139, %v2141, %v2137
    %v2143 = vmul.f32 1.0, %v2142
    %v2144 = vtanh.pop %v2084
    %v2145 = vxor.u32 %v2104, 2147483648
    %v2146 = vmul.f32 %v2145, 1.442695
    %v2147 = vpow.pop %v2146
    %v2148 = vadd.f32 %v2147, 1.0
    %v2149 = vrcp.pop %v2148
    %v2150 = vmul.f32 %v2148, %v2149
    %v2151 = vsub.f32 1.0, %v2150
    %v2152 = vmul.f32 %v2149, %v2151
    %v2153 = vadd.f32 %v2149, %v2152
    %vm2154 = vweird.f32 %v2148
    %vm2155 = vweird.f32 %v2149
    %vm2156 = vmor %vm2154, %vm2155
    %v2157 = vsel %vm2156, %v2149, %v2153
    %v2158 = vand.u32 2147483647, %v2148
    %vm2159 = vcmp.eq.f32.partialorder %v2158, 8.507059e+37
    %v2160 = vand.u32 %v2148, 2147483648
    %v2161 = vor.u32 1.1754944e-38, %v2160
    %v2162 = vsel %vm2159, %v2161, %v2157
    %v2163 = vmul.f32 1.0, %v2162
    %v2164 = vmul.f32 %v2143, 0.0
    %v2165 = vmul.f32 %v2124, %v2144
    %v2166 = vadd.f32 %v2164, %v2165
    %v2167 = vtanh.pop %v2166
    %v2168 = vmul.f32 %v2163, %v2167
    %2169 = vst [vmem:[#allocation2] sm:$0xff] %v2168
    %v2170 = vld [vmem:[%s630] sm:$0xff]
    %v2171 = vld [vmem:[%s630 + $0x8] sm:$0xff]
    %v2172 = vld [vmem:[%s630 + $0x10] sm:$0xff]
    %v2173 = vld [vmem:[%s630 + $0x18] sm:$0xff]
    %2174 = vmatpush.msra.mxu0 %v1812
    %2175 = vmatpush.msra.mxu0 %v1808
    %2176 = vmatpush.msra.mxu0 %v1804
    %2177 = vmatpush.msra.mxu0 %v1800
    %2178 = vmatpush.msra.mxu0 %v1796
    %2179 = vmatpush.msra.mxu0 %v1792
    %2180 = vmatpush.msra.mxu0 %v1788
    %2181 = vmatpush.msra.mxu0 %v1784
    %2182 = vmatpush.msra.mxu0 %v1780
    %2183 = vmatpush.msra.mxu0 %v1776
    %2184 = vmatpush.msra.mxu0 %v1772
    %2185 = vmatpush.msra.mxu0 %v1768
    %2186 = vmatpush.msra.mxu0 %v1764
    %2187 = vmatpush.msra.mxu0 %v1760
    %2188 = vmatpush.msra.mxu0 %v1756
    %2189 = vmatpush.msra.mxu0 %v1752
    %2190 = vmatmul.f32.gmra.mxu0 %v2168
    %v2191 = vpop.f32.mrf.mxu0
    %v2192 = vadd.f32 %v2170, %v2191
    %2193 = vdwg.mxu0
    %2194 = vmatpush.msra.mxu0 %v1813
    %2195 = vmatpush.msra.mxu0 %v1809
    %2196 = vmatpush.msra.mxu0 %v1805
    %2197 = vmatpush.msra.mxu0 %v1801
    %2198 = vmatpush.msra.mxu0 %v1797
    %2199 = vmatpush.msra.mxu0 %v1793
    %2200 = vmatpush.msra.mxu0 %v1789
    %2201 = vmatpush.msra.mxu0 %v1785
    %2202 = vmatpush.msra.mxu0 %v1781
    %2203 = vmatpush.msra.mxu0 %v1777
    %2204 = vmatpush.msra.mxu0 %v1773
    %2205 = vmatpush.msra.mxu0 %v1769
    %2206 = vmatpush.msra.mxu0 %v1765
    %2207 = vmatpush.msra.mxu0 %v1761
    %2208 = vmatpush.msra.mxu0 %v1757
    %2209 = vmatpush.msra.mxu0 %v1753
    %2210 = vmatmul.f32.gmra.mxu0 %v2168
    %v2211 = vpop.f32.mrf.mxu0
    %v2212 = vadd.f32 %v2171, %v2211
    %2213 = vdwg.mxu0
    %2214 = vmatpush.msra.mxu0 %v1814
    %2215 = vmatpush.msra.mxu0 %v1810
    %2216 = vmatpush.msra.mxu0 %v1806
    %2217 = vmatpush.msra.mxu0 %v1802
    %2218 = vmatpush.msra.mxu0 %v1798
    %2219 = vmatpush.msra.mxu0 %v1794
    %2220 = vmatpush.msra.mxu0 %v1790
    %2221 = vmatpush.msra.mxu0 %v1786
    %2222 = vmatpush.msra.mxu0 %v1782
    %2223 = vmatpush.msra.mxu0 %v1778
    %2224 = vmatpush.msra.mxu0 %v1774
    %2225 = vmatpush.msra.mxu0 %v1770
    %2226 = vmatpush.msra.mxu0 %v1766
    %2227 = vmatpush.msra.mxu0 %v1762
    %2228 = vmatpush.msra.mxu0 %v1758
    %2229 = vmatpush.msra.mxu0 %v1754
    %2230 = vmatmul.f32.gmra.mxu0 %v2168
    %v2231 = vpop.f32.mrf.mxu0
    %v2232 = vadd.f32 %v2172, %v2231
    %2233 = vdwg.mxu0
    %2234 = vmatpush.msra.mxu0 %v1815
    %2235 = vmatpush.msra.mxu0 %v1811
    %2236 = vmatpush.msra.mxu0 %v1807
    %2237 = vmatpush.msra.mxu0 %v1803
    %2238 = vmatpush.msra.mxu0 %v1799
    %2239 = vmatpush.msra.mxu0 %v1795
    %2240 = vmatpush.msra.mxu0 %v1791
    %2241 = vmatpush.msra.mxu0 %v1787
    %2242 = vmatpush.msra.mxu0 %v1783
    %2243 = vmatpush.msra.mxu0 %v1779
    %2244 = vmatpush.msra.mxu0 %v1775
    %2245 = vmatpush.msra.mxu0 %v1771
    %2246 = vmatpush.msra.mxu0 %v1767
    %2247 = vmatpush.msra.mxu0 %v1763
    %2248 = vmatpush.msra.mxu0 %v1759
    %2249 = vmatpush.msra.mxu0 %v1755
    %2250 = vmatmul.f32.gmra.mxu0 %v2168
    %v2251 = vpop.f32.mrf.mxu0
    %v2252 = vadd.f32 %v2173, %v2251
    %2253 = vdwg.mxu0
    %v2254 = vxor.u32 %v2192, 2147483648
    %v2255 = vmul.f32 %v2254, 1.442695
    %v2256 = vpow.pop %v2255
    %v2257 = vadd.f32 %v2256, 1.0
    %v2258 = vrcp.pop %v2257
    %v2259 = vmul.f32 %v2257, %v2258
    %v2260 = vsub.f32 1.0, %v2259
    %v2261 = vmul.f32 %v2258, %v2260
    %v2262 = vadd.f32 %v2258, %v2261
    %vm2263 = vweird.f32 %v2257
    %vm2264 = vweird.f32 %v2258
    %vm2265 = vmor %vm2263, %vm2264
    %v2266 = vsel %vm2265, %v2258, %v2262
    %v2267 = vand.u32 2147483647, %v2257
    %vm2268 = vcmp.eq.f32.partialorder %v2267, 8.507059e+37
    %v2269 = vand.u32 %v2257, 2147483648
    %v2270 = vor.u32 1.1754944e-38, %v2269
    %v2271 = vsel %vm2268, %v2270, %v2266
    %v2272 = vmul.f32 1.0, %v2271
    %v2273 = vxor.u32 %v2212, 2147483648
    %v2274 = vmul.f32 %v2273, 1.442695
    %v2275 = vpow.pop %v2274
    %v2276 = vadd.f32 %v2275, 1.0
    %v2277 = vrcp.pop %v2276
    %v2278 = vmul.f32 %v2276, %v2277
    %v2279 = vsub.f32 1.0, %v2278
    %v2280 = vmul.f32 %v2277, %v2279
    %v2281 = vadd.f32 %v2277, %v2280
    %vm2282 = vweird.f32 %v2276
    %vm2283 = vweird.f32 %v2277
    %vm2284 = vmor %vm2282, %vm2283
    %v2285 = vsel %vm2284, %v2277, %v2281
    %v2286 = vand.u32 2147483647, %v2276
    %vm2287 = vcmp.eq.f32.partialorder %v2286, 8.507059e+37
    %v2288 = vand.u32 %v2276, 2147483648
    %v2289 = vor.u32 1.1754944e-38, %v2288
    %v2290 = vsel %vm2287, %v2289, %v2285
    %v2291 = vmul.f32 1.0, %v2290
    %v2292 = vtanh.pop %v2232
    %v2293 = vxor.u32 %v2252, 2147483648
    %v2294 = vmul.f32 %v2293, 1.442695
    %v2295 = vpow.pop %v2294
    %v2296 = vadd.f32 %v2295, 1.0
    %v2297 = vrcp.pop %v2296
    %v2298 = vmul.f32 %v2296, %v2297
    %v2299 = vsub.f32 1.0, %v2298
    %v2300 = vmul.f32 %v2297, %v2299
    %v2301 = vadd.f32 %v2297, %v2300
    %vm2302 = vweird.f32 %v2296
    %vm2303 = vweird.f32 %v2297
    %vm2304 = vmor %vm2302, %vm2303
    %v2305 = vsel %vm2304, %v2297, %v2301
    %v2306 = vand.u32 2147483647, %v2296
    %vm2307 = vcmp.eq.f32.partialorder %v2306, 8.507059e+37
    %v2308 = vand.u32 %v2296, 2147483648
    %v2309 = vor.u32 1.1754944e-38, %v2308
    %v2310 = vsel %vm2307, %v2309, %v2305
    %v2311 = vmul.f32 1.0, %v2310
    %v2312 = vmul.f32 %v2291, %v2166
    %v2313 = vmul.f32 %v2272, %v2292
    %v2314 = vadd.f32 %v2312, %v2313
    %v2315 = vtanh.pop %v2314
    %v2316 = vmul.f32 %v2311, %v2315
    %2317 = vst [vmem:[%s778] sm:$0xff] %v2316
    %v2318 = vld [vmem:[%s780] sm:$0xff]
    %v2319 = vld [vmem:[%s780 + $0x8] sm:$0xff]
    %v2320 = vld [vmem:[%s780 + $0x10] sm:$0xff]
    %v2321 = vld [vmem:[%s780 + $0x18] sm:$0xff]
    %2322 = vmatpush.msra.mxu0 %v1812
    %2323 = vmatpush.msra.mxu0 %v1808
    %2324 = vmatpush.msra.mxu0 %v1804
    %2325 = vmatpush.msra.mxu0 %v1800
    %2326 = vmatpush.msra.mxu0 %v1796
    %2327 = vmatpush.msra.mxu0 %v1792
    %2328 = vmatpush.msra.mxu0 %v1788
    %2329 = vmatpush.msra.mxu0 %v1784
    %2330 = vmatpush.msra.mxu0 %v1780
    %2331 = vmatpush.msra.mxu0 %v1776
    %2332 = vmatpush.msra.mxu0 %v1772
    %2333 = vmatpush.msra.mxu0 %v1768
    %2334 = vmatpush.msra.mxu0 %v1764
    %2335 = vmatpush.msra.mxu0 %v1760
    %2336 = vmatpush.msra.mxu0 %v1756
    %2337 = vmatpush.msra.mxu0 %v1752
    %2338 = vmatmul.f32.gmra.mxu0 %v2316
    %v2339 = vpop.f32.mrf.mxu0
    %v2340 = vadd.f32 %v2318, %v2339
    %2341 = vdwg.mxu0
    %2342 = vmatpush.msra.mxu0 %v1813
    %2343 = vmatpush.msra.mxu0 %v1809
    %2344 = vmatpush.msra.mxu0 %v1805
    %2345 = vmatpush.msra.mxu0 %v1801
    %2346 = vmatpush.msra.mxu0 %v1797
    %2347 = vmatpush.msra.mxu0 %v1793
    %2348 = vmatpush.msra.mxu0 %v1789
    %2349 = vmatpush.msra.mxu0 %v1785
    %2350 = vmatpush.msra.mxu0 %v1781
    %2351 = vmatpush.msra.mxu0 %v1777
    %2352 = vmatpush.msra.mxu0 %v1773
    %2353 = vmatpush.msra.mxu0 %v1769
    %2354 = vmatpush.msra.mxu0 %v1765
    %2355 = vmatpush.msra.mxu0 %v1761
    %2356 = vmatpush.msra.mxu0 %v1757
    %2357 = vmatpush.msra.mxu0 %v1753
    %2358 = vmatmul.f32.gmra.mxu0 %v2316
    %v2359 = vpop.f32.mrf.mxu0
    %v2360 = vadd.f32 %v2319, %v2359
    %2361 = vdwg.mxu0
    %2362 = vmatpush.msra.mxu0 %v1814
    %2363 = vmatpush.msra.mxu0 %v1810
    %2364 = vmatpush.msra.mxu0 %v1806
    %2365 = vmatpush.msra.mxu0 %v1802
    %2366 = vmatpush.msra.mxu0 %v1798
    %2367 = vmatpush.msra.mxu0 %v1794
    %2368 = vmatpush.msra.mxu0 %v1790
    %2369 = vmatpush.msra.mxu0 %v1786
    %2370 = vmatpush.msra.mxu0 %v1782
    %2371 = vmatpush.msra.mxu0 %v1778
    %2372 = vmatpush.msra.mxu0 %v1774
    %2373 = vmatpush.msra.mxu0 %v1770
    %2374 = vmatpush.msra.mxu0 %v1766
    %2375 = vmatpush.msra.mxu0 %v1762
    %2376 = vmatpush.msra.mxu0 %v1758
    %2377 = vmatpush.msra.mxu0 %v1754
    %2378 = vmatmul.f32.gmra.mxu0 %v2316
    %v2379 = vpop.f32.mrf.mxu0
    %v2380 = vadd.f32 %v2320, %v2379
    %2381 = vdwg.mxu0
    %2382 = vmatpush.msra.mxu0 %v1815
    %2383 = vmatpush.msra.mxu0 %v1811
    %2384 = vmatpush.msra.mxu0 %v1807
    %2385 = vmatpush.msra.mxu0 %v1803
    %2386 = vmatpush.msra.mxu0 %v1799
    %2387 = vmatpush.msra.mxu0 %v1795
    %2388 = vmatpush.msra.mxu0 %v1791
    %2389 = vmatpush.msra.mxu0 %v1787
    %2390 = vmatpush.msra.mxu0 %v1783
    %2391 = vmatpush.msra.mxu0 %v1779
    %2392 = vmatpush.msra.mxu0 %v1775
    %2393 = vmatpush.msra.mxu0 %v1771
    %2394 = vmatpush.msra.mxu0 %v1767
    %2395 = vmatpush.msra.mxu0 %v1763
    %2396 = vmatpush.msra.mxu0 %v1759
    %2397 = vmatpush.msra.mxu0 %v1755
    %2398 = vmatmul.f32.gmra.mxu0 %v2316
    %v2399 = vpop.f32.mrf.mxu0
    %v2400 = vadd.f32 %v2321, %v2399
    %2401 = vdwg.mxu0
    %v2402 = vxor.u32 %v2340, 2147483648
    %v2403 = vmul.f32 %v2402, 1.442695
    %v2404 = vpow.pop %v2403
    %v2405 = vadd.f32 %v2404, 1.0
    %v2406 = vrcp.pop %v2405
    %v2407 = vmul.f32 %v2405, %v2406
    %v2408 = vsub.f32 1.0, %v2407
    %v2409 = vmul.f32 %v2406, %v2408
    %v2410 = vadd.f32 %v2406, %v2409
    %vm2411 = vweird.f32 %v2405
    %vm2412 = vweird.f32 %v2406
    %vm2413 = vmor %vm2411, %vm2412
    %v2414 = vsel %vm2413, %v2406, %v2410
    %v2415 = vand.u32 2147483647, %v2405
    %vm2416 = vcmp.eq.f32.partialorder %v2415, 8.507059e+37
    %v2417 = vand.u32 %v2405, 2147483648
    %v2418 = vor.u32 1.1754944e-38, %v2417
    %v2419 = vsel %vm2416, %v2418, %v2414
    %v2420 = vmul.f32 1.0, %v2419
    %v2421 = vxor.u32 %v2360, 2147483648
    %v2422 = vmul.f32 %v2421, 1.442695
    %v2423 = vpow.pop %v2422
    %v2424 = vadd.f32 %v2423, 1.0
    %v2425 = vrcp.pop %v2424
    %v2426 = vmul.f32 %v2424, %v2425
    %v2427 = vsub.f32 1.0, %v2426
    %v2428 = vmul.f32 %v2425, %v2427
    %v2429 = vadd.f32 %v2425, %v2428
    %vm2430 = vweird.f32 %v2424
    %vm2431 = vweird.f32 %v2425
    %vm2432 = vmor %vm2430, %vm2431
    %v2433 = vsel %vm2432, %v2425, %v2429
    %v2434 = vand.u32 2147483647, %v2424
    %vm2435 = vcmp.eq.f32.partialorder %v2434, 8.507059e+37
    %v2436 = vand.u32 %v2424, 2147483648
    %v2437 = vor.u32 1.1754944e-38, %v2436
    %v2438 = vsel %vm2435, %v2437, %v2433
    %v2439 = vmul.f32 1.0, %v2438
    %v2440 = vtanh.pop %v2380
    %v2441 = vxor.u32 %v2400, 2147483648
    %v2442 = vmul.f32 %v2441, 1.442695
    %v2443 = vpow.pop %v2442
    %v2444 = vadd.f32 %v2443, 1.0
    %v2445 = vrcp.pop %v2444
    %v2446 = vmul.f32 %v2444, %v2445
    %v2447 = vsub.f32 1.0, %v2446
    %v2448 = vmul.f32 %v2445, %v2447
    %v2449 = vadd.f32 %v2445, %v2448
    %vm2450 = vweird.f32 %v2444
    %vm2451 = vweird.f32 %v2445
    %vm2452 = vmor %vm2450, %vm2451
    %v2453 = vsel %vm2452, %v2445, %v2449
    %v2454 = vand.u32 2147483647, %v2444
    %vm2455 = vcmp.eq.f32.partialorder %v2454, 8.507059e+37
    %v2456 = vand.u32 %v2444, 2147483648
    %v2457 = vor.u32 1.1754944e-38, %v2456
    %v2458 = vsel %vm2455, %v2457, %v2453
    %v2459 = vmul.f32 1.0, %v2458
    %v2460 = vmul.f32 %v2439, %v2314
    %v2461 = vmul.f32 %v2420, %v2440
    %v2462 = vadd.f32 %v2460, %v2461
    %v2463 = vtanh.pop %v2462
    %v2464 = vmul.f32 %v2459, %v2463
    %2465 = vst [vmem:[%s928] sm:$0xff] %v2464
    %v2466 = vld [vmem:[%s930] sm:$0xff]
    %v2467 = vld [vmem:[%s930 + $0x8] sm:$0xff]
    %v2468 = vld [vmem:[%s930 + $0x10] sm:$0xff]
    %v2469 = vld [vmem:[%s930 + $0x18] sm:$0xff]
    %2470 = vmatpush.msra.mxu0 %v1812
    %2471 = vmatpush.msra.mxu0 %v1808
    %2472 = vmatpush.msra.mxu0 %v1804
    %2473 = vmatpush.msra.mxu0 %v1800
    %2474 = vmatpush.msra.mxu0 %v1796
    %2475 = vmatpush.msra.mxu0 %v1792
    %2476 = vmatpush.msra.mxu0 %v1788
    %2477 = vmatpush.msra.mxu0 %v1784
    %2478 = vmatpush.msra.mxu0 %v1780
    %2479 = vmatpush.msra.mxu0 %v1776
    %2480 = vmatpush.msra.mxu0 %v1772
    %2481 = vmatpush.msra.mxu0 %v1768
    %2482 = vmatpush.msra.mxu0 %v1764
    %2483 = vmatpush.msra.mxu0 %v1760
    %2484 = vmatpush.msra.mxu0 %v1756
    %2485 = vmatpush.msra.mxu0 %v1752
    %2486 = vmatmul.f32.gmra.mxu0 %v2464
    %v2487 = vpop.f32.mrf.mxu0
    %v2488 = vadd.f32 %v2466, %v2487
    %2489 = vdwg.mxu0
    %2490 = vmatpush.msra.mxu0 %v1813
    %2491 = vmatpush.msra.mxu0 %v1809
    %2492 = vmatpush.msra.mxu0 %v1805
    %2493 = vmatpush.msra.mxu0 %v1801
    %2494 = vmatpush.msra.mxu0 %v1797
    %2495 = vmatpush.msra.mxu0 %v1793
    %2496 = vmatpush.msra.mxu0 %v1789
    %2497 = vmatpush.msra.mxu0 %v1785
    %2498 = vmatpush.msra.mxu0 %v1781
    %2499 = vmatpush.msra.mxu0 %v1777
    %2500 = vmatpush.msra.mxu0 %v1773
    %2501 = vmatpush.msra.mxu0 %v1769
    %2502 = vmatpush.msra.mxu0 %v1765
    %2503 = vmatpush.msra.mxu0 %v1761
    %2504 = vmatpush.msra.mxu0 %v1757
    %2505 = vmatpush.msra.mxu0 %v1753
    %2506 = vmatmul.f32.gmra.mxu0 %v2464
    %v2507 = vpop.f32.mrf.mxu0
    %v2508 = vadd.f32 %v2467, %v2507
    %2509 = vdwg.mxu0
    %2510 = vmatpush.msra.mxu0 %v1814
    %2511 = vmatpush.msra.mxu0 %v1810
    %2512 = vmatpush.msra.mxu0 %v1806
    %2513 = vmatpush.msra.mxu0 %v1802
    %2514 = vmatpush.msra.mxu0 %v1798
    %2515 = vmatpush.msra.mxu0 %v1794
    %2516 = vmatpush.msra.mxu0 %v1790
    %2517 = vmatpush.msra.mxu0 %v1786
    %2518 = vmatpush.msra.mxu0 %v1782
    %2519 = vmatpush.msra.mxu0 %v1778
    %2520 = vmatpush.msra.mxu0 %v1774
    %2521 = vmatpush.msra.mxu0 %v1770
    %2522 = vmatpush.msra.mxu0 %v1766
    %2523 = vmatpush.msra.mxu0 %v1762
    %2524 = vmatpush.msra.mxu0 %v1758
    %2525 = vmatpush.msra.mxu0 %v1754
    %2526 = vmatmul.f32.gmra.mxu0 %v2464
    %v2527 = vpop.f32.mrf.mxu0
    %v2528 = vadd.f32 %v2468, %v2527
    %2529 = vdwg.mxu0
    %2530 = vmatpush.msra.mxu0 %v1815
    %2531 = vmatpush.msra.mxu0 %v1811
    %2532 = vmatpush.msra.mxu0 %v1807
    %2533 = vmatpush.msra.mxu0 %v1803
    %2534 = vmatpush.msra.mxu0 %v1799
    %2535 = vmatpush.msra.mxu0 %v1795
    %2536 = vmatpush.msra.mxu0 %v1791
    %2537 = vmatpush.msra.mxu0 %v1787
    %2538 = vmatpush.msra.mxu0 %v1783
    %2539 = vmatpush.msra.mxu0 %v1779
    %2540 = vmatpush.msra.mxu0 %v1775
    %2541 = vmatpush.msra.mxu0 %v1771
    %2542 = vmatpush.msra.mxu0 %v1767
    %2543 = vmatpush.msra.mxu0 %v1763
    %2544 = vmatpush.msra.mxu0 %v1759
    %2545 = vmatpush.msra.mxu0 %v1755
    %2546 = vmatmul.f32.gmra.mxu0 %v2464
    %v2547 = vpop.f32.mrf.mxu0
    %v2548 = vadd.f32 %v2469, %v2547
    %2549 = vdwg.mxu0
    %v2550 = vxor.u32 %v2488, 2147483648
    %v2551 = vmul.f32 %v2550, 1.442695
    %v2552 = vpow.pop %v2551
    %v2553 = vadd.f32 %v2552, 1.0
    %v2554 = vrcp.pop %v2553
    %v2555 = vmul.f32 %v2553, %v2554
    %v2556 = vsub.f32 1.0, %v2555
    %v2557 = vmul.f32 %v2554, %v2556
    %v2558 = vadd.f32 %v2554, %v2557
    %vm2559 = vweird.f32 %v2553
    %vm2560 = vweird.f32 %v2554
    %vm2561 = vmor %vm2559, %vm2560
    %v2562 = vsel %vm2561, %v2554, %v2558
    %v2563 = vand.u32 2147483647, %v2553
    %vm2564 = vcmp.eq.f32.partialorder %v2563, 8.507059e+37
    %v2565 = vand.u32 %v2553, 2147483648
    %v2566 = vor.u32 1.1754944e-38, %v2565
    %v2567 = vsel %vm2564, %v2566, %v2562
    %v2568 = vmul.f32 1.0, %v2567
    %v2569 = vxor.u32 %v2508, 2147483648
    %v2570 = vmul.f32 %v2569, 1.442695
    %v2571 = vpow.pop %v2570
    %v2572 = vadd.f32 %v2571, 1.0
    %v2573 = vrcp.pop %v2572
    %v2574 = vmul.f32 %v2572, %v2573
    %v2575 = vsub.f32 1.0, %v2574
    %v2576 = vmul.f32 %v2573, %v2575
    %v2577 = vadd.f32 %v2573, %v2576
    %vm2578 = vweird.f32 %v2572
    %vm2579 = vweird.f32 %v2573
    %vm2580 = vmor %vm2578, %vm2579
    %v2581 = vsel %vm2580, %v2573, %v2577
    %v2582 = vand.u32 2147483647, %v2572
    %vm2583 = vcmp.eq.f32.partialorder %v2582, 8.507059e+37
    %v2584 = vand.u32 %v2572, 2147483648
    %v2585 = vor.u32 1.1754944e-38, %v2584
    %v2586 = vsel %vm2583, %v2585, %v2581
    %v2587 = vmul.f32 1.0, %v2586
    %v2588 = vtanh.pop %v2528
    %v2589 = vxor.u32 %v2548, 2147483648
    %v2590 = vmul.f32 %v2589, 1.442695
    %v2591 = vpow.pop %v2590
    %v2592 = vadd.f32 %v2591, 1.0
    %v2593 = vrcp.pop %v2592
    %v2594 = vmul.f32 %v2592, %v2593
    %v2595 = vsub.f32 1.0, %v2594
    %v2596 = vmul.f32 %v2593, %v2595
    %v2597 = vadd.f32 %v2593, %v2596
    %vm2598 = vweird.f32 %v2592
    %vm2599 = vweird.f32 %v2593
    %vm2600 = vmor %vm2598, %vm2599
    %v2601 = vsel %vm2600, %v2593, %v2597
    %v2602 = vand.u32 2147483647, %v2592
    %vm2603 = vcmp.eq.f32.partialorder %v2602, 8.507059e+37
    %v2604 = vand.u32 %v2592, 2147483648
    %v2605 = vor.u32 1.1754944e-38, %v2604
    %v2606 = vsel %vm2603, %v2605, %v2601
    %v2607 = vmul.f32 1.0, %v2606
    %v2608 = vmul.f32 %v2587, %v2462
    %v2609 = vmul.f32 %v2568, %v2588
    %v2610 = vadd.f32 %v2608, %v2609
    %v2611 = vtanh.pop %v2610
    %v2612 = vmul.f32 %v2607, %v2611
    %2613 = vst [vmem:[%s1078] sm:$0xff] %v2612
    %v2614 = vld [vmem:[%s1080] sm:$0xff]
    %v2615 = vld [vmem:[%s1080 + $0x8] sm:$0xff]
    %v2616 = vld [vmem:[%s1080 + $0x10] sm:$0xff]
    %v2617 = vld [vmem:[%s1080 + $0x18] sm:$0xff]
    %2618 = vmatpush.msra.mxu0 %v1812
    %2619 = vmatpush.msra.mxu0 %v1808
    %2620 = vmatpush.msra.mxu0 %v1804
    %2621 = vmatpush.msra.mxu0 %v1800
    %2622 = vmatpush.msra.mxu0 %v1796
    %2623 = vmatpush.msra.mxu0 %v1792
    %2624 = vmatpush.msra.mxu0 %v1788
    %2625 = vmatpush.msra.mxu0 %v1784
    %2626 = vmatpush.msra.mxu0 %v1780
    %2627 = vmatpush.msra.mxu0 %v1776
    %2628 = vmatpush.msra.mxu0 %v1772
    %2629 = vmatpush.msra.mxu0 %v1768
    %2630 = vmatpush.msra.mxu0 %v1764
    %2631 = vmatpush.msra.mxu0 %v1760
    %2632 = vmatpush.msra.mxu0 %v1756
    %2633 = vmatpush.msra.mxu0 %v1752
    %2634 = vmatmul.f32.gmra.mxu0 %v2612
    %v2635 = vpop.f32.mrf.mxu0
    %v2636 = vadd.f32 %v2614, %v2635
    %2637 = vdwg.mxu0
    %2638 = vmatpush.msra.mxu0 %v1813
    %2639 = vmatpush.msra.mxu0 %v1809
    %2640 = vmatpush.msra.mxu0 %v1805
    %2641 = vmatpush.msra.mxu0 %v1801
    %2642 = vmatpush.msra.mxu0 %v1797
    %2643 = vmatpush.msra.mxu0 %v1793
    %2644 = vmatpush.msra.mxu0 %v1789
    %2645 = vmatpush.msra.mxu0 %v1785
    %2646 = vmatpush.msra.mxu0 %v1781
    %2647 = vmatpush.msra.mxu0 %v1777
    %2648 = vmatpush.msra.mxu0 %v1773
    %2649 = vmatpush.msra.mxu0 %v1769
    %2650 = vmatpush.msra.mxu0 %v1765
    %2651 = vmatpush.msra.mxu0 %v1761
    %2652 = vmatpush.msra.mxu0 %v1757
    %2653 = vmatpush.msra.mxu0 %v1753
    %2654 = vmatmul.f32.gmra.mxu0 %v2612
    %v2655 = vpop.f32.mrf.mxu0
    %v2656 = vadd.f32 %v2615, %v2655
    %2657 = vdwg.mxu0
    %2658 = vmatpush.msra.mxu0 %v1814
    %2659 = vmatpush.msra.mxu0 %v1810
    %2660 = vmatpush.msra.mxu0 %v1806
    %2661 = vmatpush.msra.mxu0 %v1802
    %2662 = vmatpush.msra.mxu0 %v1798
    %2663 = vmatpush.msra.mxu0 %v1794
    %2664 = vmatpush.msra.mxu0 %v1790
    %2665 = vmatpush.msra.mxu0 %v1786
    %2666 = vmatpush.msra.mxu0 %v1782
    %2667 = vmatpush.msra.mxu0 %v1778
    %2668 = vmatpush.msra.mxu0 %v1774
    %2669 = vmatpush.msra.mxu0 %v1770
    %2670 = vmatpush.msra.mxu0 %v1766
    %2671 = vmatpush.msra.mxu0 %v1762
    %2672 = vmatpush.msra.mxu0 %v1758
    %2673 = vmatpush.msra.mxu0 %v1754
    %2674 = vmatmul.f32.gmra.mxu0 %v2612
    %v2675 = vpop.f32.mrf.mxu0
    %v2676 = vadd.f32 %v2616, %v2675
    %2677 = vdwg.mxu0
    %2678 = vmatpush.msra.mxu0 %v1815
    %2679 = vmatpush.msra.mxu0 %v1811
    %2680 = vmatpush.msra.mxu0 %v1807
    %2681 = vmatpush.msra.mxu0 %v1803
    %2682 = vmatpush.msra.mxu0 %v1799
    %2683 = vmatpush.msra.mxu0 %v1795
    %2684 = vmatpush.msra.mxu0 %v1791
    %2685 = vmatpush.msra.mxu0 %v1787
    %2686 = vmatpush.msra.mxu0 %v1783
    %2687 = vmatpush.msra.mxu0 %v1779
    %2688 = vmatpush.msra.mxu0 %v1775
    %2689 = vmatpush.msra.mxu0 %v1771
    %2690 = vmatpush.msra.mxu0 %v1767
    %2691 = vmatpush.msra.mxu0 %v1763
    %2692 = vmatpush.msra.mxu0 %v1759
    %2693 = vmatpush.msra.mxu0 %v1755
    %2694 = vmatmul.f32.gmra.mxu0 %v2612
    %v2695 = vpop.f32.mrf.mxu0
    %v2696 = vadd.f32 %v2617, %v2695
    %2697 = vdwg.mxu0
    %v2698 = vxor.u32 %v2636, 2147483648
    %v2699 = vmul.f32 %v2698, 1.442695
    %v2700 = vpow.pop %v2699
    %v2701 = vadd.f32 %v2700, 1.0
    %v2702 = vrcp.pop %v2701
    %v2703 = vmul.f32 %v2701, %v2702
    %v2704 = vsub.f32 1.0, %v2703
    %v2705 = vmul.f32 %v2702, %v2704
    %v2706 = vadd.f32 %v2702, %v2705
    %vm2707 = vweird.f32 %v2701
    %vm2708 = vweird.f32 %v2702
    %vm2709 = vmor %vm2707, %vm2708
    %v2710 = vsel %vm2709, %v2702, %v2706
    %v2711 = vand.u32 2147483647, %v2701
    %vm2712 = vcmp.eq.f32.partialorder %v2711, 8.507059e+37
    %v2713 = vand.u32 %v2701, 2147483648
    %v2714 = vor.u32 1.1754944e-38, %v2713
    %v2715 = vsel %vm2712, %v2714, %v2710
    %v2716 = vmul.f32 1.0, %v2715
    %v2717 = vxor.u32 %v2656, 2147483648
    %v2718 = vmul.f32 %v2717, 1.442695
    %v2719 = vpow.pop %v2718
    %v2720 = vadd.f32 %v2719, 1.0
    %v2721 = vrcp.pop %v2720
    %v2722 = vmul.f32 %v2720, %v2721
    %v2723 = vsub.f32 1.0, %v2722
    %v2724 = vmul.f32 %v2721, %v2723
    %v2725 = vadd.f32 %v2721, %v2724
    %vm2726 = vweird.f32 %v2720
    %vm2727 = vweird.f32 %v2721
    %vm2728 = vmor %vm2726, %vm2727
    %v2729 = vsel %vm2728, %v2721, %v2725
    %v2730 = vand.u32 2147483647, %v2720
    %vm2731 = vcmp.eq.f32.partialorder %v2730, 8.507059e+37
    %v2732 = vand.u32 %v2720, 2147483648
    %v2733 = vor.u32 1.1754944e-38, %v2732
    %v2734 = vsel %vm2731, %v2733, %v2729
    %v2735 = vmul.f32 1.0, %v2734
    %v2736 = vtanh.pop %v2676
    %v2737 = vxor.u32 %v2696, 2147483648
    %v2738 = vmul.f32 %v2737, 1.442695
    %v2739 = vpow.pop %v2738
    %v2740 = vadd.f32 %v2739, 1.0
    %v2741 = vrcp.pop %v2740
    %v2742 = vmul.f32 %v2740, %v2741
    %v2743 = vsub.f32 1.0, %v2742
    %v2744 = vmul.f32 %v2741, %v2743
    %v2745 = vadd.f32 %v2741, %v2744
    %vm2746 = vweird.f32 %v2740
    %vm2747 = vweird.f32 %v2741
    %vm2748 = vmor %vm2746, %vm2747
    %v2749 = vsel %vm2748, %v2741, %v2745
    %v2750 = vand.u32 2147483647, %v2740
    %vm2751 = vcmp.eq.f32.partialorder %v2750, 8.507059e+37
    %v2752 = vand.u32 %v2740, 2147483648
    %v2753 = vor.u32 1.1754944e-38, %v2752
    %v2754 = vsel %vm2751, %v2753, %v2749
    %v2755 = vmul.f32 1.0, %v2754
    %v2756 = vmul.f32 %v2735, %v2610
    %v2757 = vmul.f32 %v2716, %v2736
    %v2758 = vadd.f32 %v2756, %v2757
    %v2759 = vtanh.pop %v2758
    %v2760 = vmul.f32 %v2755, %v2759
    %2761 = vst [vmem:[%s1228] sm:$0xff] %v2760
    %v2762 = vld [vmem:[%s1230] sm:$0xff]
    %v2763 = vld [vmem:[%s1230 + $0x8] sm:$0xff]
    %v2764 = vld [vmem:[%s1230 + $0x10] sm:$0xff]
    %v2765 = vld [vmem:[%s1230 + $0x18] sm:$0xff]
    %2766 = vmatpush.msra.mxu0 %v1812
    %2767 = vmatpush.msra.mxu0 %v1808
    %2768 = vmatpush.msra.mxu0 %v1804
    %2769 = vmatpush.msra.mxu0 %v1800
    %2770 = vmatpush.msra.mxu0 %v1796
    %2771 = vmatpush.msra.mxu0 %v1792
    %2772 = vmatpush.msra.mxu0 %v1788
    %2773 = vmatpush.msra.mxu0 %v1784
    %2774 = vmatpush.msra.mxu0 %v1780
    %2775 = vmatpush.msra.mxu0 %v1776
    %2776 = vmatpush.msra.mxu0 %v1772
    %2777 = vmatpush.msra.mxu0 %v1768
    %2778 = vmatpush.msra.mxu0 %v1764
    %2779 = vmatpush.msra.mxu0 %v1760
    %2780 = vmatpush.msra.mxu0 %v1756
    %2781 = vmatpush.msra.mxu0 %v1752
    %2782 = vmatmul.f32.gmra.mxu0 %v2760
    %v2783 = vpop.f32.mrf.mxu0
    %v2784 = vadd.f32 %v2762, %v2783
    %2785 = vdwg.mxu0
    %2786 = vmatpush.msra.mxu0 %v1813
    %2787 = vmatpush.msra.mxu0 %v1809
    %2788 = vmatpush.msra.mxu0 %v1805
    %2789 = vmatpush.msra.mxu0 %v1801
    %2790 = vmatpush.msra.mxu0 %v1797
    %2791 = vmatpush.msra.mxu0 %v1793
    %2792 = vmatpush.msra.mxu0 %v1789
    %2793 = vmatpush.msra.mxu0 %v1785
    %2794 = vmatpush.msra.mxu0 %v1781
    %2795 = vmatpush.msra.mxu0 %v1777
    %2796 = vmatpush.msra.mxu0 %v1773
    %2797 = vmatpush.msra.mxu0 %v1769
    %2798 = vmatpush.msra.mxu0 %v1765
    %2799 = vmatpush.msra.mxu0 %v1761
    %2800 = vmatpush.msra.mxu0 %v1757
    %2801 = vmatpush.msra.mxu0 %v1753
    %2802 = vmatmul.f32.gmra.mxu0 %v2760
    %v2803 = vpop.f32.mrf.mxu0
    %v2804 = vadd.f32 %v2763, %v2803
    %2805 = vdwg.mxu0
    %2806 = vmatpush.msra.mxu0 %v1814
    %2807 = vmatpush.msra.mxu0 %v1810
    %2808 = vmatpush.msra.mxu0 %v1806
    %2809 = vmatpush.msra.mxu0 %v1802
    %2810 = vmatpush.msra.mxu0 %v1798
    %2811 = vmatpush.msra.mxu0 %v1794
    %2812 = vmatpush.msra.mxu0 %v1790
    %2813 = vmatpush.msra.mxu0 %v1786
    %2814 = vmatpush.msra.mxu0 %v1782
    %2815 = vmatpush.msra.mxu0 %v1778
    %2816 = vmatpush.msra.mxu0 %v1774
    %2817 = vmatpush.msra.mxu0 %v1770
    %2818 = vmatpush.msra.mxu0 %v1766
    %2819 = vmatpush.msra.mxu0 %v1762
    %2820 = vmatpush.msra.mxu0 %v1758
    %2821 = vmatpush.msra.mxu0 %v1754
    %2822 = vmatmul.f32.gmra.mxu0 %v2760
    %v2823 = vpop.f32.mrf.mxu0
    %v2824 = vadd.f32 %v2764, %v2823
    %2825 = vdwg.mxu0
    %2826 = vmatpush.msra.mxu0 %v1815
    %2827 = vmatpush.msra.mxu0 %v1811
    %2828 = vmatpush.msra.mxu0 %v1807
    %2829 = vmatpush.msra.mxu0 %v1803
    %2830 = vmatpush.msra.mxu0 %v1799
    %2831 = vmatpush.msra.mxu0 %v1795
    %2832 = vmatpush.msra.mxu0 %v1791
    %2833 = vmatpush.msra.mxu0 %v1787
    %2834 = vmatpush.msra.mxu0 %v1783
    %2835 = vmatpush.msra.mxu0 %v1779
    %2836 = vmatpush.msra.mxu0 %v1775
    %2837 = vmatpush.msra.mxu0 %v1771
    %2838 = vmatpush.msra.mxu0 %v1767
    %2839 = vmatpush.msra.mxu0 %v1763
    %2840 = vmatpush.msra.mxu0 %v1759
    %2841 = vmatpush.msra.mxu0 %v1755
    %2842 = vmatmul.f32.gmra.mxu0 %v2760
    %v2843 = vpop.f32.mrf.mxu0
    %v2844 = vadd.f32 %v2765, %v2843
    %2845 = vdwg.mxu0
    %v2846 = vxor.u32 %v2784, 2147483648
    %v2847 = vmul.f32 %v2846, 1.442695
    %v2848 = vpow.pop %v2847
    %v2849 = vadd.f32 %v2848, 1.0
    %v2850 = vrcp.pop %v2849
    %v2851 = vmul.f32 %v2849, %v2850
    %v2852 = vsub.f32 1.0, %v2851
    %v2853 = vmul.f32 %v2850, %v2852
    %v2854 = vadd.f32 %v2850, %v2853
    %vm2855 = vweird.f32 %v2849
    %vm2856 = vweird.f32 %v2850
    %vm2857 = vmor %vm2855, %vm2856
    %v2858 = vsel %vm2857, %v2850, %v2854
    %v2859 = vand.u32 2147483647, %v2849
    %vm2860 = vcmp.eq.f32.partialorder %v2859, 8.507059e+37
    %v2861 = vand.u32 %v2849, 2147483648
    %v2862 = vor.u32 1.1754944e-38, %v2861
    %v2863 = vsel %vm2860, %v2862, %v2858
    %v2864 = vmul.f32 1.0, %v2863
    %v2865 = vxor.u32 %v2804, 2147483648
    %v2866 = vmul.f32 %v2865, 1.442695
    %v2867 = vpow.pop %v2866
    %v2868 = vadd.f32 %v2867, 1.0
    %v2869 = vrcp.pop %v2868
    %v2870 = vmul.f32 %v2868, %v2869
    %v2871 = vsub.f32 1.0, %v2870
    %v2872 = vmul.f32 %v2869, %v2871
    %v2873 = vadd.f32 %v2869, %v2872
    %vm2874 = vweird.f32 %v2868
    %vm2875 = vweird.f32 %v2869
    %vm2876 = vmor %vm2874, %vm2875
    %v2877 = vsel %vm2876, %v2869, %v2873
    %v2878 = vand.u32 2147483647, %v2868
    %vm2879 = vcmp.eq.f32.partialorder %v2878, 8.507059e+37
    %v2880 = vand.u32 %v2868, 2147483648
    %v2881 = vor.u32 1.1754944e-38, %v2880
    %v2882 = vsel %vm2879, %v2881, %v2877
    %v2883 = vmul.f32 1.0, %v2882
    %v2884 = vtanh.pop %v2824
    %v2885 = vxor.u32 %v2844, 2147483648
    %v2886 = vmul.f32 %v2885, 1.442695
    %v2887 = vpow.pop %v2886
    %v2888 = vadd.f32 %v2887, 1.0
    %v2889 = vrcp.pop %v2888
    %v2890 = vmul.f32 %v2888, %v2889
    %v2891 = vsub.f32 1.0, %v2890
    %v2892 = vmul.f32 %v2889, %v2891
    %v2893 = vadd.f32 %v2889, %v2892
    %vm2894 = vweird.f32 %v2888
    %vm2895 = vweird.f32 %v2889
    %vm2896 = vmor %vm2894, %vm2895
    %v2897 = vsel %vm2896, %v2889, %v2893
    %v2898 = vand.u32 2147483647, %v2888
    %vm2899 = vcmp.eq.f32.partialorder %v2898, 8.507059e+37
    %v2900 = vand.u32 %v2888, 2147483648
    %v2901 = vor.u32 1.1754944e-38, %v2900
    %v2902 = vsel %vm2899, %v2901, %v2897
    %v2903 = vmul.f32 1.0, %v2902
    %v2904 = vmul.f32 %v2883, %v2758
    %v2905 = vmul.f32 %v2864, %v2884
    %v2906 = vadd.f32 %v2904, %v2905
    %v2907 = vtanh.pop %v2906
    %v2908 = vmul.f32 %v2903, %v2907
    %2909 = vst [vmem:[%s1378] sm:$0xff] %v2908
    %v2910 = vld [vmem:[%s1380] sm:$0xff]
    %v2911 = vld [vmem:[%s1380 + $0x8] sm:$0xff]
    %v2912 = vld [vmem:[%s1380 + $0x10] sm:$0xff]
    %v2913 = vld [vmem:[%s1380 + $0x18] sm:$0xff]
    %2914 = vmatpush.msra.mxu0 %v1812
    %2915 = vmatpush.msra.mxu0 %v1808
    %2916 = vmatpush.msra.mxu0 %v1804
    %2917 = vmatpush.msra.mxu0 %v1800
    %2918 = vmatpush.msra.mxu0 %v1796
    %2919 = vmatpush.msra.mxu0 %v1792
    %2920 = vmatpush.msra.mxu0 %v1788
    %2921 = vmatpush.msra.mxu0 %v1784
    %2922 = vmatpush.msra.mxu0 %v1780
    %2923 = vmatpush.msra.mxu0 %v1776
    %2924 = vmatpush.msra.mxu0 %v1772
    %2925 = vmatpush.msra.mxu0 %v1768
    %2926 = vmatpush.msra.mxu0 %v1764
    %2927 = vmatpush.msra.mxu0 %v1760
    %2928 = vmatpush.msra.mxu0 %v1756
    %2929 = vmatpush.msra.mxu0 %v1752
    %2930 = vmatmul.f32.gmra.mxu0 %v2908
    %v2931 = vpop.f32.mrf.mxu0
    %v2932 = vadd.f32 %v2910, %v2931
    %2933 = vdwg.mxu0
    %2934 = vmatpush.msra.mxu0 %v1813
    %2935 = vmatpush.msra.mxu0 %v1809
    %2936 = vmatpush.msra.mxu0 %v1805
    %2937 = vmatpush.msra.mxu0 %v1801
    %2938 = vmatpush.msra.mxu0 %v1797
    %2939 = vmatpush.msra.mxu0 %v1793
    %2940 = vmatpush.msra.mxu0 %v1789
    %2941 = vmatpush.msra.mxu0 %v1785
    %2942 = vmatpush.msra.mxu0 %v1781
    %2943 = vmatpush.msra.mxu0 %v1777
    %2944 = vmatpush.msra.mxu0 %v1773
    %2945 = vmatpush.msra.mxu0 %v1769
    %2946 = vmatpush.msra.mxu0 %v1765
    %2947 = vmatpush.msra.mxu0 %v1761
    %2948 = vmatpush.msra.mxu0 %v1757
    %2949 = vmatpush.msra.mxu0 %v1753
    %2950 = vmatmul.f32.gmra.mxu0 %v2908
    %v2951 = vpop.f32.mrf.mxu0
    %v2952 = vadd.f32 %v2911, %v2951
    %2953 = vdwg.mxu0
    %2954 = vmatpush.msra.mxu0 %v1814
    %2955 = vmatpush.msra.mxu0 %v1810
    %2956 = vmatpush.msra.mxu0 %v1806
    %2957 = vmatpush.msra.mxu0 %v1802
    %2958 = vmatpush.msra.mxu0 %v1798
    %2959 = vmatpush.msra.mxu0 %v1794
    %2960 = vmatpush.msra.mxu0 %v1790
    %2961 = vmatpush.msra.mxu0 %v1786
    %2962 = vmatpush.msra.mxu0 %v1782
    %2963 = vmatpush.msra.mxu0 %v1778
    %2964 = vmatpush.msra.mxu0 %v1774
    %2965 = vmatpush.msra.mxu0 %v1770
    %2966 = vmatpush.msra.mxu0 %v1766
    %2967 = vmatpush.msra.mxu0 %v1762
    %2968 = vmatpush.msra.mxu0 %v1758
    %2969 = vmatpush.msra.mxu0 %v1754
    %2970 = vmatmul.f32.gmra.mxu0 %v2908
    %v2971 = vpop.f32.mrf.mxu0
    %v2972 = vadd.f32 %v2912, %v2971
    %2973 = vdwg.mxu0
    %2974 = vmatpush.msra.mxu0 %v1815
    %2975 = vmatpush.msra.mxu0 %v1811
    %2976 = vmatpush.msra.mxu0 %v1807
    %2977 = vmatpush.msra.mxu0 %v1803
    %2978 = vmatpush.msra.mxu0 %v1799
    %2979 = vmatpush.msra.mxu0 %v1795
    %2980 = vmatpush.msra.mxu0 %v1791
    %2981 = vmatpush.msra.mxu0 %v1787
    %2982 = vmatpush.msra.mxu0 %v1783
    %2983 = vmatpush.msra.mxu0 %v1779
    %2984 = vmatpush.msra.mxu0 %v1775
    %2985 = vmatpush.msra.mxu0 %v1771
    %2986 = vmatpush.msra.mxu0 %v1767
    %2987 = vmatpush.msra.mxu0 %v1763
    %2988 = vmatpush.msra.mxu0 %v1759
    %2989 = vmatpush.msra.mxu0 %v1755
    %2990 = vmatmul.f32.gmra.mxu0 %v2908
    %v2991 = vpop.f32.mrf.mxu0
    %v2992 = vadd.f32 %v2913, %v2991
    %2993 = vdwg.mxu0
    %v2994 = vxor.u32 %v2932, 2147483648
    %v2995 = vmul.f32 %v2994, 1.442695
    %v2996 = vpow.pop %v2995
    %v2997 = vadd.f32 %v2996, 1.0
    %v2998 = vrcp.pop %v2997
    %v2999 = vmul.f32 %v2997, %v2998
    %v3000 = vsub.f32 1.0, %v2999
    %v3001 = vmul.f32 %v2998, %v3000
    %v3002 = vadd.f32 %v2998, %v3001
    %vm3003 = vweird.f32 %v2997
    %vm3004 = vweird.f32 %v2998
    %vm3005 = vmor %vm3003, %vm3004
    %v3006 = vsel %vm3005, %v2998, %v3002
    %v3007 = vand.u32 2147483647, %v2997
    %vm3008 = vcmp.eq.f32.partialorder %v3007, 8.507059e+37
    %v3009 = vand.u32 %v2997, 2147483648
    %v3010 = vor.u32 1.1754944e-38, %v3009
    %v3011 = vsel %vm3008, %v3010, %v3006
    %v3012 = vmul.f32 1.0, %v3011
    %v3013 = vxor.u32 %v2952, 2147483648
    %v3014 = vmul.f32 %v3013, 1.442695
    %v3015 = vpow.pop %v3014
    %v3016 = vadd.f32 %v3015, 1.0
    %v3017 = vrcp.pop %v3016
    %v3018 = vmul.f32 %v3016, %v3017
    %v3019 = vsub.f32 1.0, %v3018
    %v3020 = vmul.f32 %v3017, %v3019
    %v3021 = vadd.f32 %v3017, %v3020
    %vm3022 = vweird.f32 %v3016
    %vm3023 = vweird.f32 %v3017
    %vm3024 = vmor %vm3022, %vm3023
    %v3025 = vsel %vm3024, %v3017, %v3021
    %v3026 = vand.u32 2147483647, %v3016
    %vm3027 = vcmp.eq.f32.partialorder %v3026, 8.507059e+37
    %v3028 = vand.u32 %v3016, 2147483648
    %v3029 = vor.u32 1.1754944e-38, %v3028
    %v3030 = vsel %vm3027, %v3029, %v3025
    %v3031 = vmul.f32 1.0, %v3030
    %v3032 = vtanh.pop %v2972
    %v3033 = vxor.u32 %v2992, 2147483648
    %v3034 = vmul.f32 %v3033, 1.442695
    %v3035 = vpow.pop %v3034
    %v3036 = vadd.f32 %v3035, 1.0
    %v3037 = vrcp.pop %v3036
    %v3038 = vmul.f32 %v3036, %v3037
    %v3039 = vsub.f32 1.0, %v3038
    %v3040 = vmul.f32 %v3037, %v3039
    %v3041 = vadd.f32 %v3037, %v3040
    %vm3042 = vweird.f32 %v3036
    %vm3043 = vweird.f32 %v3037
    %vm3044 = vmor %vm3042, %vm3043
    %v3045 = vsel %vm3044, %v3037, %v3041
    %v3046 = vand.u32 2147483647, %v3036
    %vm3047 = vcmp.eq.f32.partialorder %v3046, 8.507059e+37
    %v3048 = vand.u32 %v3036, 2147483648
    %v3049 = vor.u32 1.1754944e-38, %v3048
    %v3050 = vsel %vm3047, %v3049, %v3045
    %v3051 = vmul.f32 1.0, %v3050
    %v3052 = vmul.f32 %v3031, %v2906
    %v3053 = vmul.f32 %v3012, %v3032
    %v3054 = vadd.f32 %v3052, %v3053
    %v3055 = vtanh.pop %v3054
    %v3056 = vmul.f32 %v3051, %v3055
    %3057 = vst [vmem:[%s1528] sm:$0xff] %v3056
    %v3058 = vld [vmem:[%s1530] sm:$0xff]
    %v3059 = vld [vmem:[%s1530 + $0x8] sm:$0xff]
    %v3060 = vld [vmem:[%s1530 + $0x10] sm:$0xff]
    %v3061 = vld [vmem:[%s1530 + $0x18] sm:$0xff]
    %3062 = vmatpush.msra.mxu0 %v1812
    %3063 = vmatpush.msra.mxu0 %v1808
    %3064 = vmatpush.msra.mxu0 %v1804
    %3065 = vmatpush.msra.mxu0 %v1800
    %3066 = vmatpush.msra.mxu0 %v1796
    %3067 = vmatpush.msra.mxu0 %v1792
    %3068 = vmatpush.msra.mxu0 %v1788
    %3069 = vmatpush.msra.mxu0 %v1784
    %3070 = vmatpush.msra.mxu0 %v1780
    %3071 = vmatpush.msra.mxu0 %v1776
    %3072 = vmatpush.msra.mxu0 %v1772
    %3073 = vmatpush.msra.mxu0 %v1768
    %3074 = vmatpush.msra.mxu0 %v1764
    %3075 = vmatpush.msra.mxu0 %v1760
    %3076 = vmatpush.msra.mxu0 %v1756
    %3077 = vmatpush.msra.mxu0 %v1752
    %3078 = vmatmul.f32.gmra.mxu0 %v3056
    %v3079 = vpop.f32.mrf.mxu0
    %v3080 = vadd.f32 %v3058, %v3079
    %3081 = vdwg.mxu0
    %3082 = vmatpush.msra.mxu0 %v1813
    %3083 = vmatpush.msra.mxu0 %v1809
    %3084 = vmatpush.msra.mxu0 %v1805
    %3085 = vmatpush.msra.mxu0 %v1801
    %3086 = vmatpush.msra.mxu0 %v1797
    %3087 = vmatpush.msra.mxu0 %v1793
    %3088 = vmatpush.msra.mxu0 %v1789
    %3089 = vmatpush.msra.mxu0 %v1785
    %3090 = vmatpush.msra.mxu0 %v1781
    %3091 = vmatpush.msra.mxu0 %v1777
    %3092 = vmatpush.msra.mxu0 %v1773
    %3093 = vmatpush.msra.mxu0 %v1769
    %3094 = vmatpush.msra.mxu0 %v1765
    %3095 = vmatpush.msra.mxu0 %v1761
    %3096 = vmatpush.msra.mxu0 %v1757
    %3097 = vmatpush.msra.mxu0 %v1753
    %3098 = vmatmul.f32.gmra.mxu0 %v3056
    %v3099 = vpop.f32.mrf.mxu0
    %v3100 = vadd.f32 %v3059, %v3099
    %3101 = vdwg.mxu0
    %3102 = vmatpush.msra.mxu0 %v1814
    %3103 = vmatpush.msra.mxu0 %v1810
    %3104 = vmatpush.msra.mxu0 %v1806
    %3105 = vmatpush.msra.mxu0 %v1802
    %3106 = vmatpush.msra.mxu0 %v1798
    %3107 = vmatpush.msra.mxu0 %v1794
    %3108 = vmatpush.msra.mxu0 %v1790
    %3109 = vmatpush.msra.mxu0 %v1786
    %3110 = vmatpush.msra.mxu0 %v1782
    %3111 = vmatpush.msra.mxu0 %v1778
    %3112 = vmatpush.msra.mxu0 %v1774
    %3113 = vmatpush.msra.mxu0 %v1770
    %3114 = vmatpush.msra.mxu0 %v1766
    %3115 = vmatpush.msra.mxu0 %v1762
    %3116 = vmatpush.msra.mxu0 %v1758
    %3117 = vmatpush.msra.mxu0 %v1754
    %3118 = vmatmul.f32.gmra.mxu0 %v3056
    %v3119 = vpop.f32.mrf.mxu0
    %v3120 = vadd.f32 %v3060, %v3119
    %3121 = vdwg.mxu0
    %3122 = vmatpush.msra.mxu0 %v1815
    %3123 = vmatpush.msra.mxu0 %v1811
    %3124 = vmatpush.msra.mxu0 %v1807
    %3125 = vmatpush.msra.mxu0 %v1803
    %3126 = vmatpush.msra.mxu0 %v1799
    %3127 = vmatpush.msra.mxu0 %v1795
    %3128 = vmatpush.msra.mxu0 %v1791
    %3129 = vmatpush.msra.mxu0 %v1787
    %3130 = vmatpush.msra.mxu0 %v1783
    %3131 = vmatpush.msra.mxu0 %v1779
    %3132 = vmatpush.msra.mxu0 %v1775
    %3133 = vmatpush.msra.mxu0 %v1771
    %3134 = vmatpush.msra.mxu0 %v1767
    %3135 = vmatpush.msra.mxu0 %v1763
    %3136 = vmatpush.msra.mxu0 %v1759
    %3137 = vmatpush.msra.mxu0 %v1755
    %3138 = vmatmul.f32.gmra.mxu0 %v3056
    %v3139 = vpop.f32.mrf.mxu0
    %v3140 = vadd.f32 %v3061, %v3139
    %3141 = vdwg.mxu0
    %v3142 = vxor.u32 %v3080, 2147483648
    %v3143 = vmul.f32 %v3142, 1.442695
    %v3144 = vpow.pop %v3143
    %v3145 = vadd.f32 %v3144, 1.0
    %v3146 = vrcp.pop %v3145
    %v3147 = vmul.f32 %v3145, %v3146
    %v3148 = vsub.f32 1.0, %v3147
    %v3149 = vmul.f32 %v3146, %v3148
    %v3150 = vadd.f32 %v3146, %v3149
    %vm3151 = vweird.f32 %v3145
    %vm3152 = vweird.f32 %v3146
    %vm3153 = vmor %vm3151, %vm3152
    %v3154 = vsel %vm3153, %v3146, %v3150
    %v3155 = vand.u32 2147483647, %v3145
    %vm3156 = vcmp.eq.f32.partialorder %v3155, 8.507059e+37
    %v3157 = vand.u32 %v3145, 2147483648
    %v3158 = vor.u32 1.1754944e-38, %v3157
    %v3159 = vsel %vm3156, %v3158, %v3154
    %v3160 = vmul.f32 1.0, %v3159
    %v3161 = vxor.u32 %v3100, 2147483648
    %v3162 = vmul.f32 %v3161, 1.442695
    %v3163 = vpow.pop %v3162
    %v3164 = vadd.f32 %v3163, 1.0
    %v3165 = vrcp.pop %v3164
    %v3166 = vmul.f32 %v3164, %v3165
    %v3167 = vsub.f32 1.0, %v3166
    %v3168 = vmul.f32 %v3165, %v3167
    %v3169 = vadd.f32 %v3165, %v3168
    %vm3170 = vweird.f32 %v3164
    %vm3171 = vweird.f32 %v3165
    %vm3172 = vmor %vm3170, %vm3171
    %v3173 = vsel %vm3172, %v3165, %v3169
    %v3174 = vand.u32 2147483647, %v3164
    %vm3175 = vcmp.eq.f32.partialorder %v3174, 8.507059e+37
    %v3176 = vand.u32 %v3164, 2147483648
    %v3177 = vor.u32 1.1754944e-38, %v3176
    %v3178 = vsel %vm3175, %v3177, %v3173
    %v3179 = vmul.f32 1.0, %v3178
    %v3180 = vtanh.pop %v3120
    %v3181 = vxor.u32 %v3140, 2147483648
    %v3182 = vmul.f32 %v3181, 1.442695
    %v3183 = vpow.pop %v3182
    %v3184 = vadd.f32 %v3183, 1.0
    %v3185 = vrcp.pop %v3184
    %v3186 = vmul.f32 %v3184, %v3185
    %v3187 = vsub.f32 1.0, %v3186
    %v3188 = vmul.f32 %v3185, %v3187
    %v3189 = vadd.f32 %v3185, %v3188
    %vm3190 = vweird.f32 %v3184
    %vm3191 = vweird.f32 %v3185
    %vm3192 = vmor %vm3190, %vm3191
    %v3193 = vsel %vm3192, %v3185, %v3189
    %v3194 = vand.u32 2147483647, %v3184
    %vm3195 = vcmp.eq.f32.partialorder %v3194, 8.507059e+37
    %v3196 = vand.u32 %v3184, 2147483648
    %v3197 = vor.u32 1.1754944e-38, %v3196
    %v3198 = vsel %vm3195, %v3197, %v3193
    %v3199 = vmul.f32 1.0, %v3198
    %v3200 = vmul.f32 %v3179, %v3054
    %v3201 = vmul.f32 %v3160, %v3180
    %v3202 = vadd.f32 %v3200, %v3201
    %v3203 = vtanh.pop %v3202
    %v3204 = vmul.f32 %v3199, %v3203
    %3205 = vst [vmem:[%s1678] sm:$0xff] %v3204
    %v3206 = vld [vmem:[#allocation2] sm:$0xff]
    %v3207 = vld [vmem:[#allocation2 + $0x8] sm:$0xff]
    %v3208 = vld [vmem:[#allocation2 + $0x10] sm:$0xff]
    %v3209 = vld [vmem:[#allocation2 + $0x18] sm:$0xff]
    %v3210 = vld [vmem:[#allocation2 + $0x20] sm:$0xff]
    %v3211 = vld [vmem:[#allocation2 + $0x28] sm:$0xff]
    %v3212 = vld [vmem:[#allocation2 + $0x30] sm:$0xff]
    %v3213 = vld [vmem:[#allocation2 + $0x38] sm:$0xff]
    %v3214 = vld [vmem:[#allocation15] sm:$0xff]
    %v3215 = vld [vmem:[#allocation15 + $0x8] sm:$0xff]
    %v3216 = vld [vmem:[#allocation15 + $0x10] sm:$0xff]
    %v3217 = vld [vmem:[#allocation15 + $0x18] sm:$0xff]
    %v3218 = vld [vmem:[#allocation15 + $0x20] sm:$0xff]
    %v3219 = vld [vmem:[#allocation15 + $0x28] sm:$0xff]
    %v3220 = vld [vmem:[#allocation15 + $0x30] sm:$0xff]
    %v3221 = vld [vmem:[#allocation15 + $0x38] sm:$0xff]
    %v3222 = vld [vmem:[#allocation15 + $0x40] sm:$0xff]
    %v3223 = vld [vmem:[#allocation15 + $0x48] sm:$0xff]
    %v3224 = vld [vmem:[#allocation15 + $0x50] sm:$0xff]
    %v3225 = vld [vmem:[#allocation15 + $0x58] sm:$0xff]
    %v3226 = vld [vmem:[#allocation15 + $0x60] sm:$0xff]
    %v3227 = vld [vmem:[#allocation15 + $0x68] sm:$0xff]
    %v3228 = vld [vmem:[#allocation15 + $0x70] sm:$0xff]
    %v3229 = vld [vmem:[#allocation15 + $0x78] sm:$0xff]
    %v3230 = vld [vmem:[%s8] sm:$0x1]
    %v3232 = vperm.slane %v3230, 0
    %3234 = vmatpush.msra.mxu0 %v3229
    %3235 = vmatpush.msra.mxu0 %v3228
    %3236 = vmatpush.msra.mxu0 %v3227
    %3237 = vmatpush.msra.mxu0 %v3226
    %3238 = vmatpush.msra.mxu0 %v3225
    %3239 = vmatpush.msra.mxu0 %v3224
    %3240 = vmatpush.msra.mxu0 %v3223
    %3241 = vmatpush.msra.mxu0 %v3222
    %3242 = vmatpush.msra.mxu0 %v3221
    %3243 = vmatpush.msra.mxu0 %v3220
    %3244 = vmatpush.msra.mxu0 %v3219
    %3245 = vmatpush.msra.mxu0 %v3218
    %3246 = vmatpush.msra.mxu0 %v3217
    %3247 = vmatpush.msra.mxu0 %v3216
    %3248 = vmatpush.msra.mxu0 %v3215
    %3249 = vmatpush.msra.mxu0 %v3214
    %3250 = vmatmul.f32.gmra.mxu0 %v3206
    %v3251 = vpop.f32.mrf.mxu0
    %v3252 = vadd.f32 %v3232, %v3251
    %3253 = vmatmul.f32.gmra.mxu0 %v3207
    %v3254 = vpop.f32.mrf.mxu0
    %v3255 = vadd.f32 %v3232, %v3254
    %3256 = vmatmul.f32.gmra.mxu0 %v3208
    %v3257 = vpop.f32.mrf.mxu0
    %v3258 = vadd.f32 %v3232, %v3257
    %3259 = vmatmul.f32.gmra.mxu0 %v3209
    %v3260 = vpop.f32.mrf.mxu0
    %v3261 = vadd.f32 %v3232, %v3260
    %3262 = vmatmul.f32.gmra.mxu0 %v3210
    %v3263 = vpop.f32.mrf.mxu0
    %v3264 = vadd.f32 %v3232, %v3263
    %3265 = vmatmul.f32.gmra.mxu0 %v3211
    %v3266 = vpop.f32.mrf.mxu0
    %v3267 = vadd.f32 %v3232, %v3266
    %3268 = vmatmul.f32.gmra.mxu0 %v3212
    %v3269 = vpop.f32.mrf.mxu0
    %v3270 = vadd.f32 %v3232, %v3269
    %3271 = vmatmul.f32.gmra.mxu0 %v3213
    %v3272 = vpop.f32.mrf.mxu0
    %v3273 = vadd.f32 %v3232, %v3272
    %3274 = vdwg.mxu0
    %3275 = vst [vmem:[#allocation16] sm:$0xff] %v3252
    %3276 = vst [vmem:[#allocation16 + $0x8] sm:$0xff] %v3255
    %3277 = vst [vmem:[#allocation16 + $0x10] sm:$0xff] %v3258
    %3278 = vst [vmem:[#allocation16 + $0x18] sm:$0xff] %v3261
    %3279 = vst [vmem:[#allocation16 + $0x20] sm:$0xff] %v3264
    %3280 = vst [vmem:[#allocation16 + $0x28] sm:$0xff] %v3267
    %3281 = vst [vmem:[#allocation16 + $0x30] sm:$0xff] %v3270
    %3282 = vst [vmem:[#allocation16 + $0x38] sm:$0xff] %v3273
    // Predicated region
    $region66: #{tpu_custom_call.1} parent=1 // pred_check
      _
    $region67: #{tpu_custom_call.1} parent=1 // pred_check_branch
      %3284 = sbr.rel (0) target = $region69
    $region68: #{tpu_custom_call.1} parent=1 // pred_region
      %3286 = vsyncadd [#allocation6], 0
      %s3287 = sshll.u32 [#allocation16], 4
      %s3288 = int_to_ptr.vmem [resolvable:$true] %s3287
      %s3289 = sshll.u32 %s9, 4
      %s3290 = int_to_ptr.hbm [resolvable:$true] %s3289
      %3295 = dma.vmem_to_hbm [thread:$0]  %s3288, 1024, %s3290, [#allocation6], 128, 128, 8
    $region69: #{tpu_custom_call.1} parent=1 // pred_fallthru
      _
    // Predicated region
    $region70: #{tpu_custom_call.1} parent=1 // pred_check
      _
    $region71: #{tpu_custom_call.1} parent=1 // pred_check_branch
      %3297 = sbr.rel (0) target = $region73
    $region72: #{tpu_custom_call.1} parent=1 // pred_region
      %3299 = dma.done [#allocation6], 1024
    $region73: #{tpu_custom_call.1} parent=1 // pred_fallthru
      _
    %3300 = vsyncpa [#allocation5], 1
    %3301 = vsyncpa [#allocation8], 1
    %3302 = vsyncpa [#allocation11], 1
    %3303 = vsyncpa [#allocation14], 1
    %3304 = vsyncpa [#allocation6], 1

</llo_original>
